<compile_context>
chip_gen: v7x
topology: tpu7x:2x2x1
jax: 0.10.0
libtpu: 0.0.40
codegen_flags: <defaults>
</compile_context>

<pallas_src>
import functools

import jax
import jax.numpy as jnp
from jax.experimental import pallas as pl
from jax.experimental.pallas import tpu as pltpu

OUT_LANES = 128  # lane-dense merged output width: [policy | value | zero pad]


# ----------------------------------------------------------------------------
# Fused forward kernel: conv1 -> conv2 -> FC -> {policy softmax, value}
# ----------------------------------------------------------------------------
def _ppo_fused_kernel(pat_ref, w1_ref, b1_ref, w2_ref, b2_ref,
                      wfc_ref, bfc_ref, wh_ref, bh_ref, out_ref,
                      *, num_actions, height, w_half):
    f32, bf16 = jnp.float32, jnp.bfloat16
    _, TB, HWo, K1 = pat_ref.shape            # (2, TB, H*(W//2), 9*C0)
    C1 = w1_ref.shape[-1]
    C2 = w2_ref.shape[-1]
    H, Wo = height, w_half
    Ho = H // 2
    A = num_actions
    Mh = TB * HWo                             # rows per column phase, (b, h, j)
    M2 = TB * Ho * Wo                         # conv2 output rows, (b, i, j)

    def dotf(a, b):
        return jnp.dot(a, b, preferred_element_type=f32)

    # ---- conv1: ONE MXU matmul over the host-built 3x3 patches (K = 9*C0) ----
    # Rows are (phase, b, h, j); phase 0/1 = even/odd output columns, so both
    # column phases of all TB images share a single matmul (batch in M).
    pat = pat_ref[...].reshape(2 * Mh, K1)                            # bf16
    h1 = jnp.maximum(dotf(pat, w1_ref[...]) + b1_ref[...], 0.0)       # (2*Mh, C1)
    h1 = h1.reshape(2, Mh, C1)
    h_e = h1[0]                               # conv1 output at even cols 2j
    h_o = h1[1]                               # conv1 output at odd  cols 2j+1

    # conv2 kw=0 tap reads column 2j-1 = odd phase at j-1 (zero at j == 0).
    # Zero-prepended row shift + mask replaces the old shift-matrix matmul.
    shifted = jnp.concatenate([jnp.zeros((1, C1), f32), h_o[:Mh - 1]], axis=0)
    jmod = jax.lax.broadcasted_iota(jnp.int32, (Mh, C1), 0) % Wo
    h_osh = jnp.where(jmod == 0, 0.0, shifted)

    # ---- conv2: 3x3 stride 2 pad 1, ONE MXU matmul with K = 9*C1 --------------
    def row_taps(x):
        # x: (Mh, C1) with rows (b, h, j) -> three (M2, C1) slabs for kh = 0,1,2
        x4 = x.reshape(TB * Ho, 2 * Wo, C1)    # rows (b, i); inner (row parity, j)
        even = x4[:, :Wo, :].reshape(M2, C1)   # row 2i      (kh = 1)
        odd = x4[:, Wo:, :].reshape(M2, C1)    # row 2i + 1  (kh = 2)
        up = jnp.concatenate([jnp.zeros((Wo, C1), f32), odd[:M2 - Wo]], axis=0)
        imod = jax.lax.broadcasted_iota(jnp.int32, (M2, C1), 0) % (Ho * Wo)
        up = jnp.where(imod < Wo, 0.0, up)     # row 2i - 1  (kh = 0), zero at i=0
        return up, even, odd

    per_kw = [row_taps(x) for x in (h_osh, h_e, h_o)]   # indexed [kw][kh]
    slab = jnp.concatenate(
        [per_kw[kw][kh] for kh in range(3) for kw in range(3)],
        axis=-1).astype(bf16)                                         # (M2, 9*C1)
    h2 = jnp.maximum(dotf(slab, w2_ref[...]) + b2_ref[...], 0.0)      # (M2, C2)

    # ---- FC: single (TB, Ho*Wo*C2) x (Ho*Wo*C2, F) contraction ----------------
    # wfc is re-laid out on the host to NHWC-flatten order (r, c), so the
    # activation only needs a lane concat of the Ho*Wo spatial rows.
    h2_3d = h2.reshape(TB, Ho * Wo, C2)
    h2_wide = jnp.concatenate([h2_3d[:, r, :] for r in range(Ho * Wo)], axis=-1)
    h3 = jnp.maximum(dotf(h2_wide.astype(bf16), wfc_ref[...]) + bfc_ref[...], 0.0)

    # ---- fused, lane-padded policy/value head (kept f32 for value precision) --
    logits = dotf(h3, wh_ref[...]) + bh_ref[...]          # (TB, OUT_LANES) f32
    pol_logits = logits[:, :A]
    m = jnp.max(pol_logits, axis=-1, keepdims=True)
    e = jnp.exp(pol_logits - m)
    denom = jnp.sum(e, axis=-1, keepdims=True)
    pol = e / denom                                       # exact softmax
    # cols [0:A) = policy, col A = value, cols > A are exactly zero (zero-padded
    # head weights/bias) -> one lane-dense unmasked store.
    out_ref[:, 0, :] = jnp.concatenate([pol, logits[:, A:]], axis=-1)


# ----------------------------------------------------------------------------
# Parameters (PyTorch layout + one-time kernel-layout views)
# ----------------------------------------------------------------------------
def init_params(in_channels, num_actions, spatial, key):
    ks = jax.random.split(key, 10)
    scale = 0.05
    c1, c2, fc = 16, 32, 64
    ho = wo = spatial // 2
    assert num_actions + 1 <= OUT_LANES
    p = {
        # PyTorch-layout parameters (conv weights (O, I, KH, KW); FC weight rows
        # follow the PyTorch NCHW flatten order (c, i, j)).
        "w1": scale * jax.random.normal(ks[0], (c1, in_channels, 3, 3), jnp.float32),
        "b1": scale * jax.random.normal(ks[1], (c1,), jnp.float32),
        "w2": scale * jax.random.normal(ks[2], (c2, c1, 3, 3), jnp.float32),
        "b2": scale * jax.random.normal(ks[3], (c2,), jnp.float32),
        "wfc": scale * jax.random.normal(ks[4], (c2 * ho * wo, fc), jnp.float32),
        "bfc": scale * jax.random.normal(ks[5], (fc,), jnp.float32),
        "wp": scale * jax.random.normal(ks[6], (fc, num_actions), jnp.float32),
        "bp": scale * jax.random.normal(ks[7], (num_actions,), jnp.float32),
        "wv": scale * jax.random.normal(ks[8], (fc, 1), jnp.float32),
        "bv": scale * jax.random.normal(ks[9], (1,), jnp.float32),
    }
    # One-time kernel-layout views:
    #  * conv weights -> (kh, kw, c_in)-major rows, (9*C, O) bf16 for K-stacked
    #    single-matmul convs.
    #  * FC weight -> NHWC-flatten row order (r, c) so the in-kernel activation
    #    is a plain lane concat of spatial rows.
    #  * policy/value heads concatenated and zero-padded to a lane-dense
    #    (F, 128) f32 block (kept f32 for value precision / exact softmax).
    p["w1k"] = (p["w1"].transpose(2, 3, 1, 0)
                .reshape(9 * in_channels, c1).astype(jnp.bfloat16))
    p["w2k"] = p["w2"].transpose(2, 3, 1, 0).reshape(9 * c1, c2).astype(jnp.bfloat16)
    p["wfck"] = (p["wfc"].reshape(c2, ho * wo, fc).transpose(1, 0, 2)
                 .reshape(ho * wo * c2, fc).astype(jnp.bfloat16))
    whead = jnp.concatenate([p["wp"], p["wv"]], axis=1)          # (fc, A+1)
    bhead = jnp.concatenate([p["bp"], p["bv"]])                  # (A+1,)
    pad = OUT_LANES - (num_actions + 1)
    p["wheadk"] = jnp.pad(whead, ((0, 0), (0, pad)))             # (fc, 128) f32
    p["bheadk"] = jnp.pad(bhead, (0, pad)).reshape(1, OUT_LANES)
    p["b1k"] = p["b1"].reshape(1, c1)
    p["b2k"] = p["b2"].reshape(1, c2)
    p["bfck"] = p["bfc"].reshape(1, fc)
    return p


# ----------------------------------------------------------------------------
# Forward wrapper
# ----------------------------------------------------------------------------
def _pick_tb(batch):
    """Images per grid step: fold batch into M while keeping >= 2 grid steps
    (v7x has two TensorCores); on v5e/v6e the grid is serial so bigger TB only
    helps."""
    for tb in (8, 4, 2, 1):
        if batch % tb == 0 and batch // tb >= 2:
            return tb
    return batch


def _vmem_limit_bytes(tb, H, Wo, C0, C1, C2, F):
    # Estimate real buffer footprints ((8,128)-padded) instead of a blanket cap.
    def padded(shape, itemsize):
        lead = 1
        for d in shape[:-2]:
            lead *= d
        sub = -(-shape[-2] // 8) * 8
        lane = -(-shape[-1] // 128) * 128
        return lead * sub * lane * itemsize

    buffers = (
        2 * padded((2, tb, H * Wo, 9 * C0), 2)            # patch block (x2 bufs)
        + 2 * padded((tb, 1, OUT_LANES), 4)               # output block
        + 2 * (padded((9 * C0, C1), 2) + padded((1, C1), 4)
               + padded((9 * C1, C2), 2) + padded((1, C2), 4)
               + padded(((H // 2) * Wo * C2, F), 2) + padded((1, F), 4)
               + padded((F, OUT_LANES), 4) + padded((1, OUT_LANES), 4)))
    return min(int(buffers) + (16 << 20), 100 << 20)      # + slack for temporaries


def ppo_agent_forward(params, x, tb=None):
    """x: (B, C, H, W) NCHW float32 -> (policy (B, A), value (B, 1))."""
    B, C0, H, W = x.shape
    assert H % 2 == 0 and W % 2 == 0
    Ho, Wo = H // 2, W // 2
    C1 = params["w1k"].shape[-1]
    C2 = params["w2k"].shape[-1]
    F = params["wfck"].shape[-1]
    A = params["wp"].shape[1]
    tb = _pick_tb(B) if tb is None else tb
    assert B % tb == 0

    # One-time layout work (host XLA, tiny at these sizes): NCHW -> NHWC, pad by
    # 1, gather the nine 3x3 taps into a (..., 9*C0) patch axis, split output
    # columns into even/odd phases, stack the phases along M, cast to bf16.
    xp = jnp.pad(jnp.transpose(x, (0, 2, 3, 1)).astype(jnp.float32),
                 ((0, 0), (1, 1), (1, 1), (0, 0)))
    pat = jnp.concatenate(
        [xp[:, kh:kh + H, kw:kw + W, :] for kh in range(3) for kw in range(3)],
        axis=-1)                                             # (B, H, W, 9*C0)
    patches = jnp.stack([pat[:, :, 0::2, :], pat[:, :, 1::2, :]], axis=0)
    patches = patches.reshape(2, B, H * Wo, 9 * C0).astype(jnp.bfloat16)

    def const_spec(shape):
        nd = len(shape)
        # Constant block index across the grid -> Pallas does not re-DMA the
        # block per step (weights stay resident in VMEM).
        return pl.BlockSpec(shape, lambda g, _nd=nd: (0,) * _nd)

    kernel = functools.partial(_ppo_fused_kernel, num_actions=A,
                               height=H, w_half=Wo)

    out = pl.pallas_call(
        kernel,
        out_shape=jax.ShapeDtypeStruct((B, 1, OUT_LANES), jnp.float32),
        grid=(B // tb,),
        in_specs=[
            pl.BlockSpec((2, tb, H * Wo, 9 * C0), lambda g: (0, g, 0, 0)),
            const_spec((9 * C0, C1)), const_spec((1, C1)),
            const_spec((9 * C1, C2)), const_spec((1, C2)),
            const_spec((Ho * Wo * C2, F)), const_spec((1, F)),
            const_spec((F, OUT_LANES)), const_spec((1, OUT_LANES)),
        ],
        out_specs=pl.BlockSpec((tb, 1, OUT_LANES), lambda g: (g, 0, 0)),
        compiler_params=pltpu.CompilerParams(
            dimension_semantics=("parallel",),
            vmem_limit_bytes=_vmem_limit_bytes(tb, H, Wo, C0, C1, C2, F)),
    )(patches,
      params["w1k"], params["b1k"], params["w2k"], params["b2k"],
      params["wfck"], params["bfck"], params["wheadk"], params["bheadk"])

    out = out.reshape(B, OUT_LANES)
    return out[:, :A], out[:, A:A + 1]

# TODO(synk): PPO_Agent.select_action (np.random.choice on the host) is sampling
# glue outside forward(); not lowered to a kernel.


# ----------------------------------------------------------------------------
# Pure-XLA f32 reference of the same network (numerical cross-check only)
# ----------------------------------------------------------------------------
def _reference_forward(params, x):
    dn = ("NCHW", "OIHW", "NCHW")
    y = jax.lax.conv_general_dilated(x, params["w1"], (1, 1), ((1, 1), (1, 1)),
                                     dimension_numbers=dn)
    y = jax.nn.relu(y + params["b1"][None, :, None, None])
    y = jax.lax.conv_general_dilated(y, params["w2"], (2, 2), ((1, 1), (1, 1)),
                                     dimension_numbers=dn)
    y = jax.nn.relu(y + params["b2"][None, :, None, None])
    h = jax.nn.relu(y.reshape(x.shape[0], -1) @ params["wfc"] + params["bfc"])
    policy = jax.nn.softmax(h @ params["wp"] + params["bp"], axis=-1)
    value = h @ params["wv"] + params["bv"]
    return policy, value


if __name__ == "__main__":
    in_channels, num_actions = 4, 6
    B, H, W = 4, 16, 16          # B=4 -> TB=2 images per step, 2 parallel steps

    key = jax.random.PRNGKey(0)
    xkey, pkey = jax.random.split(key)
    x = jax.random.normal(xkey, (B, in_channels, H, W), jnp.float32)
    params = init_params(in_channels, num_actions, H, pkey)

    policy, value = jax.jit(ppo_agent_forward)(params, x)
    policy = jax.block_until_ready(policy)
    value = jax.block_until_ready(value)

    assert policy.shape == (B, num_actions)
    assert value.shape == (B, 1)
    assert bool(jnp.all(jnp.isfinite(policy))) and bool(jnp.all(jnp.isfinite(value)))
    row_sums = jnp.sum(policy, axis=-1)
    assert bool(jnp.all(jnp.abs(row_sums - 1.0) < 1e-3))   # exact softmax now

    # Cross-check against the f32 XLA reference (conv/FC use bf16 MXU operands,
    # hence the loose tolerance; heads/softmax are f32).
    ref_policy, ref_value = jax.jit(_reference_forward)(params, x)
    assert bool(jnp.all(jnp.abs(policy - ref_policy) < 5e-2))
    assert bool(jnp.all(jnp.abs(value - ref_value) < 5e-2))

    print("KERNEL_OK")
</pallas_src>

<mosaic_0001>
module attributes {stable_mosaic.version = 11 : i64} {
  func.func @_ppo_fused_kernel(%arg0: i32, %arg1: memref<2x2x128x36xbf16, #tpu.memory_space<vmem>>, %arg2: memref<36x16xbf16, #tpu.memory_space<vmem>>, %arg3: memref<1x16xf32, #tpu.memory_space<vmem>>, %arg4: memref<144x32xbf16, #tpu.memory_space<vmem>>, %arg5: memref<1x32xf32, #tpu.memory_space<vmem>>, %arg6: memref<2048x64xbf16, #tpu.memory_space<vmem>>, %arg7: memref<1x64xf32, #tpu.memory_space<vmem>>, %arg8: memref<64x128xf32, #tpu.memory_space<vmem>>, %arg9: memref<1x128xf32, #tpu.memory_space<vmem>>, %arg10: memref<2x1x128xf32, #tpu.memory_space<vmem>>) attributes {dimension_semantics = [#tpu.dimension_semantics<parallel>], iteration_bounds = array<i64: 2>, scalar_prefetch = 0 : i64, scratch_operands = 0 : i64, tpu.core_type = #tpu.core_type<tc>, window_params = [{transform_indices = @transform_0, window_bounds = array<i64: 2, 2, 128, 36>}, {pipeline_mode = #tpu.pipeline_mode<synchronous>, transform_indices = @transform_1, window_bounds = array<i64: 36, 16>}, {pipeline_mode = #tpu.pipeline_mode<synchronous>, transform_indices = @transform_2, window_bounds = array<i64: 1, 16>}, {pipeline_mode = #tpu.pipeline_mode<synchronous>, transform_indices = @transform_3, window_bounds = array<i64: 144, 32>}, {pipeline_mode = #tpu.pipeline_mode<synchronous>, transform_indices = @transform_4, window_bounds = array<i64: 1, 32>}, {pipeline_mode = #tpu.pipeline_mode<synchronous>, transform_indices = @transform_5, window_bounds = array<i64: 2048, 64>}, {pipeline_mode = #tpu.pipeline_mode<synchronous>, transform_indices = @transform_6, window_bounds = array<i64: 1, 64>}, {pipeline_mode = #tpu.pipeline_mode<synchronous>, transform_indices = @transform_7, window_bounds = array<i64: 64, 128>}, {pipeline_mode = #tpu.pipeline_mode<synchronous>, transform_indices = @transform_8, window_bounds = array<i64: 1, 128>}, {transform_indices = @transform_9, window_bounds = array<i64: 2, 1, 128>}]} {
    %c0 = arith.constant 0 : index
    %c0_0 = arith.constant 0 : index
    %c0_1 = arith.constant 0 : index
    %c0_2 = arith.constant 0 : index
    %0 = vector.load %arg1[%c0, %c0_0, %c0_1, %c0_2] : memref<2x2x128x36xbf16, #tpu.memory_space<vmem>>, vector<2x2x128x36xbf16>
    %1 = vector.shape_cast %0 : vector<2x2x128x36xbf16> to vector<512x36xbf16>
    %c0_3 = arith.constant 0 : index
    %c0_4 = arith.constant 0 : index
    %2 = vector.load %arg2[%c0_3, %c0_4] : memref<36x16xbf16, #tpu.memory_space<vmem>>, vector<36x16xbf16>
    %cst = arith.constant dense<0.000000e+00> : vector<512x16xf32>
    %3 = tpu.matmul %1, %2, %cst {dimension_numbers = #tpu.dot_dimension_numbers<[1], [0], [0], [1], [0, 0, 1, 1], [], []>} : vector<512x36xbf16>, vector<36x16xbf16>, vector<512x16xf32> -> vector<512x16xf32>
    %c0_5 = arith.constant 0 : index
    %c0_6 = arith.constant 0 : index
    %4 = vector.load %arg3[%c0_5, %c0_6] : memref<1x16xf32, #tpu.memory_space<vmem>>, vector<1x16xf32>
    %5 = vector.broadcast %4 : vector<1x16xf32> to vector<512x16xf32>
    %6 = arith.addf %3, %5 : vector<512x16xf32>
    %cst_7 = arith.constant 0.000000e+00 : f32
    %7 = vector.broadcast %cst_7 : f32 to vector<512x16xf32>
    %8 = arith.maximumf %6, %7 : vector<512x16xf32>
    %9 = vector.shape_cast %8 : vector<512x16xf32> to vector<2x256x16xf32>
    %10 = vector.extract_strided_slice %9 {offsets = [0, 0, 0], sizes = [1, 256, 16], strides = [1, 1, 1]} : vector<2x256x16xf32> to vector<1x256x16xf32>
    %11 = vector.shape_cast %10 : vector<1x256x16xf32> to vector<256x16xf32>
    %12 = vector.extract_strided_slice %9 {offsets = [1, 0, 0], sizes = [1, 256, 16], strides = [1, 1, 1]} : vector<2x256x16xf32> to vector<1x256x16xf32>
    %13 = vector.shape_cast %12 : vector<1x256x16xf32> to vector<256x16xf32>
    %cst_8 = arith.constant 0.000000e+00 : f32
    %14 = vector.broadcast %cst_8 : f32 to vector<1x16xf32>
    %15 = vector.extract_strided_slice %13 {offsets = [0, 0], sizes = [255, 16], strides = [1, 1]} : vector<256x16xf32> to vector<255x16xf32>
    %16 = tpu.concatenate %14, %15 in 0 : vector<1x16xf32>, vector<255x16xf32> -> vector<256x16xf32>
    %17 = tpu.iota {dimensions = array<i32: 0>} : vector<256x16xi32>
    %c8_i32 = arith.constant 8 : i32
    %c0_i32 = arith.constant 0 : i32
    %18 = arith.cmpi eq, %c8_i32, %c0_i32 : i32
    %c1_i32 = arith.constant 1 : i32
    %19 = arith.select %18, %c1_i32, %c8_i32 : i32
    %20 = vector.broadcast %19 : i32 to vector<256x16xi32>
    %21 = arith.remsi %17, %20 : vector<256x16xi32>
    %c0_i32_9 = arith.constant 0 : i32
    %22 = vector.broadcast %c0_i32_9 : i32 to vector<256x16xi32>
    %23 = arith.cmpi ne, %21, %22 : vector<256x16xi32>
    %c0_i32_10 = arith.constant 0 : i32
    %24 = vector.broadcast %c0_i32_10 : i32 to vector<256x16xi32>
    %25 = arith.cmpi slt, %21, %24 : vector<256x16xi32>
    %c0_i32_11 = arith.constant 0 : i32
    %26 = arith.cmpi slt, %19, %c0_i32_11 : i32
    %27 = vector.broadcast %26 : i1 to vector<256x16xi1>
    %28 = vector.broadcast %27 : vector<256x16xi1> to vector<256x16xi1>
    %29 = arith.xori %25, %28 : vector<256x16xi1>
    %30 = arith.andi %29, %23 : vector<256x16xi1>
    %31 = vector.broadcast %19 : i32 to vector<256x16xi32>
    %32 = arith.addi %21, %31 : vector<256x16xi32>
    %33 = arith.select %30, %32, %21 : vector<256x16xi1>, vector<256x16xi32>
    %c0_i32_12 = arith.constant 0 : i32
    %34 = vector.broadcast %c0_i32_12 : i32 to vector<256x16xi32>
    %35 = arith.cmpi eq, %33, %34 : vector<256x16xi32>
    %cst_13 = arith.constant 0.000000e+00 : f32
    %36 = vector.broadcast %cst_13 : f32 to vector<256x16xf32>
    %37 = arith.select %35, %36, %16 : vector<256x16xi1>, vector<256x16xf32>
    %38 = vector.shape_cast %37 : vector<256x16xf32> to vector<16x16x16xf32>
    %39 = vector.extract_strided_slice %38 {offsets = [0, 0, 0], sizes = [16, 8, 16], strides = [1, 1, 1]} : vector<16x16x16xf32> to vector<16x8x16xf32>
    %40 = vector.shape_cast %39 : vector<16x8x16xf32> to vector<128x16xf32>
    %41 = vector.extract_strided_slice %38 {offsets = [0, 8, 0], sizes = [16, 8, 16], strides = [1, 1, 1]} : vector<16x16x16xf32> to vector<16x8x16xf32>
    %42 = vector.shape_cast %41 : vector<16x8x16xf32> to vector<128x16xf32>
    %cst_14 = arith.constant 0.000000e+00 : f32
    %43 = vector.broadcast %cst_14 : f32 to vector<8x16xf32>
    %44 = vector.extract_strided_slice %42 {offsets = [0, 0], sizes = [120, 16], strides = [1, 1]} : vector<128x16xf32> to vector<120x16xf32>
    %45 = tpu.concatenate %43, %44 in 0 : vector<8x16xf32>, vector<120x16xf32> -> vector<128x16xf32>
    %46 = tpu.iota {dimensions = array<i32: 0>} : vector<128x16xi32>
    %c64_i32 = arith.constant 64 : i32
    %c0_i32_15 = arith.constant 0 : i32
    %47 = arith.cmpi eq, %c64_i32, %c0_i32_15 : i32
    %c1_i32_16 = arith.constant 1 : i32
    %48 = arith.select %47, %c1_i32_16, %c64_i32 : i32
    %49 = vector.broadcast %48 : i32 to vector<128x16xi32>
    %50 = arith.remsi %46, %49 : vector<128x16xi32>
    %c0_i32_17 = arith.constant 0 : i32
    %51 = vector.broadcast %c0_i32_17 : i32 to vector<128x16xi32>
    %52 = arith.cmpi ne, %50, %51 : vector<128x16xi32>
    %c0_i32_18 = arith.constant 0 : i32
    %53 = vector.broadcast %c0_i32_18 : i32 to vector<128x16xi32>
    %54 = arith.cmpi slt, %50, %53 : vector<128x16xi32>
    %c0_i32_19 = arith.constant 0 : i32
    %55 = arith.cmpi slt, %48, %c0_i32_19 : i32
    %56 = vector.broadcast %55 : i1 to vector<128x16xi1>
    %57 = vector.broadcast %56 : vector<128x16xi1> to vector<128x16xi1>
    %58 = arith.xori %54, %57 : vector<128x16xi1>
    %59 = arith.andi %58, %52 : vector<128x16xi1>
    %60 = vector.broadcast %48 : i32 to vector<128x16xi32>
    %61 = arith.addi %50, %60 : vector<128x16xi32>
    %62 = arith.select %59, %61, %50 : vector<128x16xi1>, vector<128x16xi32>
    %c8_i32_20 = arith.constant 8 : i32
    %63 = vector.broadcast %c8_i32_20 : i32 to vector<128x16xi32>
    %64 = arith.cmpi slt, %62, %63 : vector<128x16xi32>
    %cst_21 = arith.constant 0.000000e+00 : f32
    %65 = vector.broadcast %cst_21 : f32 to vector<128x16xf32>
    %66 = arith.select %64, %65, %45 : vector<128x16xi1>, vector<128x16xf32>
    %67 = vector.shape_cast %11 : vector<256x16xf32> to vector<16x16x16xf32>
    %68 = vector.extract_strided_slice %67 {offsets = [0, 0, 0], sizes = [16, 8, 16], strides = [1, 1, 1]} : vector<16x16x16xf32> to vector<16x8x16xf32>
    %69 = vector.shape_cast %68 : vector<16x8x16xf32> to vector<128x16xf32>
    %70 = vector.extract_strided_slice %67 {offsets = [0, 8, 0], sizes = [16, 8, 16], strides = [1, 1, 1]} : vector<16x16x16xf32> to vector<16x8x16xf32>
    %71 = vector.shape_cast %70 : vector<16x8x16xf32> to vector<128x16xf32>
    %cst_22 = arith.constant 0.000000e+00 : f32
    %72 = vector.broadcast %cst_22 : f32 to vector<8x16xf32>
    %73 = vector.extract_strided_slice %71 {offsets = [0, 0], sizes = [120, 16], strides = [1, 1]} : vector<128x16xf32> to vector<120x16xf32>
    %74 = tpu.concatenate %72, %73 in 0 : vector<8x16xf32>, vector<120x16xf32> -> vector<128x16xf32>
    %75 = tpu.iota {dimensions = array<i32: 0>} : vector<128x16xi32>
    %c64_i32_23 = arith.constant 64 : i32
    %c0_i32_24 = arith.constant 0 : i32
    %76 = arith.cmpi eq, %c64_i32_23, %c0_i32_24 : i32
    %c1_i32_25 = arith.constant 1 : i32
    %77 = arith.select %76, %c1_i32_25, %c64_i32_23 : i32
    %78 = vector.broadcast %77 : i32 to vector<128x16xi32>
    %79 = arith.remsi %75, %78 : vector<128x16xi32>
    %c0_i32_26 = arith.constant 0 : i32
    %80 = vector.broadcast %c0_i32_26 : i32 to vector<128x16xi32>
    %81 = arith.cmpi ne, %79, %80 : vector<128x16xi32>
    %c0_i32_27 = arith.constant 0 : i32
    %82 = vector.broadcast %c0_i32_27 : i32 to vector<128x16xi32>
    %83 = arith.cmpi slt, %79, %82 : vector<128x16xi32>
    %c0_i32_28 = arith.constant 0 : i32
    %84 = arith.cmpi slt, %77, %c0_i32_28 : i32
    %85 = vector.broadcast %84 : i1 to vector<128x16xi1>
    %86 = vector.broadcast %85 : vector<128x16xi1> to vector<128x16xi1>
    %87 = arith.xori %83, %86 : vector<128x16xi1>
    %88 = arith.andi %87, %81 : vector<128x16xi1>
    %89 = vector.broadcast %77 : i32 to vector<128x16xi32>
    %90 = arith.addi %79, %89 : vector<128x16xi32>
    %91 = arith.select %88, %90, %79 : vector<128x16xi1>, vector<128x16xi32>
    %c8_i32_29 = arith.constant 8 : i32
    %92 = vector.broadcast %c8_i32_29 : i32 to vector<128x16xi32>
    %93 = arith.cmpi slt, %91, %92 : vector<128x16xi32>
    %cst_30 = arith.constant 0.000000e+00 : f32
    %94 = vector.broadcast %cst_30 : f32 to vector<128x16xf32>
    %95 = arith.select %93, %94, %74 : vector<128x16xi1>, vector<128x16xf32>
    %96 = vector.shape_cast %13 : vector<256x16xf32> to vector<16x16x16xf32>
    %97 = vector.extract_strided_slice %96 {offsets = [0, 0, 0], sizes = [16, 8, 16], strides = [1, 1, 1]} : vector<16x16x16xf32> to vector<16x8x16xf32>
    %98 = vector.shape_cast %97 : vector<16x8x16xf32> to vector<128x16xf32>
    %99 = vector.extract_strided_slice %96 {offsets = [0, 8, 0], sizes = [16, 8, 16], strides = [1, 1, 1]} : vector<16x16x16xf32> to vector<16x8x16xf32>
    %100 = vector.shape_cast %99 : vector<16x8x16xf32> to vector<128x16xf32>
    %cst_31 = arith.constant 0.000000e+00 : f32
    %101 = vector.broadcast %cst_31 : f32 to vector<8x16xf32>
    %102 = vector.extract_strided_slice %100 {offsets = [0, 0], sizes = [120, 16], strides = [1, 1]} : vector<128x16xf32> to vector<120x16xf32>
    %103 = tpu.concatenate %101, %102 in 0 : vector<8x16xf32>, vector<120x16xf32> -> vector<128x16xf32>
    %104 = tpu.iota {dimensions = array<i32: 0>} : vector<128x16xi32>
    %c64_i32_32 = arith.constant 64 : i32
    %c0_i32_33 = arith.constant 0 : i32
    %105 = arith.cmpi eq, %c64_i32_32, %c0_i32_33 : i32
    %c1_i32_34 = arith.constant 1 : i32
    %106 = arith.select %105, %c1_i32_34, %c64_i32_32 : i32
    %107 = vector.broadcast %106 : i32 to vector<128x16xi32>
    %108 = arith.remsi %104, %107 : vector<128x16xi32>
    %c0_i32_35 = arith.constant 0 : i32
    %109 = vector.broadcast %c0_i32_35 : i32 to vector<128x16xi32>
    %110 = arith.cmpi ne, %108, %109 : vector<128x16xi32>
    %c0_i32_36 = arith.constant 0 : i32
    %111 = vector.broadcast %c0_i32_36 : i32 to vector<128x16xi32>
    %112 = arith.cmpi slt, %108, %111 : vector<128x16xi32>
    %c0_i32_37 = arith.constant 0 : i32
    %113 = arith.cmpi slt, %106, %c0_i32_37 : i32
    %114 = vector.broadcast %113 : i1 to vector<128x16xi1>
    %115 = vector.broadcast %114 : vector<128x16xi1> to vector<128x16xi1>
    %116 = arith.xori %112, %115 : vector<128x16xi1>
    %117 = arith.andi %116, %110 : vector<128x16xi1>
    %118 = vector.broadcast %106 : i32 to vector<128x16xi32>
    %119 = arith.addi %108, %118 : vector<128x16xi32>
    %120 = arith.select %117, %119, %108 : vector<128x16xi1>, vector<128x16xi32>
    %c8_i32_38 = arith.constant 8 : i32
    %121 = vector.broadcast %c8_i32_38 : i32 to vector<128x16xi32>
    %122 = arith.cmpi slt, %120, %121 : vector<128x16xi32>
    %cst_39 = arith.constant 0.000000e+00 : f32
    %123 = vector.broadcast %cst_39 : f32 to vector<128x16xf32>
    %124 = arith.select %122, %123, %103 : vector<128x16xi1>, vector<128x16xf32>
    %125 = tpu.concatenate %66, %95, %124, %40, %69, %98, %42, %71, %100 in 1 : vector<128x16xf32>, vector<128x16xf32>, vector<128x16xf32>, vector<128x16xf32>, vector<128x16xf32>, vector<128x16xf32>, vector<128x16xf32>, vector<128x16xf32>, vector<128x16xf32> -> vector<128x144xf32>
    %126 = arith.truncf %125 : vector<128x144xf32> to vector<128x144xbf16>
    %c0_40 = arith.constant 0 : index
    %c0_41 = arith.constant 0 : index
    %127 = vector.load %arg4[%c0_40, %c0_41] : memref<144x32xbf16, #tpu.memory_space<vmem>>, vector<144x32xbf16>
    %cst_42 = arith.constant dense<0.000000e+00> : vector<128x32xf32>
    %128 = tpu.matmul %126, %127, %cst_42 {dimension_numbers = #tpu.dot_dimension_numbers<[1], [0], [0], [1], [0, 0, 1, 1], [], []>} : vector<128x144xbf16>, vector<144x32xbf16>, vector<128x32xf32> -> vector<128x32xf32>
    %c0_43 = arith.constant 0 : index
    %c0_44 = arith.constant 0 : index
    %129 = vector.load %arg5[%c0_43, %c0_44] : memref<1x32xf32, #tpu.memory_space<vmem>>, vector<1x32xf32>
    %130 = vector.broadcast %129 : vector<1x32xf32> to vector<128x32xf32>
    %131 = arith.addf %128, %130 : vector<128x32xf32>
    %cst_45 = arith.constant 0.000000e+00 : f32
    %132 = vector.broadcast %cst_45 : f32 to vector<128x32xf32>
    %133 = arith.maximumf %131, %132 : vector<128x32xf32>
    %134 = vector.shape_cast %133 : vector<128x32xf32> to vector<2x64x32xf32>
    %135 = vector.extract_strided_slice %134 {offsets = [0, 0, 0], sizes = [2, 1, 32], strides = [1, 1, 1]} : vector<2x64x32xf32> to vector<2x1x32xf32>
    %136 = vector.shape_cast %135 : vector<2x1x32xf32> to vector<2x32xf32>
    %137 = vector.extract_strided_slice %134 {offsets = [0, 1, 0], sizes = [2, 1, 32], strides = [1, 1, 1]} : vector<2x64x32xf32> to vector<2x1x32xf32>
    %138 = vector.shape_cast %137 : vector<2x1x32xf32> to vector<2x32xf32>
    %139 = vector.extract_strided_slice %134 {offsets = [0, 2, 0], sizes = [2, 1, 32], strides = [1, 1, 1]} : vector<2x64x32xf32> to vector<2x1x32xf32>
    %140 = vector.shape_cast %139 : vector<2x1x32xf32> to vector<2x32xf32>
    %141 = vector.extract_strided_slice %134 {offsets = [0, 3, 0], sizes = [2, 1, 32], strides = [1, 1, 1]} : vector<2x64x32xf32> to vector<2x1x32xf32>
    %142 = vector.shape_cast %141 : vector<2x1x32xf32> to vector<2x32xf32>
    %143 = vector.extract_strided_slice %134 {offsets = [0, 4, 0], sizes = [2, 1, 32], strides = [1, 1, 1]} : vector<2x64x32xf32> to vector<2x1x32xf32>
    %144 = vector.shape_cast %143 : vector<2x1x32xf32> to vector<2x32xf32>
    %145 = vector.extract_strided_slice %134 {offsets = [0, 5, 0], sizes = [2, 1, 32], strides = [1, 1, 1]} : vector<2x64x32xf32> to vector<2x1x32xf32>
    %146 = vector.shape_cast %145 : vector<2x1x32xf32> to vector<2x32xf32>
    %147 = vector.extract_strided_slice %134 {offsets = [0, 6, 0], sizes = [2, 1, 32], strides = [1, 1, 1]} : vector<2x64x32xf32> to vector<2x1x32xf32>
    %148 = vector.shape_cast %147 : vector<2x1x32xf32> to vector<2x32xf32>
    %149 = vector.extract_strided_slice %134 {offsets = [0, 7, 0], sizes = [2, 1, 32], strides = [1, 1, 1]} : vector<2x64x32xf32> to vector<2x1x32xf32>
    %150 = vector.shape_cast %149 : vector<2x1x32xf32> to vector<2x32xf32>
    %151 = vector.extract_strided_slice %134 {offsets = [0, 8, 0], sizes = [2, 1, 32], strides = [1, 1, 1]} : vector<2x64x32xf32> to vector<2x1x32xf32>
    %152 = vector.shape_cast %151 : vector<2x1x32xf32> to vector<2x32xf32>
    %153 = vector.extract_strided_slice %134 {offsets = [0, 9, 0], sizes = [2, 1, 32], strides = [1, 1, 1]} : vector<2x64x32xf32> to vector<2x1x32xf32>
    %154 = vector.shape_cast %153 : vector<2x1x32xf32> to vector<2x32xf32>
    %155 = vector.extract_strided_slice %134 {offsets = [0, 10, 0], sizes = [2, 1, 32], strides = [1, 1, 1]} : vector<2x64x32xf32> to vector<2x1x32xf32>
    %156 = vector.shape_cast %155 : vector<2x1x32xf32> to vector<2x32xf32>
    %157 = vector.extract_strided_slice %134 {offsets = [0, 11, 0], sizes = [2, 1, 32], strides = [1, 1, 1]} : vector<2x64x32xf32> to vector<2x1x32xf32>
    %158 = vector.shape_cast %157 : vector<2x1x32xf32> to vector<2x32xf32>
    %159 = vector.extract_strided_slice %134 {offsets = [0, 12, 0], sizes = [2, 1, 32], strides = [1, 1, 1]} : vector<2x64x32xf32> to vector<2x1x32xf32>
    %160 = vector.shape_cast %159 : vector<2x1x32xf32> to vector<2x32xf32>
    %161 = vector.extract_strided_slice %134 {offsets = [0, 13, 0], sizes = [2, 1, 32], strides = [1, 1, 1]} : vector<2x64x32xf32> to vector<2x1x32xf32>
    %162 = vector.shape_cast %161 : vector<2x1x32xf32> to vector<2x32xf32>
    %163 = vector.extract_strided_slice %134 {offsets = [0, 14, 0], sizes = [2, 1, 32], strides = [1, 1, 1]} : vector<2x64x32xf32> to vector<2x1x32xf32>
    %164 = vector.shape_cast %163 : vector<2x1x32xf32> to vector<2x32xf32>
    %165 = vector.extract_strided_slice %134 {offsets = [0, 15, 0], sizes = [2, 1, 32], strides = [1, 1, 1]} : vector<2x64x32xf32> to vector<2x1x32xf32>
    %166 = vector.shape_cast %165 : vector<2x1x32xf32> to vector<2x32xf32>
    %167 = vector.extract_strided_slice %134 {offsets = [0, 16, 0], sizes = [2, 1, 32], strides = [1, 1, 1]} : vector<2x64x32xf32> to vector<2x1x32xf32>
    %168 = vector.shape_cast %167 : vector<2x1x32xf32> to vector<2x32xf32>
    %169 = vector.extract_strided_slice %134 {offsets = [0, 17, 0], sizes = [2, 1, 32], strides = [1, 1, 1]} : vector<2x64x32xf32> to vector<2x1x32xf32>
    %170 = vector.shape_cast %169 : vector<2x1x32xf32> to vector<2x32xf32>
    %171 = vector.extract_strided_slice %134 {offsets = [0, 18, 0], sizes = [2, 1, 32], strides = [1, 1, 1]} : vector<2x64x32xf32> to vector<2x1x32xf32>
    %172 = vector.shape_cast %171 : vector<2x1x32xf32> to vector<2x32xf32>
    %173 = vector.extract_strided_slice %134 {offsets = [0, 19, 0], sizes = [2, 1, 32], strides = [1, 1, 1]} : vector<2x64x32xf32> to vector<2x1x32xf32>
    %174 = vector.shape_cast %173 : vector<2x1x32xf32> to vector<2x32xf32>
    %175 = vector.extract_strided_slice %134 {offsets = [0, 20, 0], sizes = [2, 1, 32], strides = [1, 1, 1]} : vector<2x64x32xf32> to vector<2x1x32xf32>
    %176 = vector.shape_cast %175 : vector<2x1x32xf32> to vector<2x32xf32>
    %177 = vector.extract_strided_slice %134 {offsets = [0, 21, 0], sizes = [2, 1, 32], strides = [1, 1, 1]} : vector<2x64x32xf32> to vector<2x1x32xf32>
    %178 = vector.shape_cast %177 : vector<2x1x32xf32> to vector<2x32xf32>
    %179 = vector.extract_strided_slice %134 {offsets = [0, 22, 0], sizes = [2, 1, 32], strides = [1, 1, 1]} : vector<2x64x32xf32> to vector<2x1x32xf32>
    %180 = vector.shape_cast %179 : vector<2x1x32xf32> to vector<2x32xf32>
    %181 = vector.extract_strided_slice %134 {offsets = [0, 23, 0], sizes = [2, 1, 32], strides = [1, 1, 1]} : vector<2x64x32xf32> to vector<2x1x32xf32>
    %182 = vector.shape_cast %181 : vector<2x1x32xf32> to vector<2x32xf32>
    %183 = vector.extract_strided_slice %134 {offsets = [0, 24, 0], sizes = [2, 1, 32], strides = [1, 1, 1]} : vector<2x64x32xf32> to vector<2x1x32xf32>
    %184 = vector.shape_cast %183 : vector<2x1x32xf32> to vector<2x32xf32>
    %185 = vector.extract_strided_slice %134 {offsets = [0, 25, 0], sizes = [2, 1, 32], strides = [1, 1, 1]} : vector<2x64x32xf32> to vector<2x1x32xf32>
    %186 = vector.shape_cast %185 : vector<2x1x32xf32> to vector<2x32xf32>
    %187 = vector.extract_strided_slice %134 {offsets = [0, 26, 0], sizes = [2, 1, 32], strides = [1, 1, 1]} : vector<2x64x32xf32> to vector<2x1x32xf32>
    %188 = vector.shape_cast %187 : vector<2x1x32xf32> to vector<2x32xf32>
    %189 = vector.extract_strided_slice %134 {offsets = [0, 27, 0], sizes = [2, 1, 32], strides = [1, 1, 1]} : vector<2x64x32xf32> to vector<2x1x32xf32>
    %190 = vector.shape_cast %189 : vector<2x1x32xf32> to vector<2x32xf32>
    %191 = vector.extract_strided_slice %134 {offsets = [0, 28, 0], sizes = [2, 1, 32], strides = [1, 1, 1]} : vector<2x64x32xf32> to vector<2x1x32xf32>
    %192 = vector.shape_cast %191 : vector<2x1x32xf32> to vector<2x32xf32>
    %193 = vector.extract_strided_slice %134 {offsets = [0, 29, 0], sizes = [2, 1, 32], strides = [1, 1, 1]} : vector<2x64x32xf32> to vector<2x1x32xf32>
    %194 = vector.shape_cast %193 : vector<2x1x32xf32> to vector<2x32xf32>
    %195 = vector.extract_strided_slice %134 {offsets = [0, 30, 0], sizes = [2, 1, 32], strides = [1, 1, 1]} : vector<2x64x32xf32> to vector<2x1x32xf32>
    %196 = vector.shape_cast %195 : vector<2x1x32xf32> to vector<2x32xf32>
    %197 = vector.extract_strided_slice %134 {offsets = [0, 31, 0], sizes = [2, 1, 32], strides = [1, 1, 1]} : vector<2x64x32xf32> to vector<2x1x32xf32>
    %198 = vector.shape_cast %197 : vector<2x1x32xf32> to vector<2x32xf32>
    %199 = vector.extract_strided_slice %134 {offsets = [0, 32, 0], sizes = [2, 1, 32], strides = [1, 1, 1]} : vector<2x64x32xf32> to vector<2x1x32xf32>
    %200 = vector.shape_cast %199 : vector<2x1x32xf32> to vector<2x32xf32>
    %201 = vector.extract_strided_slice %134 {offsets = [0, 33, 0], sizes = [2, 1, 32], strides = [1, 1, 1]} : vector<2x64x32xf32> to vector<2x1x32xf32>
    %202 = vector.shape_cast %201 : vector<2x1x32xf32> to vector<2x32xf32>
    %203 = vector.extract_strided_slice %134 {offsets = [0, 34, 0], sizes = [2, 1, 32], strides = [1, 1, 1]} : vector<2x64x32xf32> to vector<2x1x32xf32>
    %204 = vector.shape_cast %203 : vector<2x1x32xf32> to vector<2x32xf32>
    %205 = vector.extract_strided_slice %134 {offsets = [0, 35, 0], sizes = [2, 1, 32], strides = [1, 1, 1]} : vector<2x64x32xf32> to vector<2x1x32xf32>
    %206 = vector.shape_cast %205 : vector<2x1x32xf32> to vector<2x32xf32>
    %207 = vector.extract_strided_slice %134 {offsets = [0, 36, 0], sizes = [2, 1, 32], strides = [1, 1, 1]} : vector<2x64x32xf32> to vector<2x1x32xf32>
    %208 = vector.shape_cast %207 : vector<2x1x32xf32> to vector<2x32xf32>
    %209 = vector.extract_strided_slice %134 {offsets = [0, 37, 0], sizes = [2, 1, 32], strides = [1, 1, 1]} : vector<2x64x32xf32> to vector<2x1x32xf32>
    %210 = vector.shape_cast %209 : vector<2x1x32xf32> to vector<2x32xf32>
    %211 = vector.extract_strided_slice %134 {offsets = [0, 38, 0], sizes = [2, 1, 32], strides = [1, 1, 1]} : vector<2x64x32xf32> to vector<2x1x32xf32>
    %212 = vector.shape_cast %211 : vector<2x1x32xf32> to vector<2x32xf32>
    %213 = vector.extract_strided_slice %134 {offsets = [0, 39, 0], sizes = [2, 1, 32], strides = [1, 1, 1]} : vector<2x64x32xf32> to vector<2x1x32xf32>
    %214 = vector.shape_cast %213 : vector<2x1x32xf32> to vector<2x32xf32>
    %215 = vector.extract_strided_slice %134 {offsets = [0, 40, 0], sizes = [2, 1, 32], strides = [1, 1, 1]} : vector<2x64x32xf32> to vector<2x1x32xf32>
    %216 = vector.shape_cast %215 : vector<2x1x32xf32> to vector<2x32xf32>
    %217 = vector.extract_strided_slice %134 {offsets = [0, 41, 0], sizes = [2, 1, 32], strides = [1, 1, 1]} : vector<2x64x32xf32> to vector<2x1x32xf32>
    %218 = vector.shape_cast %217 : vector<2x1x32xf32> to vector<2x32xf32>
    %219 = vector.extract_strided_slice %134 {offsets = [0, 42, 0], sizes = [2, 1, 32], strides = [1, 1, 1]} : vector<2x64x32xf32> to vector<2x1x32xf32>
    %220 = vector.shape_cast %219 : vector<2x1x32xf32> to vector<2x32xf32>
    %221 = vector.extract_strided_slice %134 {offsets = [0, 43, 0], sizes = [2, 1, 32], strides = [1, 1, 1]} : vector<2x64x32xf32> to vector<2x1x32xf32>
    %222 = vector.shape_cast %221 : vector<2x1x32xf32> to vector<2x32xf32>
    %223 = vector.extract_strided_slice %134 {offsets = [0, 44, 0], sizes = [2, 1, 32], strides = [1, 1, 1]} : vector<2x64x32xf32> to vector<2x1x32xf32>
    %224 = vector.shape_cast %223 : vector<2x1x32xf32> to vector<2x32xf32>
    %225 = vector.extract_strided_slice %134 {offsets = [0, 45, 0], sizes = [2, 1, 32], strides = [1, 1, 1]} : vector<2x64x32xf32> to vector<2x1x32xf32>
    %226 = vector.shape_cast %225 : vector<2x1x32xf32> to vector<2x32xf32>
    %227 = vector.extract_strided_slice %134 {offsets = [0, 46, 0], sizes = [2, 1, 32], strides = [1, 1, 1]} : vector<2x64x32xf32> to vector<2x1x32xf32>
    %228 = vector.shape_cast %227 : vector<2x1x32xf32> to vector<2x32xf32>
    %229 = vector.extract_strided_slice %134 {offsets = [0, 47, 0], sizes = [2, 1, 32], strides = [1, 1, 1]} : vector<2x64x32xf32> to vector<2x1x32xf32>
    %230 = vector.shape_cast %229 : vector<2x1x32xf32> to vector<2x32xf32>
    %231 = vector.extract_strided_slice %134 {offsets = [0, 48, 0], sizes = [2, 1, 32], strides = [1, 1, 1]} : vector<2x64x32xf32> to vector<2x1x32xf32>
    %232 = vector.shape_cast %231 : vector<2x1x32xf32> to vector<2x32xf32>
    %233 = vector.extract_strided_slice %134 {offsets = [0, 49, 0], sizes = [2, 1, 32], strides = [1, 1, 1]} : vector<2x64x32xf32> to vector<2x1x32xf32>
    %234 = vector.shape_cast %233 : vector<2x1x32xf32> to vector<2x32xf32>
    %235 = vector.extract_strided_slice %134 {offsets = [0, 50, 0], sizes = [2, 1, 32], strides = [1, 1, 1]} : vector<2x64x32xf32> to vector<2x1x32xf32>
    %236 = vector.shape_cast %235 : vector<2x1x32xf32> to vector<2x32xf32>
    %237 = vector.extract_strided_slice %134 {offsets = [0, 51, 0], sizes = [2, 1, 32], strides = [1, 1, 1]} : vector<2x64x32xf32> to vector<2x1x32xf32>
    %238 = vector.shape_cast %237 : vector<2x1x32xf32> to vector<2x32xf32>
    %239 = vector.extract_strided_slice %134 {offsets = [0, 52, 0], sizes = [2, 1, 32], strides = [1, 1, 1]} : vector<2x64x32xf32> to vector<2x1x32xf32>
    %240 = vector.shape_cast %239 : vector<2x1x32xf32> to vector<2x32xf32>
    %241 = vector.extract_strided_slice %134 {offsets = [0, 53, 0], sizes = [2, 1, 32], strides = [1, 1, 1]} : vector<2x64x32xf32> to vector<2x1x32xf32>
    %242 = vector.shape_cast %241 : vector<2x1x32xf32> to vector<2x32xf32>
    %243 = vector.extract_strided_slice %134 {offsets = [0, 54, 0], sizes = [2, 1, 32], strides = [1, 1, 1]} : vector<2x64x32xf32> to vector<2x1x32xf32>
    %244 = vector.shape_cast %243 : vector<2x1x32xf32> to vector<2x32xf32>
    %245 = vector.extract_strided_slice %134 {offsets = [0, 55, 0], sizes = [2, 1, 32], strides = [1, 1, 1]} : vector<2x64x32xf32> to vector<2x1x32xf32>
    %246 = vector.shape_cast %245 : vector<2x1x32xf32> to vector<2x32xf32>
    %247 = vector.extract_strided_slice %134 {offsets = [0, 56, 0], sizes = [2, 1, 32], strides = [1, 1, 1]} : vector<2x64x32xf32> to vector<2x1x32xf32>
    %248 = vector.shape_cast %247 : vector<2x1x32xf32> to vector<2x32xf32>
    %249 = vector.extract_strided_slice %134 {offsets = [0, 57, 0], sizes = [2, 1, 32], strides = [1, 1, 1]} : vector<2x64x32xf32> to vector<2x1x32xf32>
    %250 = vector.shape_cast %249 : vector<2x1x32xf32> to vector<2x32xf32>
    %251 = vector.extract_strided_slice %134 {offsets = [0, 58, 0], sizes = [2, 1, 32], strides = [1, 1, 1]} : vector<2x64x32xf32> to vector<2x1x32xf32>
    %252 = vector.shape_cast %251 : vector<2x1x32xf32> to vector<2x32xf32>
    %253 = vector.extract_strided_slice %134 {offsets = [0, 59, 0], sizes = [2, 1, 32], strides = [1, 1, 1]} : vector<2x64x32xf32> to vector<2x1x32xf32>
    %254 = vector.shape_cast %253 : vector<2x1x32xf32> to vector<2x32xf32>
    %255 = vector.extract_strided_slice %134 {offsets = [0, 60, 0], sizes = [2, 1, 32], strides = [1, 1, 1]} : vector<2x64x32xf32> to vector<2x1x32xf32>
    %256 = vector.shape_cast %255 : vector<2x1x32xf32> to vector<2x32xf32>
    %257 = vector.extract_strided_slice %134 {offsets = [0, 61, 0], sizes = [2, 1, 32], strides = [1, 1, 1]} : vector<2x64x32xf32> to vector<2x1x32xf32>
    %258 = vector.shape_cast %257 : vector<2x1x32xf32> to vector<2x32xf32>
    %259 = vector.extract_strided_slice %134 {offsets = [0, 62, 0], sizes = [2, 1, 32], strides = [1, 1, 1]} : vector<2x64x32xf32> to vector<2x1x32xf32>
    %260 = vector.shape_cast %259 : vector<2x1x32xf32> to vector<2x32xf32>
    %261 = vector.extract_strided_slice %134 {offsets = [0, 63, 0], sizes = [2, 1, 32], strides = [1, 1, 1]} : vector<2x64x32xf32> to vector<2x1x32xf32>
    %262 = vector.shape_cast %261 : vector<2x1x32xf32> to vector<2x32xf32>
    %263 = tpu.concatenate %136, %138, %140, %142, %144, %146, %148, %150, %152, %154, %156, %158, %160, %162, %164, %166 in 1 : vector<2x32xf32>, vector<2x32xf32>, vector<2x32xf32>, vector<2x32xf32>, vector<2x32xf32>, vector<2x32xf32>, vector<2x32xf32>, vector<2x32xf32>, vector<2x32xf32>, vector<2x32xf32>, vector<2x32xf32>, vector<2x32xf32>, vector<2x32xf32>, vector<2x32xf32>, vector<2x32xf32>, vector<2x32xf32> -> vector<2x512xf32>
    %264 = tpu.concatenate %168, %170, %172, %174, %176, %178, %180, %182, %184, %186, %188, %190, %192, %194, %196, %198 in 1 : vector<2x32xf32>, vector<2x32xf32>, vector<2x32xf32>, vector<2x32xf32>, vector<2x32xf32>, vector<2x32xf32>, vector<2x32xf32>, vector<2x32xf32>, vector<2x32xf32>, vector<2x32xf32>, vector<2x32xf32>, vector<2x32xf32>, vector<2x32xf32>, vector<2x32xf32>, vector<2x32xf32>, vector<2x32xf32> -> vector<2x512xf32>
    %265 = tpu.concatenate %200, %202, %204, %206, %208, %210, %212, %214, %216, %218, %220, %222, %224, %226, %228, %230 in 1 : vector<2x32xf32>, vector<2x32xf32>, vector<2x32xf32>, vector<2x32xf32>, vector<2x32xf32>, vector<2x32xf32>, vector<2x32xf32>, vector<2x32xf32>, vector<2x32xf32>, vector<2x32xf32>, vector<2x32xf32>, vector<2x32xf32>, vector<2x32xf32>, vector<2x32xf32>, vector<2x32xf32>, vector<2x32xf32> -> vector<2x512xf32>
    %266 = tpu.concatenate %232, %234, %236, %238, %240, %242, %244, %246, %248, %250, %252, %254, %256, %258, %260, %262 in 1 : vector<2x32xf32>, vector<2x32xf32>, vector<2x32xf32>, vector<2x32xf32>, vector<2x32xf32>, vector<2x32xf32>, vector<2x32xf32>, vector<2x32xf32>, vector<2x32xf32>, vector<2x32xf32>, vector<2x32xf32>, vector<2x32xf32>, vector<2x32xf32>, vector<2x32xf32>, vector<2x32xf32>, vector<2x32xf32> -> vector<2x512xf32>
    %267 = tpu.concatenate %263, %264, %265, %266 in 1 : vector<2x512xf32>, vector<2x512xf32>, vector<2x512xf32>, vector<2x512xf32> -> vector<2x2048xf32>
    %268 = arith.truncf %267 : vector<2x2048xf32> to vector<2x2048xbf16>
    %c0_46 = arith.constant 0 : index
    %c0_47 = arith.constant 0 : index
    %269 = vector.load %arg6[%c0_46, %c0_47] : memref<2048x64xbf16, #tpu.memory_space<vmem>>, vector<2048x64xbf16>
    %cst_48 = arith.constant dense<0.000000e+00> : vector<2x64xf32>
    %270 = tpu.matmul %268, %269, %cst_48 {dimension_numbers = #tpu.dot_dimension_numbers<[1], [0], [0], [1], [0, 0, 1, 1], [], []>} : vector<2x2048xbf16>, vector<2048x64xbf16>, vector<2x64xf32> -> vector<2x64xf32>
    %c0_49 = arith.constant 0 : index
    %c0_50 = arith.constant 0 : index
    %271 = vector.load %arg7[%c0_49, %c0_50] : memref<1x64xf32, #tpu.memory_space<vmem>>, vector<1x64xf32>
    %272 = vector.broadcast %271 : vector<1x64xf32> to vector<2x64xf32>
    %273 = arith.addf %270, %272 : vector<2x64xf32>
    %cst_51 = arith.constant 0.000000e+00 : f32
    %274 = vector.broadcast %cst_51 : f32 to vector<2x64xf32>
    %275 = arith.maximumf %273, %274 : vector<2x64xf32>
    %c0_52 = arith.constant 0 : index
    %c0_53 = arith.constant 0 : index
    %276 = vector.load %arg8[%c0_52, %c0_53] : memref<64x128xf32, #tpu.memory_space<vmem>>, vector<64x128xf32>
    %cst_54 = arith.constant dense<0.000000e+00> : vector<2x128xf32>
    %277 = tpu.matmul %275, %276, %cst_54 {dimension_numbers = #tpu.dot_dimension_numbers<[1], [0], [0], [1], [0, 0, 1, 1], [], []>} : vector<2x64xf32>, vector<64x128xf32>, vector<2x128xf32> -> vector<2x128xf32>
    %c0_55 = arith.constant 0 : index
    %c0_56 = arith.constant 0 : index
    %278 = vector.load %arg9[%c0_55, %c0_56] : memref<1x128xf32, #tpu.memory_space<vmem>>, vector<1x128xf32>
    %279 = vector.broadcast %278 : vector<1x128xf32> to vector<2x128xf32>
    %280 = arith.addf %277, %279 : vector<2x128xf32>
    %281 = vector.extract_strided_slice %280 {offsets = [0, 0], sizes = [2, 6], strides = [1, 1]} : vector<2x128xf32> to vector<2x6xf32>
    %cst_57 = arith.constant dense<0xFF800000> : vector<2xf32>
    %282 = vector.multi_reduction <maximumf>, %281, %cst_57 [1] : vector<2x6xf32> to vector<2xf32>
    %283 = vector.shape_cast %282 : vector<2xf32> to vector<2x1xf32>
    %284 = vector.broadcast %283 : vector<2x1xf32> to vector<2x6xf32>
    %285 = arith.subf %281, %284 : vector<2x6xf32>
    %286 = math.exp %285 : vector<2x6xf32>
    %cst_58 = arith.constant dense<0.000000e+00> : vector<2xf32>
    %287 = vector.multi_reduction <add>, %286, %cst_58 [1] : vector<2x6xf32> to vector<2xf32>
    %288 = vector.shape_cast %287 : vector<2xf32> to vector<2x1xf32>
    %289 = vector.broadcast %288 : vector<2x1xf32> to vector<2x6xf32>
    %290 = arith.divf %286, %289 : vector<2x6xf32>
    %291 = vector.extract_strided_slice %280 {offsets = [0, 6], sizes = [2, 122], strides = [1, 1]} : vector<2x128xf32> to vector<2x122xf32>
    %292 = tpu.concatenate %290, %291 in 1 : vector<2x6xf32>, vector<2x122xf32> -> vector<2x128xf32>
    %c0_59 = arith.constant 0 : index
    %c0_60 = arith.constant 0 : index
    %c0_61 = arith.constant 0 : index
    %293 = vector.load %arg10[%c0_59, %c0_60, %c0_61] : memref<2x1x128xf32, #tpu.memory_space<vmem>>, vector<2x1x128xf32>
    %294 = vector.shape_cast %293 : vector<2x1x128xf32> to vector<2x128xf32>
    %295 = vector.shape_cast %292 : vector<2x128xf32> to vector<2x1x128xf32>
    tpu.vector_store %arg10[%c0_59, %c0_60, %c0_61], %295 {strides = array<i32>} : memref<2x1x128xf32, #tpu.memory_space<vmem>>, vector<2x1x128xf32>,
    return
  }
  func.func @transform_0(%arg0: i32) -> (i32, i32, i32, i32) {
    %c0_i32 = arith.constant 0 : i32
    %c0_i32_0 = arith.constant 0 : i32
    %c0_i32_1 = arith.constant 0 : i32
    %c0_i32_2 = arith.constant 0 : i32
    return %c0_i32, %arg0, %c0_i32_0, %c0_i32_1 : i32, i32, i32, i32
  }
  func.func @transform_1(%arg0: i32) -> (i32, i32) {
    %c0_i32 = arith.constant 0 : i32
    %c0_i32_0 = arith.constant 0 : i32
    %c0_i32_1 = arith.constant 0 : i32
    return %c0_i32, %c0_i32_0 : i32, i32
  }
  func.func @transform_2(%arg0: i32) -> (i32, i32) {
    %c0_i32 = arith.constant 0 : i32
    %c0_i32_0 = arith.constant 0 : i32
    %c0_i32_1 = arith.constant 0 : i32
    return %c0_i32, %c0_i32_0 : i32, i32
  }
  func.func @transform_3(%arg0: i32) -> (i32, i32) {
    %c0_i32 = arith.constant 0 : i32
    %c0_i32_0 = arith.constant 0 : i32
    %c0_i32_1 = arith.constant 0 : i32
    return %c0_i32, %c0_i32_0 : i32, i32
  }
  func.func @transform_4(%arg0: i32) -> (i32, i32) {
    %c0_i32 = arith.constant 0 : i32
    %c0_i32_0 = arith.constant 0 : i32
    %c0_i32_1 = arith.constant 0 : i32
    return %c0_i32, %c0_i32_0 : i32, i32
  }
  func.func @transform_5(%arg0: i32) -> (i32, i32) {
    %c0_i32 = arith.constant 0 : i32
    %c0_i32_0 = arith.constant 0 : i32
    %c0_i32_1 = arith.constant 0 : i32
    return %c0_i32, %c0_i32_0 : i32, i32
  }
  func.func @transform_6(%arg0: i32) -> (i32, i32) {
    %c0_i32 = arith.constant 0 : i32
    %c0_i32_0 = arith.constant 0 : i32
    %c0_i32_1 = arith.constant 0 : i32
    return %c0_i32, %c0_i32_0 : i32, i32
  }
  func.func @transform_7(%arg0: i32) -> (i32, i32) {
    %c0_i32 = arith.constant 0 : i32
    %c0_i32_0 = arith.constant 0 : i32
    %c0_i32_1 = arith.constant 0 : i32
    return %c0_i32, %c0_i32_0 : i32, i32
  }
  func.func @transform_8(%arg0: i32) -> (i32, i32) {
    %c0_i32 = arith.constant 0 : i32
    %c0_i32_0 = arith.constant 0 : i32
    %c0_i32_1 = arith.constant 0 : i32
    return %c0_i32, %c0_i32_0 : i32, i32
  }
  func.func @transform_9(%arg0: i32) -> (i32, i32, i32) {
    %c0_i32 = arith.constant 0 : i32
    %c0_i32_0 = arith.constant 0 : i32
    %c0_i32_1 = arith.constant 0 : i32
    return %arg0, %c0_i32, %c0_i32_0 : i32, i32, i32
  }
}

</mosaic_0001>

<llo_original>
// kernel: ppo_agent_forward.1
$region0: #{ppo_agent_forward.1}
  #allocation0 [shape = 'u32[]', space=smem, size = 0x4, offset = 0x4, fixed_abs, tag = 'smem constant byte address 0x4 - core index']
  #allocation1 [shape = 'u32[144,128]{1,0:T(1,128)}', space=vmem, size = 0x12000, scoped, tag = 'internal scratch']
  %s0 = inlined_call_operand.vmem [shape: bf16[2,4,128,36], index: 0, kind: input, shape index: {}]
  %s1 = inlined_call_operand.vmem [shape: bf16[36,16], index: 1, kind: input, shape index: {}]
  %s2 = inlined_call_operand.vmem [shape: f32[1,16], index: 2, kind: input, shape index: {}]
  %s3 = inlined_call_operand.vmem [shape: bf16[144,32], index: 3, kind: input, shape index: {}]
  %s4 = inlined_call_operand.vmem [shape: f32[1,32], index: 4, kind: input, shape index: {}]
  %s5 = inlined_call_operand.vmem [shape: bf16[2048,64], index: 5, kind: input, shape index: {}]
  %s6 = inlined_call_operand.vmem [shape: f32[1,64], index: 6, kind: input, shape index: {}]
  %s7 = inlined_call_operand.vmem [shape: f32[64,128], index: 7, kind: input, shape index: {}]
  %s8 = inlined_call_operand.vmem [shape: f32[1,128], index: 8, kind: input, shape index: {}]
  %s9 = inlined_call_operand.vmem [shape: f32[4,1,128], index: 9, kind: output, shape index: {}]
  %s10 = sld [smem:[#allocation0]]
  $region110: #{ppo_agent_forward.1} parent=0
    _
  %s12 = ssub.s32 1, %s10
  %s13 = scalar_select 0, %s12, %s10
  $region1: #{ppo_agent_forward.1} parent=0
    #allocation2 [shape = 'u8[262144]{0}', space=vmem, size = 0x40000, scoped, tag = 'input window, operand 0']
    loop: start=0, step=1, limit=4
    $region2: #{ppo_agent_forward.1} parent=1 // loop_pre_header
      _
    $region3: #{ppo_agent_forward.1} parent=1 // loop_header
      %s15 = sphi 0, %s19
      %p16 = scmp.ge.s32.totalorder %s15, 4
      %s25 = sphi 0, %s27
      %s28 = sphi 0, %s25
      %s29 = sphi 0, %s28
      %s45 = sphi 0, %s29
      %s49 = sphi 0, %s49
      %s51 = sphi 0, %s49
      %s52 = sphi 0, %s51
      %s66 = sphi 0, %s52
      %s70 = sphi 0, %s70
      %s72 = sphi 0, %s70
      %s73 = sphi 0, %s72
      %s87 = sphi 0, %s73
      %s91 = sphi 0, %s91
      %s93 = sphi 0, %s91
      %s94 = sphi 0, %s93
      %s108 = sphi 0, %s94
      %s112 = sphi 0, %s112
      %s114 = sphi 0, %s112
      %s115 = sphi 0, %s114
      %s129 = sphi 0, %s115
      %s133 = sphi 0, %s133
      %s135 = sphi 0, %s133
      %s136 = sphi 0, %s135
      %s150 = sphi 0, %s136
      %s154 = sphi 0, %s154
      %s156 = sphi 0, %s154
      %s157 = sphi 0, %s156
      %s171 = sphi 0, %s157
      %s175 = sphi 0, %s175
      %s177 = sphi 0, %s175
      %s178 = sphi 0, %s177
      %s192 = sphi 0, %s178
      %s196 = sphi 0, %s196
      %s198 = sphi 0, %s196
      %s199 = sphi 0, %s198
      %s213 = sphi 0, %s199
      %s219 = sphi 0, %s221
      %s222 = sphi 0, %s219
      %s223 = sphi 0, %s222
      %s239 = sphi 0, %s223
    $region4: #{ppo_agent_forward.1} parent=1 // loop_header_branch
      %18 = sbr.rel (%p16) target = $region8
    $region5: #{ppo_agent_forward.1} parent=1 // loop_body
      %s20 = ssub.s32 %s15, 1
      %s21 = ssub.s32 %s15, 2
      %s22 = sadd.s32 %s15, 1
      %s23 = ssub.s32 %s15, %s22
      %p24 = scmp.eq.s32.totalorder %s23, 0
      %s26 = sadd.s32 %s25, 1
      %s27 = scalar_select %p24, %s25, %s26
      %p30 = pneg %p24
      %p31 = scmp.eq.s32.totalorder %s15, 1
      %p32 = por %p30, %p31
      %p33 = scmp.ne.s32.totalorder %s25, %s28
      %p34 = scmp.eq.s32.totalorder %s15, 0
      %p35 = por %p33, %p34
      %p36 = scmp.ne.s32.totalorder %s25, %s28
      %p37 = scmp.eq.s32.totalorder %s20, 1
      %p38 = por %p36, %p37
      %p39 = scmp.ne.s32.totalorder %s28, %s29
      %p40 = scmp.eq.s32.totalorder %s20, 0
      %p41 = por %p39, %p40
      %p42 = scmp.ne.s32.totalorder %s28, %s29
      %p43 = scmp.eq.s32.totalorder %s21, 1
      %p44 = por %p42, %p43
      %p46 = scmp.ne.s32.totalorder %s29, %s45
      %p47 = scmp.eq.s32.totalorder %s21, 0
      %p48 = por %p46, %p47
      %s50 = sadd.s32 %s49, 1
      %p53 = scmp.eq.s32.totalorder %s15, 1
      %p54 = scmp.ne.s32.totalorder %s49, %s51
      %p55 = scmp.eq.s32.totalorder %s15, 0
      %p56 = por %p54, %p55
      %p57 = scmp.ne.s32.totalorder %s49, %s51
      %p58 = scmp.eq.s32.totalorder %s20, 1
      %p59 = por %p57, %p58
      %p60 = scmp.ne.s32.totalorder %s51, %s52
      %p61 = scmp.eq.s32.totalorder %s20, 0
      %p62 = por %p60, %p61
      %p63 = scmp.ne.s32.totalorder %s51, %s52
      %p64 = scmp.eq.s32.totalorder %s21, 1
      %p65 = por %p63, %p64
      %p67 = scmp.ne.s32.totalorder %s52, %s66
      %p68 = scmp.eq.s32.totalorder %s21, 0
      %p69 = por %p67, %p68
      %s71 = sadd.s32 %s70, 1
      %p74 = scmp.eq.s32.totalorder %s15, 1
      %p75 = scmp.ne.s32.totalorder %s70, %s72
      %p76 = scmp.eq.s32.totalorder %s15, 0
      %p77 = por %p75, %p76
      %p78 = scmp.ne.s32.totalorder %s70, %s72
      %p79 = scmp.eq.s32.totalorder %s20, 1
      %p80 = por %p78, %p79
      %p81 = scmp.ne.s32.totalorder %s72, %s73
      %p82 = scmp.eq.s32.totalorder %s20, 0
      %p83 = por %p81, %p82
      %p84 = scmp.ne.s32.totalorder %s72, %s73
      %p85 = scmp.eq.s32.totalorder %s21, 1
      %p86 = por %p84, %p85
      %p88 = scmp.ne.s32.totalorder %s73, %s87
      %p89 = scmp.eq.s32.totalorder %s21, 0
      %p90 = por %p88, %p89
      %s92 = sadd.s32 %s91, 1
      %p95 = scmp.eq.s32.totalorder %s15, 1
      %p96 = scmp.ne.s32.totalorder %s91, %s93
      %p97 = scmp.eq.s32.totalorder %s15, 0
      %p98 = por %p96, %p97
      %p99 = scmp.ne.s32.totalorder %s91, %s93
      %p100 = scmp.eq.s32.totalorder %s20, 1
      %p101 = por %p99, %p100
      %p102 = scmp.ne.s32.totalorder %s93, %s94
      %p103 = scmp.eq.s32.totalorder %s20, 0
      %p104 = por %p102, %p103
      %p105 = scmp.ne.s32.totalorder %s93, %s94
      %p106 = scmp.eq.s32.totalorder %s21, 1
      %p107 = por %p105, %p106
      %p109 = scmp.ne.s32.totalorder %s94, %s108
      %p110 = scmp.eq.s32.totalorder %s21, 0
      %p111 = por %p109, %p110
      %s113 = sadd.s32 %s112, 1
      %p116 = scmp.eq.s32.totalorder %s15, 1
      %p117 = scmp.ne.s32.totalorder %s112, %s114
      %p118 = scmp.eq.s32.totalorder %s15, 0
      %p119 = por %p117, %p118
      %p120 = scmp.ne.s32.totalorder %s112, %s114
      %p121 = scmp.eq.s32.totalorder %s20, 1
      %p122 = por %p120, %p121
      %p123 = scmp.ne.s32.totalorder %s114, %s115
      %p124 = scmp.eq.s32.totalorder %s20, 0
      %p125 = por %p123, %p124
      %p126 = scmp.ne.s32.totalorder %s114, %s115
      %p127 = scmp.eq.s32.totalorder %s21, 1
      %p128 = por %p126, %p127
      %p130 = scmp.ne.s32.totalorder %s115, %s129
      %p131 = scmp.eq.s32.totalorder %s21, 0
      %p132 = por %p130, %p131
      %s134 = sadd.s32 %s133, 1
      %p137 = scmp.eq.s32.totalorder %s15, 1
      %p138 = scmp.ne.s32.totalorder %s133, %s135
      %p139 = scmp.eq.s32.totalorder %s15, 0
      %p140 = por %p138, %p139
      %p141 = scmp.ne.s32.totalorder %s133, %s135
      %p142 = scmp.eq.s32.totalorder %s20, 1
      %p143 = por %p141, %p142
      %p144 = scmp.ne.s32.totalorder %s135, %s136
      %p145 = scmp.eq.s32.totalorder %s20, 0
      %p146 = por %p144, %p145
      %p147 = scmp.ne.s32.totalorder %s135, %s136
      %p148 = scmp.eq.s32.totalorder %s21, 1
      %p149 = por %p147, %p148
      %p151 = scmp.ne.s32.totalorder %s136, %s150
      %p152 = scmp.eq.s32.totalorder %s21, 0
      %p153 = por %p151, %p152
      %s155 = sadd.s32 %s154, 1
      %p158 = scmp.eq.s32.totalorder %s15, 1
      %p159 = scmp.ne.s32.totalorder %s154, %s156
      %p160 = scmp.eq.s32.totalorder %s15, 0
      %p161 = por %p159, %p160
      %p162 = scmp.ne.s32.totalorder %s154, %s156
      %p163 = scmp.eq.s32.totalorder %s20, 1
      %p164 = por %p162, %p163
      %p165 = scmp.ne.s32.totalorder %s156, %s157
      %p166 = scmp.eq.s32.totalorder %s20, 0
      %p167 = por %p165, %p166
      %p168 = scmp.ne.s32.totalorder %s156, %s157
      %p169 = scmp.eq.s32.totalorder %s21, 1
      %p170 = por %p168, %p169
      %p172 = scmp.ne.s32.totalorder %s157, %s171
      %p173 = scmp.eq.s32.totalorder %s21, 0
      %p174 = por %p172, %p173
      %s176 = sadd.s32 %s175, 1
      %p179 = scmp.eq.s32.totalorder %s15, 1
      %p180 = scmp.ne.s32.totalorder %s175, %s177
      %p181 = scmp.eq.s32.totalorder %s15, 0
      %p182 = por %p180, %p181
      %p183 = scmp.ne.s32.totalorder %s175, %s177
      %p184 = scmp.eq.s32.totalorder %s20, 1
      %p185 = por %p183, %p184
      %p186 = scmp.ne.s32.totalorder %s177, %s178
      %p187 = scmp.eq.s32.totalorder %s20, 0
      %p188 = por %p186, %p187
      %p189 = scmp.ne.s32.totalorder %s177, %s178
      %p190 = scmp.eq.s32.totalorder %s21, 1
      %p191 = por %p189, %p190
      %p193 = scmp.ne.s32.totalorder %s178, %s192
      %p194 = scmp.eq.s32.totalorder %s21, 0
      %p195 = por %p193, %p194
      %s197 = sadd.s32 %s196, 1
      %p200 = scmp.eq.s32.totalorder %s15, 1
      %p201 = scmp.ne.s32.totalorder %s196, %s198
      %p202 = scmp.eq.s32.totalorder %s15, 0
      %p203 = por %p201, %p202
      %p204 = scmp.ne.s32.totalorder %s196, %s198
      %p205 = scmp.eq.s32.totalorder %s20, 1
      %p206 = por %p204, %p205
      %p207 = scmp.ne.s32.totalorder %s198, %s199
      %p208 = scmp.eq.s32.totalorder %s20, 0
      %p209 = por %p207, %p208
      %p210 = scmp.ne.s32.totalorder %s198, %s199
      %p211 = scmp.eq.s32.totalorder %s21, 1
      %p212 = por %p210, %p211
      %p214 = scmp.ne.s32.totalorder %s199, %s213
      %p215 = scmp.eq.s32.totalorder %s21, 0
      %p216 = por %p214, %p215
      %s217 = ssub.s32 %s15, %s22
      %p218 = scmp.eq.s32.totalorder %s217, 0
      %s220 = sadd.s32 %s219, 1
      %s221 = scalar_select %p218, %s219, %s220
      %p224 = pneg %p218
      %p225 = scmp.eq.s32.totalorder %s15, 1
      %p226 = por %p224, %p225
      %p227 = scmp.ne.s32.totalorder %s219, %s222
      %p228 = scmp.eq.s32.totalorder %s15, 0
      %p229 = por %p227, %p228
      %p230 = scmp.ne.s32.totalorder %s219, %s222
      %p231 = scmp.eq.s32.totalorder %s20, 1
      %p232 = por %p230, %p231
      %p233 = scmp.ne.s32.totalorder %s222, %s223
      %p234 = scmp.eq.s32.totalorder %s20, 0
      %p235 = por %p233, %p234
      %p236 = scmp.ne.s32.totalorder %s222, %s223
      %p237 = scmp.eq.s32.totalorder %s21, 1
      %p238 = por %p236, %p237
      %p240 = scmp.ne.s32.totalorder %s223, %s239
      %p241 = scmp.eq.s32.totalorder %s21, 0
      %p242 = por %p240, %p241
      %p243 = scmp.le.s32.totalorder 1, %s15
      %p244 = scmp.lt.s32.totalorder %s15, 3
      %p245 = pnand %p243, %p244
      %p246 = pneg %p245
      // Predicated region
      $region9: #{ppo_agent_forward.1} parent=5 // pred_check
        _
      $region10: #{ppo_agent_forward.1} parent=5 // pred_check_branch
        %248 = sbr.rel (%p245) target = $region12
      $region11: #{ppo_agent_forward.1} parent=5 // pred_region
        %s249 = ssub.s32 %s15, 1
        // Predicated region
        $region13: #{ppo_agent_forward.1} parent=11 // pred_check
          %p250 = pneg %p62
        $region14: #{ppo_agent_forward.1} parent=11 // pred_check_branch
          %252 = sbr.rel (%p250) target = $region16
        $region15: #{ppo_agent_forward.1} parent=11 // pred_region
          _
        $region16: #{ppo_agent_forward.1} parent=11 // pred_fallthru
          _
        // Predicated region
        $region17: #{ppo_agent_forward.1} parent=11 // pred_check
          %p253 = pneg %p83
        $region18: #{ppo_agent_forward.1} parent=11 // pred_check_branch
          %255 = sbr.rel (%p253) target = $region20
        $region19: #{ppo_agent_forward.1} parent=11 // pred_region
          _
        $region20: #{ppo_agent_forward.1} parent=11 // pred_fallthru
          _
        // Predicated region
        $region21: #{ppo_agent_forward.1} parent=11 // pred_check
          %p256 = pneg %p104
        $region22: #{ppo_agent_forward.1} parent=11 // pred_check_branch
          %258 = sbr.rel (%p256) target = $region24
        $region23: #{ppo_agent_forward.1} parent=11 // pred_region
          _
        $region24: #{ppo_agent_forward.1} parent=11 // pred_fallthru
          _
        // Predicated region
        $region25: #{ppo_agent_forward.1} parent=11 // pred_check
          %p259 = pneg %p125
        $region26: #{ppo_agent_forward.1} parent=11 // pred_check_branch
          %261 = sbr.rel (%p259) target = $region28
        $region27: #{ppo_agent_forward.1} parent=11 // pred_region
          _
        $region28: #{ppo_agent_forward.1} parent=11 // pred_fallthru
          _
        // Predicated region
        $region29: #{ppo_agent_forward.1} parent=11 // pred_check
          %p262 = pneg %p146
        $region30: #{ppo_agent_forward.1} parent=11 // pred_check_branch
          %264 = sbr.rel (%p262) target = $region32
        $region31: #{ppo_agent_forward.1} parent=11 // pred_region
          _
        $region32: #{ppo_agent_forward.1} parent=11 // pred_fallthru
          _
        // Predicated region
        $region33: #{ppo_agent_forward.1} parent=11 // pred_check
          %p265 = pneg %p167
        $region34: #{ppo_agent_forward.1} parent=11 // pred_check_branch
          %267 = sbr.rel (%p265) target = $region36
        $region35: #{ppo_agent_forward.1} parent=11 // pred_region
          _
        $region36: #{ppo_agent_forward.1} parent=11 // pred_fallthru
          _
        // Predicated region
        $region37: #{ppo_agent_forward.1} parent=11 // pred_check
          %p268 = pneg %p188
        $region38: #{ppo_agent_forward.1} parent=11 // pred_check_branch
          %270 = sbr.rel (%p268) target = $region40
        $region39: #{ppo_agent_forward.1} parent=11 // pred_region
          _
        $region40: #{ppo_agent_forward.1} parent=11 // pred_fallthru
          _
        // Predicated region
        $region41: #{ppo_agent_forward.1} parent=11 // pred_check
          %p271 = pneg %p209
        $region42: #{ppo_agent_forward.1} parent=11 // pred_check_branch
          %273 = sbr.rel (%p271) target = $region44
        $region43: #{ppo_agent_forward.1} parent=11 // pred_region
          _
        $region44: #{ppo_agent_forward.1} parent=11 // pred_fallthru
          _
      $region12: #{ppo_agent_forward.1} parent=5 // pred_fallthru
        _
      %p274 = scmp.lt.s32.totalorder %s15, 2
      // Predicated region
      $region45: #{ppo_agent_forward.1} parent=5 // pred_check
        %p275 = pneg %p274
      $region46: #{ppo_agent_forward.1} parent=5 // pred_check_branch
        %277 = sbr.rel (%p275) target = $region48
      $region47: #{ppo_agent_forward.1} parent=5 // pred_region
        // Predicated region
        $region49: #{ppo_agent_forward.1} parent=47 // pred_check
          %p278 = pneg %p35
        $region50: #{ppo_agent_forward.1} parent=47 // pred_check_branch
          %280 = sbr.rel (%p278) target = $region52
        $region51: #{ppo_agent_forward.1} parent=47 // pred_region
          %s281 = sand.u32 %s25, 1
          %s282 = sand.u32 %s25, 1
          %s283 = smul.addr %s282, 256
          %s284 = scalar_lea.vmem [#allocation2], %s283
          %s285 = smul.u32 2, %s15
          %s286 = smul.addr %s285, 16
          %s287 = smul.addr %s286, 4
          %s288 = scalar_lea.vmem %s0, %s287
          // Predicated region
          $region53: #{ppo_agent_forward.1} parent=51 // pred_check
            _
          $region54: #{ppo_agent_forward.1} parent=51 // pred_check_branch
            %290 = sbr.rel (0) target = $region56
          $region55: #{ppo_agent_forward.1} parent=51 // pred_region
            // Predicated region
            $region57: #{ppo_agent_forward.1} parent=55 // pred_check
              _
            $region58: #{ppo_agent_forward.1} parent=55 // pred_check_branch
              %292 = sbr.rel target = $region60
            $region59: #{ppo_agent_forward.1} parent=55 // pred_region
              // Predicated region
              $region72: #{ppo_agent_forward.1} parent=59 // pred_check
                _
              $region73: #{ppo_agent_forward.1} parent=59 // pred_check_branch
                %433 = sbr.rel (0) target = $region75
              $region74: #{ppo_agent_forward.1} parent=59 // pred_region
                loop: start=0, step=1, limit=1
                $region76: #{ppo_agent_forward.1} parent=74 // loop_pre_header
                  _
                $region77: #{ppo_agent_forward.1} parent=74 // loop_header
                  %s435 = sphi 0, %s439
                  %p436 = scmp.ge.s32.totalorder %s435, 1
                  %s440 = sphi %s288, %s288
                  %s441 = sphi %s284, %s284
                $region78: #{ppo_agent_forward.1} parent=74 // loop_header_branch
                  %438 = sbr.rel (%p436) target = $region82
                $region79: #{ppo_agent_forward.1} parent=74 // loop_body
                  _
                $region80: #{ppo_agent_forward.1} parent=74 // loop_footer
                  %s439 = sadd.s32 1, %s435
                $region81: #{ppo_agent_forward.1} parent=74 // loop_footer_branch
                  %434 = sbr.rel target = $region77
                $region82: #{ppo_agent_forward.1} parent=74 // loop_exit
                  _
                loop: start=0, step=1, limit=1
                $region83: #{ppo_agent_forward.1} parent=74 // loop_pre_header
                  _
                $region84: #{ppo_agent_forward.1} parent=74 // loop_header
                  %s444 = sphi 0, %s448
                  %p445 = scmp.ge.s32.totalorder %s444, 1
                  %s449 = sphi %s288, %s288
                  %s450 = sphi %s284, %s284
                $region85: #{ppo_agent_forward.1} parent=74 // loop_header_branch
                  %447 = sbr.rel (%p445) target = $region89
                $region86: #{ppo_agent_forward.1} parent=74 // loop_body
                  %v451 = vld [vmem:[%s449] sm:$0xf]
                  %452 = vst [vmem:[%s450] sm:$0xf] %v451
                  %v453 = vld [vmem:[%s449 + $0x4] sm:$0xf]
                  %454 = vst [vmem:[%s450 + $0x4] sm:$0xf] %v453
                  %v455 = vld [vmem:[%s449 + $0x8] sm:$0xf]
                  %456 = vst [vmem:[%s450 + $0x8] sm:$0xf] %v455
                  %v457 = vld [vmem:[%s449 + $0xc] sm:$0xf]
                  %458 = vst [vmem:[%s450 + $0xc] sm:$0xf] %v457
                  %v459 = vld [vmem:[%s449 + $0x10] sm:$0xf]
                  %460 = vst [vmem:[%s450 + $0x10] sm:$0xf] %v459
                  %v461 = vld [vmem:[%s449 + $0x14] sm:$0xf]
                  %462 = vst [vmem:[%s450 + $0x14] sm:$0xf] %v461
                  %v463 = vld [vmem:[%s449 + $0x18] sm:$0xf]
                  %464 = vst [vmem:[%s450 + $0x18] sm:$0xf] %v463
                  %v465 = vld [vmem:[%s449 + $0x1c] sm:$0xf]
                  %466 = vst [vmem:[%s450 + $0x1c] sm:$0xf] %v465
                  %v467 = vld [vmem:[%s449 + $0x20] sm:$0xf]
                  %468 = vst [vmem:[%s450 + $0x20] sm:$0xf] %v467
                  %v469 = vld [vmem:[%s449 + $0x24] sm:$0xf]
                  %470 = vst [vmem:[%s450 + $0x24] sm:$0xf] %v469
                  %v471 = vld [vmem:[%s449 + $0x28] sm:$0xf]
                  %472 = vst [vmem:[%s450 + $0x28] sm:$0xf] %v471
                  %v473 = vld [vmem:[%s449 + $0x2c] sm:$0xf]
                  %474 = vst [vmem:[%s450 + $0x2c] sm:$0xf] %v473
                  %v475 = vld [vmem:[%s449 + $0x30] sm:$0xf]
                  %476 = vst [vmem:[%s450 + $0x30] sm:$0xf] %v475
                  %v477 = vld [vmem:[%s449 + $0x34] sm:$0xf]
                  %478 = vst [vmem:[%s450 + $0x34] sm:$0xf] %v477
                  %v479 = vld [vmem:[%s449 + $0x38] sm:$0xf]
                  %480 = vst [vmem:[%s450 + $0x38] sm:$0xf] %v479
                  %v481 = vld [vmem:[%s449 + $0x3c] sm:$0xf]
                  %482 = vst [vmem:[%s450 + $0x3c] sm:$0xf] %v481
                  %v483 = vld [vmem:[%s449 + $0x40] sm:$0xf]
                  %484 = vst [vmem:[%s450 + $0x40] sm:$0xf] %v483
                  %v485 = vld [vmem:[%s449 + $0x44] sm:$0xf]
                  %486 = vst [vmem:[%s450 + $0x44] sm:$0xf] %v485
                  %v487 = vld [vmem:[%s449 + $0x48] sm:$0xf]
                  %488 = vst [vmem:[%s450 + $0x48] sm:$0xf] %v487
                  %v489 = vld [vmem:[%s449 + $0x4c] sm:$0xf]
                  %490 = vst [vmem:[%s450 + $0x4c] sm:$0xf] %v489
                  %v491 = vld [vmem:[%s449 + $0x50] sm:$0xf]
                  %492 = vst [vmem:[%s450 + $0x50] sm:$0xf] %v491
                  %v493 = vld [vmem:[%s449 + $0x54] sm:$0xf]
                  %494 = vst [vmem:[%s450 + $0x54] sm:$0xf] %v493
                  %v495 = vld [vmem:[%s449 + $0x58] sm:$0xf]
                  %496 = vst [vmem:[%s450 + $0x58] sm:$0xf] %v495
                  %v497 = vld [vmem:[%s449 + $0x5c] sm:$0xf]
                  %498 = vst [vmem:[%s450 + $0x5c] sm:$0xf] %v497
                  %v499 = vld [vmem:[%s449 + $0x60] sm:$0xf]
                  %500 = vst [vmem:[%s450 + $0x60] sm:$0xf] %v499
                  %v501 = vld [vmem:[%s449 + $0x64] sm:$0xf]
                  %502 = vst [vmem:[%s450 + $0x64] sm:$0xf] %v501
                  %v503 = vld [vmem:[%s449 + $0x68] sm:$0xf]
                  %504 = vst [vmem:[%s450 + $0x68] sm:$0xf] %v503
                  %v505 = vld [vmem:[%s449 + $0x6c] sm:$0xf]
                  %506 = vst [vmem:[%s450 + $0x6c] sm:$0xf] %v505
                  %v507 = vld [vmem:[%s449 + $0x70] sm:$0xf]
                  %508 = vst [vmem:[%s450 + $0x70] sm:$0xf] %v507
                  %v509 = vld [vmem:[%s449 + $0x74] sm:$0xf]
                  %510 = vst [vmem:[%s450 + $0x74] sm:$0xf] %v509
                  %v511 = vld [vmem:[%s449 + $0x78] sm:$0xf]
                  %512 = vst [vmem:[%s450 + $0x78] sm:$0xf] %v511
                  %v513 = vld [vmem:[%s449 + $0x7c] sm:$0xf]
                  %514 = vst [vmem:[%s450 + $0x7c] sm:$0xf] %v513
                  %v515 = vld [vmem:[%s449 + $0x100] sm:$0xf]
                  %516 = vst [vmem:[%s450 + $0x80] sm:$0xf] %v515
                  %v517 = vld [vmem:[%s449 + $0x104] sm:$0xf]
                  %518 = vst [vmem:[%s450 + $0x84] sm:$0xf] %v517
                  %v519 = vld [vmem:[%s449 + $0x108] sm:$0xf]
                  %520 = vst [vmem:[%s450 + $0x88] sm:$0xf] %v519
                  %v521 = vld [vmem:[%s449 + $0x10c] sm:$0xf]
                  %522 = vst [vmem:[%s450 + $0x8c] sm:$0xf] %v521
                  %v523 = vld [vmem:[%s449 + $0x110] sm:$0xf]
                  %524 = vst [vmem:[%s450 + $0x90] sm:$0xf] %v523
                  %v525 = vld [vmem:[%s449 + $0x114] sm:$0xf]
                  %526 = vst [vmem:[%s450 + $0x94] sm:$0xf] %v525
                  %v527 = vld [vmem:[%s449 + $0x118] sm:$0xf]
                  %528 = vst [vmem:[%s450 + $0x98] sm:$0xf] %v527
                  %v529 = vld [vmem:[%s449 + $0x11c] sm:$0xf]
                  %530 = vst [vmem:[%s450 + $0x9c] sm:$0xf] %v529
                  %v531 = vld [vmem:[%s449 + $0x120] sm:$0xf]
                  %532 = vst [vmem:[%s450 + $0xa0] sm:$0xf] %v531
                  %v533 = vld [vmem:[%s449 + $0x124] sm:$0xf]
                  %534 = vst [vmem:[%s450 + $0xa4] sm:$0xf] %v533
                  %v535 = vld [vmem:[%s449 + $0x128] sm:$0xf]
                  %536 = vst [vmem:[%s450 + $0xa8] sm:$0xf] %v535
                  %v537 = vld [vmem:[%s449 + $0x12c] sm:$0xf]
                  %538 = vst [vmem:[%s450 + $0xac] sm:$0xf] %v537
                  %v539 = vld [vmem:[%s449 + $0x130] sm:$0xf]
                  %540 = vst [vmem:[%s450 + $0xb0] sm:$0xf] %v539
                  %v541 = vld [vmem:[%s449 + $0x134] sm:$0xf]
                  %542 = vst [vmem:[%s450 + $0xb4] sm:$0xf] %v541
                  %v543 = vld [vmem:[%s449 + $0x138] sm:$0xf]
                  %544 = vst [vmem:[%s450 + $0xb8] sm:$0xf] %v543
                  %v545 = vld [vmem:[%s449 + $0x13c] sm:$0xf]
                  %546 = vst [vmem:[%s450 + $0xbc] sm:$0xf] %v545
                  %v547 = vld [vmem:[%s449 + $0x140] sm:$0xf]
                  %548 = vst [vmem:[%s450 + $0xc0] sm:$0xf] %v547
                  %v549 = vld [vmem:[%s449 + $0x144] sm:$0xf]
                  %550 = vst [vmem:[%s450 + $0xc4] sm:$0xf] %v549
                  %v551 = vld [vmem:[%s449 + $0x148] sm:$0xf]
                  %552 = vst [vmem:[%s450 + $0xc8] sm:$0xf] %v551
                  %v553 = vld [vmem:[%s449 + $0x14c] sm:$0xf]
                  %554 = vst [vmem:[%s450 + $0xcc] sm:$0xf] %v553
                  %v555 = vld [vmem:[%s449 + $0x150] sm:$0xf]
                  %556 = vst [vmem:[%s450 + $0xd0] sm:$0xf] %v555
                  %v557 = vld [vmem:[%s449 + $0x154] sm:$0xf]
                  %558 = vst [vmem:[%s450 + $0xd4] sm:$0xf] %v557
                  %v559 = vld [vmem:[%s449 + $0x158] sm:$0xf]
                  %560 = vst [vmem:[%s450 + $0xd8] sm:$0xf] %v559
                  %v561 = vld [vmem:[%s449 + $0x15c] sm:$0xf]
                  %562 = vst [vmem:[%s450 + $0xdc] sm:$0xf] %v561
                  %v563 = vld [vmem:[%s449 + $0x160] sm:$0xf]
                  %564 = vst [vmem:[%s450 + $0xe0] sm:$0xf] %v563
                  %v565 = vld [vmem:[%s449 + $0x164] sm:$0xf]
                  %566 = vst [vmem:[%s450 + $0xe4] sm:$0xf] %v565
                  %v567 = vld [vmem:[%s449 + $0x168] sm:$0xf]
                  %568 = vst [vmem:[%s450 + $0xe8] sm:$0xf] %v567
                  %v569 = vld [vmem:[%s449 + $0x16c] sm:$0xf]
                  %570 = vst [vmem:[%s450 + $0xec] sm:$0xf] %v569
                  %v571 = vld [vmem:[%s449 + $0x170] sm:$0xf]
                  %572 = vst [vmem:[%s450 + $0xf0] sm:$0xf] %v571
                  %v573 = vld [vmem:[%s449 + $0x174] sm:$0xf]
                  %574 = vst [vmem:[%s450 + $0xf4] sm:$0xf] %v573
                  %v575 = vld [vmem:[%s449 + $0x178] sm:$0xf]
                  %576 = vst [vmem:[%s450 + $0xf8] sm:$0xf] %v575
                  %v577 = vld [vmem:[%s449 + $0x17c] sm:$0xf]
                  %578 = vst [vmem:[%s450 + $0xfc] sm:$0xf] %v577
                $region87: #{ppo_agent_forward.1} parent=74 // loop_footer
                  %s448 = sadd.s32 1, %s444
                $region88: #{ppo_agent_forward.1} parent=74 // loop_footer_branch
                  %443 = sbr.rel target = $region84
                $region89: #{ppo_agent_forward.1} parent=74 // loop_exit
                  _
              $region75: #{ppo_agent_forward.1} parent=59 // pred_fallthru
                _
            $region60: #{ppo_agent_forward.1} parent=55 // pred_fallthru
              _
            // Predicated region
            $region61: #{ppo_agent_forward.1} parent=55 // pred_check
              _
            $region62: #{ppo_agent_forward.1} parent=55 // pred_check_branch
              %294 = sbr.rel (0) target = $region64
            $region63: #{ppo_agent_forward.1} parent=55 // pred_region
              loop: start=0, step=1, limit=1
              $region65: #{ppo_agent_forward.1} parent=63 // loop_pre_header
                _
              $region66: #{ppo_agent_forward.1} parent=63 // loop_header
                %s297 = sphi 0, %s301
                %p298 = scmp.ge.s32.totalorder %s297, 1
                %s302 = sphi %s288, %s288
                %s303 = sphi %s284, %s284
              $region67: #{ppo_agent_forward.1} parent=63 // loop_header_branch
                %300 = sbr.rel (%p298) target = $region71
              $region68: #{ppo_agent_forward.1} parent=63 // loop_body
                %v304 = vld [vmem:[%s302] sm:$0xf]
                %305 = vst [vmem:[%s303] sm:$0xf] %v304
                %v306 = vld [vmem:[%s302 + $0x4] sm:$0xf]
                %307 = vst [vmem:[%s303 + $0x4] sm:$0xf] %v306
                %v308 = vld [vmem:[%s302 + $0x8] sm:$0xf]
                %309 = vst [vmem:[%s303 + $0x8] sm:$0xf] %v308
                %v310 = vld [vmem:[%s302 + $0xc] sm:$0xf]
                %311 = vst [vmem:[%s303 + $0xc] sm:$0xf] %v310
                %v312 = vld [vmem:[%s302 + $0x10] sm:$0xf]
                %313 = vst [vmem:[%s303 + $0x10] sm:$0xf] %v312
                %v314 = vld [vmem:[%s302 + $0x14] sm:$0xf]
                %315 = vst [vmem:[%s303 + $0x14] sm:$0xf] %v314
                %v316 = vld [vmem:[%s302 + $0x18] sm:$0xf]
                %317 = vst [vmem:[%s303 + $0x18] sm:$0xf] %v316
                %v318 = vld [vmem:[%s302 + $0x1c] sm:$0xf]
                %319 = vst [vmem:[%s303 + $0x1c] sm:$0xf] %v318
                %v320 = vld [vmem:[%s302 + $0x20] sm:$0xf]
                %321 = vst [vmem:[%s303 + $0x20] sm:$0xf] %v320
                %v322 = vld [vmem:[%s302 + $0x24] sm:$0xf]
                %323 = vst [vmem:[%s303 + $0x24] sm:$0xf] %v322
                %v324 = vld [vmem:[%s302 + $0x28] sm:$0xf]
                %325 = vst [vmem:[%s303 + $0x28] sm:$0xf] %v324
                %v326 = vld [vmem:[%s302 + $0x2c] sm:$0xf]
                %327 = vst [vmem:[%s303 + $0x2c] sm:$0xf] %v326
                %v328 = vld [vmem:[%s302 + $0x30] sm:$0xf]
                %329 = vst [vmem:[%s303 + $0x30] sm:$0xf] %v328
                %v330 = vld [vmem:[%s302 + $0x34] sm:$0xf]
                %331 = vst [vmem:[%s303 + $0x34] sm:$0xf] %v330
                %v332 = vld [vmem:[%s302 + $0x38] sm:$0xf]
                %333 = vst [vmem:[%s303 + $0x38] sm:$0xf] %v332
                %v334 = vld [vmem:[%s302 + $0x3c] sm:$0xf]
                %335 = vst [vmem:[%s303 + $0x3c] sm:$0xf] %v334
                %v336 = vld [vmem:[%s302 + $0x40] sm:$0xf]
                %337 = vst [vmem:[%s303 + $0x40] sm:$0xf] %v336
                %v338 = vld [vmem:[%s302 + $0x44] sm:$0xf]
                %339 = vst [vmem:[%s303 + $0x44] sm:$0xf] %v338
                %v340 = vld [vmem:[%s302 + $0x48] sm:$0xf]
                %341 = vst [vmem:[%s303 + $0x48] sm:$0xf] %v340
                %v342 = vld [vmem:[%s302 + $0x4c] sm:$0xf]
                %343 = vst [vmem:[%s303 + $0x4c] sm:$0xf] %v342
                %v344 = vld [vmem:[%s302 + $0x50] sm:$0xf]
                %345 = vst [vmem:[%s303 + $0x50] sm:$0xf] %v344
                %v346 = vld [vmem:[%s302 + $0x54] sm:$0xf]
                %347 = vst [vmem:[%s303 + $0x54] sm:$0xf] %v346
                %v348 = vld [vmem:[%s302 + $0x58] sm:$0xf]
                %349 = vst [vmem:[%s303 + $0x58] sm:$0xf] %v348
                %v350 = vld [vmem:[%s302 + $0x5c] sm:$0xf]
                %351 = vst [vmem:[%s303 + $0x5c] sm:$0xf] %v350
                %v352 = vld [vmem:[%s302 + $0x60] sm:$0xf]
                %353 = vst [vmem:[%s303 + $0x60] sm:$0xf] %v352
                %v354 = vld [vmem:[%s302 + $0x64] sm:$0xf]
                %355 = vst [vmem:[%s303 + $0x64] sm:$0xf] %v354
                %v356 = vld [vmem:[%s302 + $0x68] sm:$0xf]
                %357 = vst [vmem:[%s303 + $0x68] sm:$0xf] %v356
                %v358 = vld [vmem:[%s302 + $0x6c] sm:$0xf]
                %359 = vst [vmem:[%s303 + $0x6c] sm:$0xf] %v358
                %v360 = vld [vmem:[%s302 + $0x70] sm:$0xf]
                %361 = vst [vmem:[%s303 + $0x70] sm:$0xf] %v360
                %v362 = vld [vmem:[%s302 + $0x74] sm:$0xf]
                %363 = vst [vmem:[%s303 + $0x74] sm:$0xf] %v362
                %v364 = vld [vmem:[%s302 + $0x78] sm:$0xf]
                %365 = vst [vmem:[%s303 + $0x78] sm:$0xf] %v364
                %v366 = vld [vmem:[%s302 + $0x7c] sm:$0xf]
                %367 = vst [vmem:[%s303 + $0x7c] sm:$0xf] %v366
                %v368 = vld [vmem:[%s302 + $0x100] sm:$0xf]
                %369 = vst [vmem:[%s303 + $0x80] sm:$0xf] %v368
                %v370 = vld [vmem:[%s302 + $0x104] sm:$0xf]
                %371 = vst [vmem:[%s303 + $0x84] sm:$0xf] %v370
                %v372 = vld [vmem:[%s302 + $0x108] sm:$0xf]
                %373 = vst [vmem:[%s303 + $0x88] sm:$0xf] %v372
                %v374 = vld [vmem:[%s302 + $0x10c] sm:$0xf]
                %375 = vst [vmem:[%s303 + $0x8c] sm:$0xf] %v374
                %v376 = vld [vmem:[%s302 + $0x110] sm:$0xf]
                %377 = vst [vmem:[%s303 + $0x90] sm:$0xf] %v376
                %v378 = vld [vmem:[%s302 + $0x114] sm:$0xf]
                %379 = vst [vmem:[%s303 + $0x94] sm:$0xf] %v378
                %v380 = vld [vmem:[%s302 + $0x118] sm:$0xf]
                %381 = vst [vmem:[%s303 + $0x98] sm:$0xf] %v380
                %v382 = vld [vmem:[%s302 + $0x11c] sm:$0xf]
                %383 = vst [vmem:[%s303 + $0x9c] sm:$0xf] %v382
                %v384 = vld [vmem:[%s302 + $0x120] sm:$0xf]
                %385 = vst [vmem:[%s303 + $0xa0] sm:$0xf] %v384
                %v386 = vld [vmem:[%s302 + $0x124] sm:$0xf]
                %387 = vst [vmem:[%s303 + $0xa4] sm:$0xf] %v386
                %v388 = vld [vmem:[%s302 + $0x128] sm:$0xf]
                %389 = vst [vmem:[%s303 + $0xa8] sm:$0xf] %v388
                %v390 = vld [vmem:[%s302 + $0x12c] sm:$0xf]
                %391 = vst [vmem:[%s303 + $0xac] sm:$0xf] %v390
                %v392 = vld [vmem:[%s302 + $0x130] sm:$0xf]
                %393 = vst [vmem:[%s303 + $0xb0] sm:$0xf] %v392
                %v394 = vld [vmem:[%s302 + $0x134] sm:$0xf]
                %395 = vst [vmem:[%s303 + $0xb4] sm:$0xf] %v394
                %v396 = vld [vmem:[%s302 + $0x138] sm:$0xf]
                %397 = vst [vmem:[%s303 + $0xb8] sm:$0xf] %v396
                %v398 = vld [vmem:[%s302 + $0x13c] sm:$0xf]
                %399 = vst [vmem:[%s303 + $0xbc] sm:$0xf] %v398
                %v400 = vld [vmem:[%s302 + $0x140] sm:$0xf]
                %401 = vst [vmem:[%s303 + $0xc0] sm:$0xf] %v400
                %v402 = vld [vmem:[%s302 + $0x144] sm:$0xf]
                %403 = vst [vmem:[%s303 + $0xc4] sm:$0xf] %v402
                %v404 = vld [vmem:[%s302 + $0x148] sm:$0xf]
                %405 = vst [vmem:[%s303 + $0xc8] sm:$0xf] %v404
                %v406 = vld [vmem:[%s302 + $0x14c] sm:$0xf]
                %407 = vst [vmem:[%s303 + $0xcc] sm:$0xf] %v406
                %v408 = vld [vmem:[%s302 + $0x150] sm:$0xf]
                %409 = vst [vmem:[%s303 + $0xd0] sm:$0xf] %v408
                %v410 = vld [vmem:[%s302 + $0x154] sm:$0xf]
                %411 = vst [vmem:[%s303 + $0xd4] sm:$0xf] %v410
                %v412 = vld [vmem:[%s302 + $0x158] sm:$0xf]
                %413 = vst [vmem:[%s303 + $0xd8] sm:$0xf] %v412
                %v414 = vld [vmem:[%s302 + $0x15c] sm:$0xf]
                %415 = vst [vmem:[%s303 + $0xdc] sm:$0xf] %v414
                %v416 = vld [vmem:[%s302 + $0x160] sm:$0xf]
                %417 = vst [vmem:[%s303 + $0xe0] sm:$0xf] %v416
                %v418 = vld [vmem:[%s302 + $0x164] sm:$0xf]
                %419 = vst [vmem:[%s303 + $0xe4] sm:$0xf] %v418
                %v420 = vld [vmem:[%s302 + $0x168] sm:$0xf]
                %421 = vst [vmem:[%s303 + $0xe8] sm:$0xf] %v420
                %v422 = vld [vmem:[%s302 + $0x16c] sm:$0xf]
                %423 = vst [vmem:[%s303 + $0xec] sm:$0xf] %v422
                %v424 = vld [vmem:[%s302 + $0x170] sm:$0xf]
                %425 = vst [vmem:[%s303 + $0xf0] sm:$0xf] %v424
                %v426 = vld [vmem:[%s302 + $0x174] sm:$0xf]
                %427 = vst [vmem:[%s303 + $0xf4] sm:$0xf] %v426
                %v428 = vld [vmem:[%s302 + $0x178] sm:$0xf]
                %429 = vst [vmem:[%s303 + $0xf8] sm:$0xf] %v428
                %v430 = vld [vmem:[%s302 + $0x17c] sm:$0xf]
                %431 = vst [vmem:[%s303 + $0xfc] sm:$0xf] %v430
              $region69: #{ppo_agent_forward.1} parent=63 // loop_footer
                %s301 = sadd.s32 1, %s297
              $region70: #{ppo_agent_forward.1} parent=63 // loop_footer_branch
                %296 = sbr.rel target = $region66
              $region71: #{ppo_agent_forward.1} parent=63 // loop_exit
                _
            $region64: #{ppo_agent_forward.1} parent=55 // pred_fallthru
              _
          $region56: #{ppo_agent_forward.1} parent=51 // pred_fallthru
            _
          %579 = vnop
        $region52: #{ppo_agent_forward.1} parent=47 // pred_fallthru
          _
      $region48: #{ppo_agent_forward.1} parent=5 // pred_fallthru
        _
      %p580 = scmp.le.s32.totalorder 1, %s15
      %p581 = scmp.lt.s32.totalorder %s15, 3
      %p582 = pnand %p580, %p581
      %p583 = pneg %p582
      // Predicated region
      $region90: #{ppo_agent_forward.1} parent=5 // pred_check
        _
      $region91: #{ppo_agent_forward.1} parent=5 // pred_check_branch
        %585 = sbr.rel (%p582) target = $region93
      $region92: #{ppo_agent_forward.1} parent=5 // pred_region
        %s586 = ssub.s32 %s15, 1
        %s587 = sand.u32 %s28, 1
        %s588 = sand.u32 %s28, 1
        %s589 = smul.addr %s588, 256
        %s590 = scalar_lea.vmem [#allocation2], %s589
        // Predicated region
        $region94: #{ppo_agent_forward.1} parent=92 // pred_check
          %p591 = pneg %p41
        $region95: #{ppo_agent_forward.1} parent=92 // pred_check_branch
          %593 = sbr.rel (%p591) target = $region97
        $region96: #{ppo_agent_forward.1} parent=92 // pred_region
          _
        $region97: #{ppo_agent_forward.1} parent=92 // pred_fallthru
          _
        %s594 = sand.u32 %s28, 1
        %s595 = sand.u32 %s28, 1
        %s596 = smul.addr %s595, 256
        %s597 = scalar_lea.vmem [#allocation2], %s596
        %p598 = pneg %p41
        %p599 = pneg %p38
        %p600 = pneg %p62
        %p601 = pneg %p59
        %p602 = pneg %p83
        %p603 = pneg %p80
        %p604 = pneg %p104
        %p605 = pneg %p101
        %p606 = pneg %p125
        %p607 = pneg %p122
        %p608 = pneg %p146
        %p609 = pneg %p143
        %p610 = pneg %p167
        %p611 = pneg %p164
        %p612 = pneg %p188
        %p613 = pneg %p185
        %p614 = pneg %p209
        %p615 = pneg %p206
        %p616 = pneg %p235
        %p617 = pneg %p232
        %s618 = smul.u32 2, %s20
        %p619 = scmp.lt.s32.totalorder %s618, 3
        %s620 = scalar_select %p619, %s618, 3
        %s621 = scalar_lea.vmem %s9, %s620
        %s622 = smul.u32 2, %s20
        %s623 = smul.u32 2, %s20
        %p624 = scmp.lt.s32.totalorder %s623, 3
        %s625 = scalar_select %p624, %s623, 3
        %s626 = scalar_lea.vmem %s9, %s625
        %s627 = smul.u32 2, %s20
        %v629 = vld [vmem:[%s590] sm:$0xf]
        %v630 = vld [vmem:[%s590 + $0x4] sm:$0xf]
        %v631 = vld [vmem:[%s590 + $0x8] sm:$0xf]
        %v632 = vld [vmem:[%s590 + $0xc] sm:$0xf]
        %v633 = vld [vmem:[%s590 + $0x10] sm:$0xf]
        %v634 = vld [vmem:[%s590 + $0x14] sm:$0xf]
        %v635 = vld [vmem:[%s590 + $0x18] sm:$0xf]
        %v636 = vld [vmem:[%s590 + $0x1c] sm:$0xf]
        %v637 = vld [vmem:[%s590 + $0x20] sm:$0xf]
        %v638 = vld [vmem:[%s590 + $0x24] sm:$0xf]
        %v639 = vld [vmem:[%s590 + $0x28] sm:$0xf]
        %v640 = vld [vmem:[%s590 + $0x2c] sm:$0xf]
        %v641 = vld [vmem:[%s590 + $0x30] sm:$0xf]
        %v642 = vld [vmem:[%s590 + $0x34] sm:$0xf]
        %v643 = vld [vmem:[%s590 + $0x38] sm:$0xf]
        %v644 = vld [vmem:[%s590 + $0x3c] sm:$0xf]
        %v645 = vld [vmem:[%s590 + $0x40] sm:$0xf]
        %v646 = vld [vmem:[%s590 + $0x44] sm:$0xf]
        %v647 = vld [vmem:[%s590 + $0x48] sm:$0xf]
        %v648 = vld [vmem:[%s590 + $0x4c] sm:$0xf]
        %v649 = vld [vmem:[%s590 + $0x50] sm:$0xf]
        %v650 = vld [vmem:[%s590 + $0x54] sm:$0xf]
        %v651 = vld [vmem:[%s590 + $0x58] sm:$0xf]
        %v652 = vld [vmem:[%s590 + $0x5c] sm:$0xf]
        %v653 = vld [vmem:[%s590 + $0x60] sm:$0xf]
        %v654 = vld [vmem:[%s590 + $0x64] sm:$0xf]
        %v655 = vld [vmem:[%s590 + $0x68] sm:$0xf]
        %v656 = vld [vmem:[%s590 + $0x6c] sm:$0xf]
        %v657 = vld [vmem:[%s590 + $0x70] sm:$0xf]
        %v658 = vld [vmem:[%s590 + $0x74] sm:$0xf]
        %v659 = vld [vmem:[%s590 + $0x78] sm:$0xf]
        %v660 = vld [vmem:[%s590 + $0x7c] sm:$0xf]
        %v661 = vld [vmem:[%s590 + $0x80] sm:$0xf]
        %v662 = vld [vmem:[%s590 + $0x84] sm:$0xf]
        %v663 = vld [vmem:[%s590 + $0x88] sm:$0xf]
        %v664 = vld [vmem:[%s590 + $0x8c] sm:$0xf]
        %v665 = vld [vmem:[%s590 + $0x90] sm:$0xf]
        %v666 = vld [vmem:[%s590 + $0x94] sm:$0xf]
        %v667 = vld [vmem:[%s590 + $0x98] sm:$0xf]
        %v668 = vld [vmem:[%s590 + $0x9c] sm:$0xf]
        %v669 = vld [vmem:[%s590 + $0xa0] sm:$0xf]
        %v670 = vld [vmem:[%s590 + $0xa4] sm:$0xf]
        %v671 = vld [vmem:[%s590 + $0xa8] sm:$0xf]
        %v672 = vld [vmem:[%s590 + $0xac] sm:$0xf]
        %v673 = vld [vmem:[%s590 + $0xb0] sm:$0xf]
        %v674 = vld [vmem:[%s590 + $0xb4] sm:$0xf]
        %v675 = vld [vmem:[%s590 + $0xb8] sm:$0xf]
        %v676 = vld [vmem:[%s590 + $0xbc] sm:$0xf]
        %v677 = vld [vmem:[%s590 + $0xc0] sm:$0xf]
        %v678 = vld [vmem:[%s590 + $0xc4] sm:$0xf]
        %v679 = vld [vmem:[%s590 + $0xc8] sm:$0xf]
        %v680 = vld [vmem:[%s590 + $0xcc] sm:$0xf]
        %v681 = vld [vmem:[%s590 + $0xd0] sm:$0xf]
        %v682 = vld [vmem:[%s590 + $0xd4] sm:$0xf]
        %v683 = vld [vmem:[%s590 + $0xd8] sm:$0xf]
        %v684 = vld [vmem:[%s590 + $0xdc] sm:$0xf]
        %v685 = vld [vmem:[%s590 + $0xe0] sm:$0xf]
        %v686 = vld [vmem:[%s590 + $0xe4] sm:$0xf]
        %v687 = vld [vmem:[%s590 + $0xe8] sm:$0xf]
        %v688 = vld [vmem:[%s590 + $0xec] sm:$0xf]
        %v689 = vld [vmem:[%s590 + $0xf0] sm:$0xf]
        %v690 = vld [vmem:[%s590 + $0xf4] sm:$0xf]
        %v691 = vld [vmem:[%s590 + $0xf8] sm:$0xf]
        %v692 = vld [vmem:[%s590 + $0xfc] sm:$0xf]
        %v693 = vld [vmem:[%s1] sm:$0xf]
        %v694 = vld [vmem:[%s1 + $0x4] sm:$0xf]
        %v695 = vld [vmem:[%s1 + $0x8] sm:$0xf]
        %v696 = vld [vmem:[%s1 + $0xc] sm:$0xf]
        %v697 = vld [vmem:[%s1 + $0x10] sm:$0x3]
        %v698 = vld [vmem:[%s2] sm:$0x1]
        %v700 = vlaneseq
        %v701 = vshrl.u32 %v700, 7
        %v702 = vsub.s32 0, %v701
        %v703 = vrot.slane %v698, %v702
        %v769 = vunpack.c.l.b16 %v629
        %v770 = vunpack.c.l.b16 %v630
        %v771 = vunpack.c.l.b16 %v631
        %v772 = vunpack.c.l.b16 %v632
        %v773 = vunpack.c.l.b16 %v633
        %v774 = vunpack.c.l.b16 %v634
        %v775 = vunpack.c.l.b16 %v635
        %v776 = vunpack.c.l.b16 %v636
        %v777 = vunpack.c.l.b16 %v637
        %v778 = vunpack.c.l.b16 %v638
        %v779 = vunpack.c.l.b16 %v639
        %v780 = vunpack.c.l.b16 %v640
        %v781 = vunpack.c.l.b16 %v641
        %v782 = vunpack.c.l.b16 %v642
        %v783 = vunpack.c.l.b16 %v643
        %v784 = vunpack.c.l.b16 %v644
        %v785 = vunpack.c.l.b16 %v645
        %v786 = vunpack.c.l.b16 %v646
        %v787 = vunpack.c.l.b16 %v647
        %v788 = vunpack.c.l.b16 %v648
        %v789 = vunpack.c.l.b16 %v649
        %v790 = vunpack.c.l.b16 %v650
        %v791 = vunpack.c.l.b16 %v651
        %v792 = vunpack.c.l.b16 %v652
        %v793 = vunpack.c.l.b16 %v653
        %v794 = vunpack.c.l.b16 %v654
        %v795 = vunpack.c.l.b16 %v655
        %v796 = vunpack.c.l.b16 %v656
        %v797 = vunpack.c.l.b16 %v657
        %v798 = vunpack.c.l.b16 %v658
        %v799 = vunpack.c.l.b16 %v659
        %v800 = vunpack.c.l.b16 %v660
        %v801 = vunpack.c.l.b16 %v661
        %v802 = vunpack.c.l.b16 %v662
        %v803 = vunpack.c.l.b16 %v663
        %v804 = vunpack.c.l.b16 %v664
        %v805 = vunpack.c.l.b16 %v665
        %v806 = vunpack.c.l.b16 %v666
        %v807 = vunpack.c.l.b16 %v667
        %v808 = vunpack.c.l.b16 %v668
        %v809 = vunpack.c.l.b16 %v669
        %v810 = vunpack.c.l.b16 %v670
        %v811 = vunpack.c.l.b16 %v671
        %v812 = vunpack.c.l.b16 %v672
        %v813 = vunpack.c.l.b16 %v673
        %v814 = vunpack.c.l.b16 %v674
        %v815 = vunpack.c.l.b16 %v675
        %v816 = vunpack.c.l.b16 %v676
        %v817 = vunpack.c.l.b16 %v677
        %v818 = vunpack.c.l.b16 %v678
        %v819 = vunpack.c.l.b16 %v679
        %v820 = vunpack.c.l.b16 %v680
        %v821 = vunpack.c.l.b16 %v681
        %v822 = vunpack.c.l.b16 %v682
        %v823 = vunpack.c.l.b16 %v683
        %v824 = vunpack.c.l.b16 %v684
        %v825 = vunpack.c.l.b16 %v685
        %v826 = vunpack.c.l.b16 %v686
        %v827 = vunpack.c.l.b16 %v687
        %v828 = vunpack.c.l.b16 %v688
        %v829 = vunpack.c.l.b16 %v689
        %v830 = vunpack.c.l.b16 %v690
        %v831 = vunpack.c.l.b16 %v691
        %v832 = vunpack.c.l.b16 %v692
        %v833 = vpack.c.b16 %v770, %v769
        %v834 = vpack.c.b16 %v772, %v771
        %v835 = vpack.c.b16 %v774, %v773
        %v836 = vpack.c.b16 %v776, %v775
        %v837 = vpack.c.b16 %v778, %v777
        %v838 = vpack.c.b16 %v780, %v779
        %v839 = vpack.c.b16 %v782, %v781
        %v840 = vpack.c.b16 %v784, %v783
        %v841 = vpack.c.b16 %v786, %v785
        %v842 = vpack.c.b16 %v788, %v787
        %v843 = vpack.c.b16 %v790, %v789
        %v844 = vpack.c.b16 %v792, %v791
        %v845 = vpack.c.b16 %v794, %v793
        %v846 = vpack.c.b16 %v796, %v795
        %v847 = vpack.c.b16 %v798, %v797
        %v848 = vpack.c.b16 %v800, %v799
        %v849 = vpack.c.b16 %v802, %v801
        %v850 = vpack.c.b16 %v804, %v803
        %v851 = vpack.c.b16 %v806, %v805
        %v852 = vpack.c.b16 %v808, %v807
        %v853 = vpack.c.b16 %v810, %v809
        %v854 = vpack.c.b16 %v812, %v811
        %v855 = vpack.c.b16 %v814, %v813
        %v856 = vpack.c.b16 %v816, %v815
        %v857 = vpack.c.b16 %v818, %v817
        %v858 = vpack.c.b16 %v820, %v819
        %v859 = vpack.c.b16 %v822, %v821
        %v860 = vpack.c.b16 %v824, %v823
        %v861 = vpack.c.b16 %v826, %v825
        %v862 = vpack.c.b16 %v828, %v827
        %v863 = vpack.c.b16 %v830, %v829
        %v864 = vpack.c.b16 %v832, %v831
        %v870 = vunpack.c.l.b16 %v693
        %v871 = vunpack.c.l.b16 %v694
        %v872 = vunpack.c.l.b16 %v695
        %v873 = vunpack.c.l.b16 %v696
        %v874 = vunpack.c.l.b16 %v697
        %v875 = vpack.c.b16 %v871, %v870
        %v876 = vpack.c.b16 %v873, %v872
        %v877 = vpack.c.b16 %v874, %v874
        %vm880 = vcmask 293888
        %v882 = vsel %vm880, %v833, 0
        %v885 = vsel %vm880, %v834, 0
        %v888 = vsel %vm880, %v835, 0
        %v891 = vsel %vm880, %v836, 0
        %v894 = vsel %vm880, %v837, 0
        %v897 = vsel %vm880, %v838, 0
        %v900 = vsel %vm880, %v839, 0
        %v903 = vsel %vm880, %v840, 0
        %v906 = vsel %vm880, %v841, 0
        %v909 = vsel %vm880, %v842, 0
        %v912 = vsel %vm880, %v843, 0
        %v915 = vsel %vm880, %v844, 0
        %v918 = vsel %vm880, %v845, 0
        %v921 = vsel %vm880, %v846, 0
        %v924 = vsel %vm880, %v847, 0
        %v927 = vsel %vm880, %v848, 0
        %v930 = vsel %vm880, %v849, 0
        %v933 = vsel %vm880, %v850, 0
        %v936 = vsel %vm880, %v851, 0
        %v939 = vsel %vm880, %v852, 0
        %v942 = vsel %vm880, %v853, 0
        %v945 = vsel %vm880, %v854, 0
        %v948 = vsel %vm880, %v855, 0
        %v951 = vsel %vm880, %v856, 0
        %v954 = vsel %vm880, %v857, 0
        %v957 = vsel %vm880, %v858, 0
        %v960 = vsel %vm880, %v859, 0
        %v963 = vsel %vm880, %v860, 0
        %v966 = vsel %vm880, %v861, 0
        %v969 = vsel %vm880, %v862, 0
        %v972 = vsel %vm880, %v863, 0
        %v975 = vsel %vm880, %v864, 0
        %vm977 = vcmask 1041408
        %v979 = vsel %vm977, %v877, 0
        %981 = vmatprep.subr.bf16.mxu0 0
        %982 = vmatpush1.bf16.msra.mxu0 %v875
        %983 = vmatprep.subr.bf16.mxu0 0
        %984 = vmatpush1.bf16.msra.mxu0 %v876
        %985 = vmatprep.subr.bf16.mxu0 0
        %986 = vmatpush1.bf16.msra.mxu0 %v979
        %987 = vmatprep.subr.bf16.mxu0 0
        %988 = vmatpush1.bf16.msra.mxu0 0
        %989 = vmatprep.subr.bf16.mxu0 0
        %990 = vmatpush1.bf16.msra.mxu0 0
        %991 = vmatprep.subr.bf16.mxu0 0
        %992 = vmatpush1.bf16.msra.mxu0 0
        %993 = vmatprep.subr.bf16.mxu0 0
        %994 = vmatpush1.bf16.msra.mxu0 0
        %995 = vmatprep.subr.bf16.mxu0 0
        %996 = vmatpush1.bf16.msra.mxu0 0
        %997 = vmatprep.subr.bf16.mxu0 0
        %998 = vmatpush1.bf16.msra.mxu0 0
        %999 = vmatprep.subr.bf16.mxu0 0
        %1000 = vmatpush1.bf16.msra.mxu0 0
        %1001 = vmatprep.subr.bf16.mxu0 0
        %1002 = vmatpush1.bf16.msra.mxu0 0
        %1003 = vmatprep.subr.bf16.mxu0 0
        %1004 = vmatpush1.bf16.msra.mxu0 0
        %1005 = vmatprep.subr.bf16.mxu0 0
        %1006 = vmatpush1.bf16.msra.mxu0 0
        %1007 = vmatprep.subr.bf16.mxu0 0
        %1008 = vmatpush1.bf16.msra.mxu0 0
        %1009 = vmatprep.subr.bf16.mxu0 0
        %1010 = vmatpush1.bf16.msra.mxu0 0
        %1011 = vmatprep.subr.bf16.mxu0 0
        %1012 = vmatpush1.bf16.msra.mxu0 0
        %1013 = vmatprep.mubr.bf16.mxu0 0
        %1014 = vmatmul.mubr.bf16.gmra.mrb[0].mxu0 %v882
        %v1015 = vpop.f32.mrb[0].mxu0
        %v1016 = vadd.f32 %v703, %v1015
        %v1017 = vpop.f32.mrb[0].mxu0
        %v1018 = vpop.f32.mrb[0].mxu0
        %v1019 = vadd.f32 %v703, %v1018
        %v1020 = vpop.f32.mrb[0].mxu0
        %1021 = vmatprep.mubr.bf16.mxu0 0
        %1022 = vmatmul.mubr.bf16.gmra.mrb[0].mxu0 %v885
        %v1023 = vpop.f32.mrb[0].mxu0
        %v1024 = vadd.f32 %v703, %v1023
        %v1025 = vpop.f32.mrb[0].mxu0
        %v1026 = vpop.f32.mrb[0].mxu0
        %v1027 = vadd.f32 %v703, %v1026
        %v1028 = vpop.f32.mrb[0].mxu0
        %1029 = vmatprep.mubr.bf16.mxu0 0
        %1030 = vmatmul.mubr.bf16.gmra.mrb[0].mxu0 %v888
        %v1031 = vpop.f32.mrb[0].mxu0
        %v1032 = vadd.f32 %v703, %v1031
        %v1033 = vpop.f32.mrb[0].mxu0
        %v1034 = vpop.f32.mrb[0].mxu0
        %v1035 = vadd.f32 %v703, %v1034
        %v1036 = vpop.f32.mrb[0].mxu0
        %1037 = vmatprep.mubr.bf16.mxu0 0
        %1038 = vmatmul.mubr.bf16.gmra.mrb[0].mxu0 %v891
        %v1039 = vpop.f32.mrb[0].mxu0
        %v1040 = vadd.f32 %v703, %v1039
        %v1041 = vpop.f32.mrb[0].mxu0
        %v1042 = vpop.f32.mrb[0].mxu0
        %v1043 = vadd.f32 %v703, %v1042
        %v1044 = vpop.f32.mrb[0].mxu0
        %1045 = vmatprep.mubr.bf16.mxu0 0
        %1046 = vmatmul.mubr.bf16.gmra.mrb[0].mxu0 %v894
        %v1047 = vpop.f32.mrb[0].mxu0
        %v1048 = vadd.f32 %v703, %v1047
        %v1049 = vpop.f32.mrb[0].mxu0
        %v1050 = vpop.f32.mrb[0].mxu0
        %v1051 = vadd.f32 %v703, %v1050
        %v1052 = vpop.f32.mrb[0].mxu0
        %1053 = vmatprep.mubr.bf16.mxu0 0
        %1054 = vmatmul.mubr.bf16.gmra.mrb[0].mxu0 %v897
        %v1055 = vpop.f32.mrb[0].mxu0
        %v1056 = vadd.f32 %v703, %v1055
        %v1057 = vpop.f32.mrb[0].mxu0
        %v1058 = vpop.f32.mrb[0].mxu0
        %v1059 = vadd.f32 %v703, %v1058
        %v1060 = vpop.f32.mrb[0].mxu0
        %1061 = vmatprep.mubr.bf16.mxu0 0
        %1062 = vmatmul.mubr.bf16.gmra.mrb[0].mxu0 %v900
        %v1063 = vpop.f32.mrb[0].mxu0
        %v1064 = vadd.f32 %v703, %v1063
        %v1065 = vpop.f32.mrb[0].mxu0
        %v1066 = vpop.f32.mrb[0].mxu0
        %v1067 = vadd.f32 %v703, %v1066
        %v1068 = vpop.f32.mrb[0].mxu0
        %1069 = vmatprep.mubr.bf16.mxu0 0
        %1070 = vmatmul.mubr.bf16.gmra.mrb[0].mxu0 %v903
        %v1071 = vpop.f32.mrb[0].mxu0
        %v1072 = vadd.f32 %v703, %v1071
        %v1073 = vpop.f32.mrb[0].mxu0
        %v1074 = vpop.f32.mrb[0].mxu0
        %v1075 = vadd.f32 %v703, %v1074
        %v1076 = vpop.f32.mrb[0].mxu0
        %1077 = vmatprep.mubr.bf16.mxu0 0
        %1078 = vmatmul.mubr.bf16.gmra.mrb[0].mxu0 %v906
        %v1079 = vpop.f32.mrb[0].mxu0
        %v1080 = vadd.f32 %v703, %v1079
        %v1081 = vpop.f32.mrb[0].mxu0
        %v1082 = vpop.f32.mrb[0].mxu0
        %v1083 = vadd.f32 %v703, %v1082
        %v1084 = vpop.f32.mrb[0].mxu0
        %1085 = vmatprep.mubr.bf16.mxu0 0
        %1086 = vmatmul.mubr.bf16.gmra.mrb[0].mxu0 %v909
        %v1087 = vpop.f32.mrb[0].mxu0
        %v1088 = vadd.f32 %v703, %v1087
        %v1089 = vpop.f32.mrb[0].mxu0
        %v1090 = vpop.f32.mrb[0].mxu0
        %v1091 = vadd.f32 %v703, %v1090
        %v1092 = vpop.f32.mrb[0].mxu0
        %1093 = vmatprep.mubr.bf16.mxu0 0
        %1094 = vmatmul.mubr.bf16.gmra.mrb[0].mxu0 %v912
        %v1095 = vpop.f32.mrb[0].mxu0
        %v1096 = vadd.f32 %v703, %v1095
        %v1097 = vpop.f32.mrb[0].mxu0
        %v1098 = vpop.f32.mrb[0].mxu0
        %v1099 = vadd.f32 %v703, %v1098
        %v1100 = vpop.f32.mrb[0].mxu0
        %1101 = vmatprep.mubr.bf16.mxu0 0
        %1102 = vmatmul.mubr.bf16.gmra.mrb[0].mxu0 %v915
        %v1103 = vpop.f32.mrb[0].mxu0
        %v1104 = vadd.f32 %v703, %v1103
        %v1105 = vpop.f32.mrb[0].mxu0
        %v1106 = vpop.f32.mrb[0].mxu0
        %v1107 = vadd.f32 %v703, %v1106
        %v1108 = vpop.f32.mrb[0].mxu0
        %1109 = vmatprep.mubr.bf16.mxu0 0
        %1110 = vmatmul.mubr.bf16.gmra.mrb[0].mxu0 %v918
        %v1111 = vpop.f32.mrb[0].mxu0
        %v1112 = vadd.f32 %v703, %v1111
        %v1113 = vpop.f32.mrb[0].mxu0
        %v1114 = vpop.f32.mrb[0].mxu0
        %v1115 = vadd.f32 %v703, %v1114
        %v1116 = vpop.f32.mrb[0].mxu0
        %1117 = vmatprep.mubr.bf16.mxu0 0
        %1118 = vmatmul.mubr.bf16.gmra.mrb[0].mxu0 %v921
        %v1119 = vpop.f32.mrb[0].mxu0
        %v1120 = vadd.f32 %v703, %v1119
        %v1121 = vpop.f32.mrb[0].mxu0
        %v1122 = vpop.f32.mrb[0].mxu0
        %v1123 = vadd.f32 %v703, %v1122
        %v1124 = vpop.f32.mrb[0].mxu0
        %1125 = vmatprep.mubr.bf16.mxu0 0
        %1126 = vmatmul.mubr.bf16.gmra.mrb[0].mxu0 %v924
        %v1127 = vpop.f32.mrb[0].mxu0
        %v1128 = vadd.f32 %v703, %v1127
        %v1129 = vpop.f32.mrb[0].mxu0
        %v1130 = vpop.f32.mrb[0].mxu0
        %v1131 = vadd.f32 %v703, %v1130
        %v1132 = vpop.f32.mrb[0].mxu0
        %1133 = vmatprep.mubr.bf16.mxu0 0
        %1134 = vmatmul.mubr.bf16.gmra.mrb[0].mxu0 %v927
        %v1135 = vpop.f32.mrb[0].mxu0
        %v1136 = vadd.f32 %v703, %v1135
        %v1137 = vpop.f32.mrb[0].mxu0
        %v1138 = vpop.f32.mrb[0].mxu0
        %v1139 = vadd.f32 %v703, %v1138
        %v1140 = vpop.f32.mrb[0].mxu0
        %1141 = vmatprep.mubr.bf16.mxu0 0
        %1142 = vmatmul.mubr.bf16.gmra.mrb[0].mxu0 %v930
        %v1143 = vpop.f32.mrb[0].mxu0
        %v1144 = vadd.f32 %v703, %v1143
        %v1145 = vpop.f32.mrb[0].mxu0
        %v1146 = vpop.f32.mrb[0].mxu0
        %v1147 = vadd.f32 %v703, %v1146
        %v1148 = vpop.f32.mrb[0].mxu0
        %1149 = vmatprep.mubr.bf16.mxu0 0
        %1150 = vmatmul.mubr.bf16.gmra.mrb[0].mxu0 %v933
        %v1151 = vpop.f32.mrb[0].mxu0
        %v1152 = vadd.f32 %v703, %v1151
        %v1153 = vpop.f32.mrb[0].mxu0
        %v1154 = vpop.f32.mrb[0].mxu0
        %v1155 = vadd.f32 %v703, %v1154
        %v1156 = vpop.f32.mrb[0].mxu0
        %1157 = vmatprep.mubr.bf16.mxu0 0
        %1158 = vmatmul.mubr.bf16.gmra.mrb[0].mxu0 %v936
        %v1159 = vpop.f32.mrb[0].mxu0
        %v1160 = vadd.f32 %v703, %v1159
        %v1161 = vpop.f32.mrb[0].mxu0
        %v1162 = vpop.f32.mrb[0].mxu0
        %v1163 = vadd.f32 %v703, %v1162
        %v1164 = vpop.f32.mrb[0].mxu0
        %1165 = vmatprep.mubr.bf16.mxu0 0
        %1166 = vmatmul.mubr.bf16.gmra.mrb[0].mxu0 %v939
        %v1167 = vpop.f32.mrb[0].mxu0
        %v1168 = vadd.f32 %v703, %v1167
        %v1169 = vpop.f32.mrb[0].mxu0
        %v1170 = vpop.f32.mrb[0].mxu0
        %v1171 = vadd.f32 %v703, %v1170
        %v1172 = vpop.f32.mrb[0].mxu0
        %1173 = vmatprep.mubr.bf16.mxu0 0
        %1174 = vmatmul.mubr.bf16.gmra.mrb[0].mxu0 %v942
        %v1175 = vpop.f32.mrb[0].mxu0
        %v1176 = vadd.f32 %v703, %v1175
        %v1177 = vpop.f32.mrb[0].mxu0
        %v1178 = vpop.f32.mrb[0].mxu0
        %v1179 = vadd.f32 %v703, %v1178
        %v1180 = vpop.f32.mrb[0].mxu0
        %1181 = vmatprep.mubr.bf16.mxu0 0
        %1182 = vmatmul.mubr.bf16.gmra.mrb[0].mxu0 %v945
        %v1183 = vpop.f32.mrb[0].mxu0
        %v1184 = vadd.f32 %v703, %v1183
        %v1185 = vpop.f32.mrb[0].mxu0
        %v1186 = vpop.f32.mrb[0].mxu0
        %v1187 = vadd.f32 %v703, %v1186
        %v1188 = vpop.f32.mrb[0].mxu0
        %1189 = vmatprep.mubr.bf16.mxu0 0
        %1190 = vmatmul.mubr.bf16.gmra.mrb[0].mxu0 %v948
        %v1191 = vpop.f32.mrb[0].mxu0
        %v1192 = vadd.f32 %v703, %v1191
        %v1193 = vpop.f32.mrb[0].mxu0
        %v1194 = vpop.f32.mrb[0].mxu0
        %v1195 = vadd.f32 %v703, %v1194
        %v1196 = vpop.f32.mrb[0].mxu0
        %1197 = vmatprep.mubr.bf16.mxu0 0
        %1198 = vmatmul.mubr.bf16.gmra.mrb[0].mxu0 %v951
        %v1199 = vpop.f32.mrb[0].mxu0
        %v1200 = vadd.f32 %v703, %v1199
        %v1201 = vpop.f32.mrb[0].mxu0
        %v1202 = vpop.f32.mrb[0].mxu0
        %v1203 = vadd.f32 %v703, %v1202
        %v1204 = vpop.f32.mrb[0].mxu0
        %1205 = vmatprep.mubr.bf16.mxu0 0
        %1206 = vmatmul.mubr.bf16.gmra.mrb[0].mxu0 %v954
        %v1207 = vpop.f32.mrb[0].mxu0
        %v1208 = vadd.f32 %v703, %v1207
        %v1209 = vpop.f32.mrb[0].mxu0
        %v1210 = vpop.f32.mrb[0].mxu0
        %v1211 = vadd.f32 %v703, %v1210
        %v1212 = vpop.f32.mrb[0].mxu0
        %1213 = vmatprep.mubr.bf16.mxu0 0
        %1214 = vmatmul.mubr.bf16.gmra.mrb[0].mxu0 %v957
        %v1215 = vpop.f32.mrb[0].mxu0
        %v1216 = vadd.f32 %v703, %v1215
        %v1217 = vpop.f32.mrb[0].mxu0
        %v1218 = vpop.f32.mrb[0].mxu0
        %v1219 = vadd.f32 %v703, %v1218
        %v1220 = vpop.f32.mrb[0].mxu0
        %1221 = vmatprep.mubr.bf16.mxu0 0
        %1222 = vmatmul.mubr.bf16.gmra.mrb[0].mxu0 %v960
        %v1223 = vpop.f32.mrb[0].mxu0
        %v1224 = vadd.f32 %v703, %v1223
        %v1225 = vpop.f32.mrb[0].mxu0
        %v1226 = vpop.f32.mrb[0].mxu0
        %v1227 = vadd.f32 %v703, %v1226
        %v1228 = vpop.f32.mrb[0].mxu0
        %1229 = vmatprep.mubr.bf16.mxu0 0
        %1230 = vmatmul.mubr.bf16.gmra.mrb[0].mxu0 %v963
        %v1231 = vpop.f32.mrb[0].mxu0
        %v1232 = vadd.f32 %v703, %v1231
        %v1233 = vpop.f32.mrb[0].mxu0
        %v1234 = vpop.f32.mrb[0].mxu0
        %v1235 = vadd.f32 %v703, %v1234
        %v1236 = vpop.f32.mrb[0].mxu0
        %1237 = vmatprep.mubr.bf16.mxu0 0
        %1238 = vmatmul.mubr.bf16.gmra.mrb[0].mxu0 %v966
        %v1239 = vpop.f32.mrb[0].mxu0
        %v1240 = vadd.f32 %v703, %v1239
        %v1241 = vpop.f32.mrb[0].mxu0
        %v1242 = vpop.f32.mrb[0].mxu0
        %v1243 = vadd.f32 %v703, %v1242
        %v1244 = vpop.f32.mrb[0].mxu0
        %1245 = vmatprep.mubr.bf16.mxu0 0
        %1246 = vmatmul.mubr.bf16.gmra.mrb[0].mxu0 %v969
        %v1247 = vpop.f32.mrb[0].mxu0
        %v1248 = vadd.f32 %v703, %v1247
        %v1249 = vpop.f32.mrb[0].mxu0
        %v1250 = vpop.f32.mrb[0].mxu0
        %v1251 = vadd.f32 %v703, %v1250
        %v1252 = vpop.f32.mrb[0].mxu0
        %1253 = vmatprep.mubr.bf16.mxu0 0
        %1254 = vmatmul.mubr.bf16.gmra.mrb[0].mxu0 %v972
        %v1255 = vpop.f32.mrb[0].mxu0
        %v1256 = vadd.f32 %v703, %v1255
        %v1257 = vpop.f32.mrb[0].mxu0
        %v1258 = vpop.f32.mrb[0].mxu0
        %v1259 = vadd.f32 %v703, %v1258
        %v1260 = vpop.f32.mrb[0].mxu0
        %1261 = vmatprep.mubr.bf16.mxu0 0
        %1262 = vmatmul.mubr.bf16.gmra.mrb[0].mxu0 %v975
        %v1263 = vpop.f32.mrb[0].mxu0
        %v1264 = vadd.f32 %v703, %v1263
        %v1265 = vpop.f32.mrb[0].mxu0
        %v1266 = vpop.f32.mrb[0].mxu0
        %v1267 = vadd.f32 %v703, %v1266
        %v1268 = vpop.f32.mrb[0].mxu0
        %1269 = vdwg.mxu0
        %v1270 = vmax.f32 %v1016, 0.0
        %v1271 = vmax.f32 %v1019, 0.0
        %v1272 = vmax.f32 %v1024, 0.0
        %v1273 = vmax.f32 %v1027, 0.0
        %v1274 = vmax.f32 %v1032, 0.0
        %v1275 = vmax.f32 %v1035, 0.0
        %v1276 = vmax.f32 %v1040, 0.0
        %v1277 = vmax.f32 %v1043, 0.0
        %v1278 = vmax.f32 %v1048, 0.0
        %v1279 = vmax.f32 %v1051, 0.0
        %v1280 = vmax.f32 %v1056, 0.0
        %v1281 = vmax.f32 %v1059, 0.0
        %v1282 = vmax.f32 %v1064, 0.0
        %v1283 = vmax.f32 %v1067, 0.0
        %v1284 = vmax.f32 %v1072, 0.0
        %v1285 = vmax.f32 %v1075, 0.0
        %v1286 = vmax.f32 %v1080, 0.0
        %v1287 = vmax.f32 %v1083, 0.0
        %v1288 = vmax.f32 %v1088, 0.0
        %v1289 = vmax.f32 %v1091, 0.0
        %v1290 = vmax.f32 %v1096, 0.0
        %v1291 = vmax.f32 %v1099, 0.0
        %v1292 = vmax.f32 %v1104, 0.0
        %v1293 = vmax.f32 %v1107, 0.0
        %v1294 = vmax.f32 %v1112, 0.0
        %v1295 = vmax.f32 %v1115, 0.0
        %v1296 = vmax.f32 %v1120, 0.0
        %v1297 = vmax.f32 %v1123, 0.0
        %v1298 = vmax.f32 %v1128, 0.0
        %v1299 = vmax.f32 %v1131, 0.0
        %v1300 = vmax.f32 %v1136, 0.0
        %v1301 = vmax.f32 %v1139, 0.0
        %v1302 = vmax.f32 %v1144, 0.0
        %v1303 = vmax.f32 %v1147, 0.0
        %v1304 = vmax.f32 %v1152, 0.0
        %v1305 = vmax.f32 %v1155, 0.0
        %v1306 = vmax.f32 %v1160, 0.0
        %v1307 = vmax.f32 %v1163, 0.0
        %v1308 = vmax.f32 %v1168, 0.0
        %v1309 = vmax.f32 %v1171, 0.0
        %v1310 = vmax.f32 %v1176, 0.0
        %v1311 = vmax.f32 %v1179, 0.0
        %v1312 = vmax.f32 %v1184, 0.0
        %v1313 = vmax.f32 %v1187, 0.0
        %v1314 = vmax.f32 %v1192, 0.0
        %v1315 = vmax.f32 %v1195, 0.0
        %v1316 = vmax.f32 %v1200, 0.0
        %v1317 = vmax.f32 %v1203, 0.0
        %v1318 = vmax.f32 %v1208, 0.0
        %v1319 = vmax.f32 %v1211, 0.0
        %v1320 = vmax.f32 %v1216, 0.0
        %v1321 = vmax.f32 %v1219, 0.0
        %v1322 = vmax.f32 %v1224, 0.0
        %v1323 = vmax.f32 %v1227, 0.0
        %v1324 = vmax.f32 %v1232, 0.0
        %v1325 = vmax.f32 %v1235, 0.0
        %v1326 = vmax.f32 %v1240, 0.0
        %v1327 = vmax.f32 %v1243, 0.0
        %v1328 = vmax.f32 %v1248, 0.0
        %v1329 = vmax.f32 %v1251, 0.0
        %v1330 = vmax.f32 %v1256, 0.0
        %v1331 = vmax.f32 %v1259, 0.0
        %v1332 = vmax.f32 %v1264, 0.0
        %v1333 = vmax.f32 %v1267, 0.0
        %vm1366 = vcmask 1040384
        %v1367 = vrot.slane %v1302, 7
        %v1368 = vrot.slane %v1303, 7
        %v1369 = vsel %vm1366, %v1367, %v1368
        %v1370 = vrot.slane %v1304, 7
        %v1371 = vsel %vm1366, %v1368, %v1370
        %v1372 = vrot.slane %v1305, 7
        %v1373 = vsel %vm1366, %v1370, %v1372
        %v1374 = vrot.slane %v1306, 7
        %v1375 = vsel %vm1366, %v1372, %v1374
        %v1376 = vrot.slane %v1307, 7
        %v1377 = vsel %vm1366, %v1374, %v1376
        %v1378 = vrot.slane %v1308, 7
        %v1379 = vsel %vm1366, %v1376, %v1378
        %v1380 = vrot.slane %v1309, 7
        %v1381 = vsel %vm1366, %v1378, %v1380
        %v1382 = vrot.slane %v1310, 7
        %v1383 = vsel %vm1366, %v1380, %v1382
        %v1384 = vrot.slane %v1311, 7
        %v1385 = vsel %vm1366, %v1382, %v1384
        %v1386 = vrot.slane %v1312, 7
        %v1387 = vsel %vm1366, %v1384, %v1386
        %v1388 = vrot.slane %v1313, 7
        %v1389 = vsel %vm1366, %v1386, %v1388
        %v1390 = vrot.slane %v1314, 7
        %v1391 = vsel %vm1366, %v1388, %v1390
        %v1392 = vrot.slane %v1315, 7
        %v1393 = vsel %vm1366, %v1390, %v1392
        %v1394 = vrot.slane %v1316, 7
        %v1395 = vsel %vm1366, %v1392, %v1394
        %v1396 = vrot.slane %v1317, 7
        %v1397 = vsel %vm1366, %v1394, %v1396
        %v1398 = vrot.slane %v1318, 7
        %v1399 = vsel %vm1366, %v1396, %v1398
        %v1400 = vrot.slane %v1319, 7
        %v1401 = vsel %vm1366, %v1398, %v1400
        %v1402 = vrot.slane %v1320, 7
        %v1403 = vsel %vm1366, %v1400, %v1402
        %v1404 = vrot.slane %v1321, 7
        %v1405 = vsel %vm1366, %v1402, %v1404
        %v1406 = vrot.slane %v1322, 7
        %v1407 = vsel %vm1366, %v1404, %v1406
        %v1408 = vrot.slane %v1323, 7
        %v1409 = vsel %vm1366, %v1406, %v1408
        %v1410 = vrot.slane %v1324, 7
        %v1411 = vsel %vm1366, %v1408, %v1410
        %v1412 = vrot.slane %v1325, 7
        %v1413 = vsel %vm1366, %v1410, %v1412
        %v1414 = vrot.slane %v1326, 7
        %v1415 = vsel %vm1366, %v1412, %v1414
        %v1416 = vrot.slane %v1327, 7
        %v1417 = vsel %vm1366, %v1414, %v1416
        %v1418 = vrot.slane %v1328, 7
        %v1419 = vsel %vm1366, %v1416, %v1418
        %v1420 = vrot.slane %v1329, 7
        %v1421 = vsel %vm1366, %v1418, %v1420
        %v1422 = vrot.slane %v1330, 7
        %v1423 = vsel %vm1366, %v1420, %v1422
        %v1424 = vrot.slane %v1331, 7
        %v1425 = vsel %vm1366, %v1422, %v1424
        %v1426 = vrot.slane %v1332, 7
        %v1427 = vsel %vm1366, %v1424, %v1426
        %v1428 = vrot.slane %v1333, 7
        %v1429 = vsel %vm1366, %v1426, %v1428
        %v1462 = vsel %vm1366, 0.0, %v1367
        %v1463 = vlaneseq
        %v1464 = vshrl.u32 %v1463, 7
        %v1465 = vadd.s32 %v1464, 8
        %v1466 = vadd.s32 %v1464, 16
        %v1467 = vadd.s32 %v1464, 24
        %v1468 = vadd.s32 %v1464, 32
        %v1469 = vadd.s32 %v1464, 40
        %v1470 = vadd.s32 %v1464, 48
        %v1471 = vadd.s32 %v1464, 56
        %v1472 = vadd.s32 %v1464, 64
        %v1473 = vadd.s32 %v1464, 72
        %v1474 = vadd.s32 %v1464, 80
        %v1475 = vadd.s32 %v1464, 88
        %v1476 = vadd.s32 %v1464, 96
        %v1477 = vadd.s32 %v1464, 104
        %v1478 = vadd.s32 %v1464, 112
        %v1479 = vadd.s32 %v1464, 120
        %v1480 = vadd.s32 %v1464, 128
        %v1481 = vadd.s32 %v1464, 136
        %v1482 = vadd.s32 %v1464, 144
        %v1483 = vadd.s32 %v1464, 152
        %v1484 = vadd.s32 %v1464, 160
        %v1485 = vadd.s32 %v1464, 168
        %v1486 = vadd.s32 %v1464, 176
        %v1487 = vadd.s32 %v1464, 184
        %v1488 = vadd.s32 %v1464, 192
        %v1489 = vadd.s32 %v1464, 200
        %v1490 = vadd.s32 %v1464, 208
        %v1491 = vadd.s32 %v1464, 216
        %v1492 = vadd.s32 %v1464, 224
        %v1493 = vadd.s32 %v1464, 232
        %v1494 = vadd.s32 %v1464, 240
        %v1495 = vadd.s32 %v1464, 248
        %vm1496 = vcmp.lt.s32.totalorder %v1464, 0
        %v1497 = vsub.s32 0, %v1464
        %v1498 = vsel %vm1496, %v1497, %v1464
        %v1499 = vshrl.u32 %v1498, 3
        %v1500 = vand.u32 %v1498, 7
        %v1501 = vsub.s32 0, %v1500
        %v1502 = vsel %vm1496, %v1501, %v1500
        %vm1503 = vcmp.lt.s32.totalorder %v1465, 0
        %v1504 = vsub.s32 0, %v1465
        %v1505 = vsel %vm1503, %v1504, %v1465
        %v1506 = vshrl.u32 %v1505, 3
        %v1507 = vand.u32 %v1505, 7
        %v1508 = vsub.s32 0, %v1507
        %v1509 = vsel %vm1503, %v1508, %v1507
        %vm1510 = vcmp.lt.s32.totalorder %v1466, 0
        %v1511 = vsub.s32 0, %v1466
        %v1512 = vsel %vm1510, %v1511, %v1466
        %v1513 = vshrl.u32 %v1512, 3
        %v1514 = vand.u32 %v1512, 7
        %v1515 = vsub.s32 0, %v1514
        %v1516 = vsel %vm1510, %v1515, %v1514
        %vm1517 = vcmp.lt.s32.totalorder %v1467, 0
        %v1518 = vsub.s32 0, %v1467
        %v1519 = vsel %vm1517, %v1518, %v1467
        %v1520 = vshrl.u32 %v1519, 3
        %v1521 = vand.u32 %v1519, 7
        %v1522 = vsub.s32 0, %v1521
        %v1523 = vsel %vm1517, %v1522, %v1521
        %vm1524 = vcmp.lt.s32.totalorder %v1468, 0
        %v1525 = vsub.s32 0, %v1468
        %v1526 = vsel %vm1524, %v1525, %v1468
        %v1527 = vshrl.u32 %v1526, 3
        %v1528 = vand.u32 %v1526, 7
        %v1529 = vsub.s32 0, %v1528
        %v1530 = vsel %vm1524, %v1529, %v1528
        %vm1531 = vcmp.lt.s32.totalorder %v1469, 0
        %v1532 = vsub.s32 0, %v1469
        %v1533 = vsel %vm1531, %v1532, %v1469
        %v1534 = vshrl.u32 %v1533, 3
        %v1535 = vand.u32 %v1533, 7
        %v1536 = vsub.s32 0, %v1535
        %v1537 = vsel %vm1531, %v1536, %v1535
        %vm1538 = vcmp.lt.s32.totalorder %v1470, 0
        %v1539 = vsub.s32 0, %v1470
        %v1540 = vsel %vm1538, %v1539, %v1470
        %v1541 = vshrl.u32 %v1540, 3
        %v1542 = vand.u32 %v1540, 7
        %v1543 = vsub.s32 0, %v1542
        %v1544 = vsel %vm1538, %v1543, %v1542
        %vm1545 = vcmp.lt.s32.totalorder %v1471, 0
        %v1546 = vsub.s32 0, %v1471
        %v1547 = vsel %vm1545, %v1546, %v1471
        %v1548 = vshrl.u32 %v1547, 3
        %v1549 = vand.u32 %v1547, 7
        %v1550 = vsub.s32 0, %v1549
        %v1551 = vsel %vm1545, %v1550, %v1549
        %vm1552 = vcmp.lt.s32.totalorder %v1472, 0
        %v1553 = vsub.s32 0, %v1472
        %v1554 = vsel %vm1552, %v1553, %v1472
        %v1555 = vshrl.u32 %v1554, 3
        %v1556 = vand.u32 %v1554, 7
        %v1557 = vsub.s32 0, %v1556
        %v1558 = vsel %vm1552, %v1557, %v1556
        %vm1559 = vcmp.lt.s32.totalorder %v1473, 0
        %v1560 = vsub.s32 0, %v1473
        %v1561 = vsel %vm1559, %v1560, %v1473
        %v1562 = vshrl.u32 %v1561, 3
        %v1563 = vand.u32 %v1561, 7
        %v1564 = vsub.s32 0, %v1563
        %v1565 = vsel %vm1559, %v1564, %v1563
        %vm1566 = vcmp.lt.s32.totalorder %v1474, 0
        %v1567 = vsub.s32 0, %v1474
        %v1568 = vsel %vm1566, %v1567, %v1474
        %v1569 = vshrl.u32 %v1568, 3
        %v1570 = vand.u32 %v1568, 7
        %v1571 = vsub.s32 0, %v1570
        %v1572 = vsel %vm1566, %v1571, %v1570
        %vm1573 = vcmp.lt.s32.totalorder %v1475, 0
        %v1574 = vsub.s32 0, %v1475
        %v1575 = vsel %vm1573, %v1574, %v1475
        %v1576 = vshrl.u32 %v1575, 3
        %v1577 = vand.u32 %v1575, 7
        %v1578 = vsub.s32 0, %v1577
        %v1579 = vsel %vm1573, %v1578, %v1577
        %vm1580 = vcmp.lt.s32.totalorder %v1476, 0
        %v1581 = vsub.s32 0, %v1476
        %v1582 = vsel %vm1580, %v1581, %v1476
        %v1583 = vshrl.u32 %v1582, 3
        %v1584 = vand.u32 %v1582, 7
        %v1585 = vsub.s32 0, %v1584
        %v1586 = vsel %vm1580, %v1585, %v1584
        %vm1587 = vcmp.lt.s32.totalorder %v1477, 0
        %v1588 = vsub.s32 0, %v1477
        %v1589 = vsel %vm1587, %v1588, %v1477
        %v1590 = vshrl.u32 %v1589, 3
        %v1591 = vand.u32 %v1589, 7
        %v1592 = vsub.s32 0, %v1591
        %v1593 = vsel %vm1587, %v1592, %v1591
        %vm1594 = vcmp.lt.s32.totalorder %v1478, 0
        %v1595 = vsub.s32 0, %v1478
        %v1596 = vsel %vm1594, %v1595, %v1478
        %v1597 = vshrl.u32 %v1596, 3
        %v1598 = vand.u32 %v1596, 7
        %v1599 = vsub.s32 0, %v1598
        %v1600 = vsel %vm1594, %v1599, %v1598
        %vm1601 = vcmp.lt.s32.totalorder %v1479, 0
        %v1602 = vsub.s32 0, %v1479
        %v1603 = vsel %vm1601, %v1602, %v1479
        %v1604 = vshrl.u32 %v1603, 3
        %v1605 = vand.u32 %v1603, 7
        %v1606 = vsub.s32 0, %v1605
        %v1607 = vsel %vm1601, %v1606, %v1605
        %vm1608 = vcmp.lt.s32.totalorder %v1480, 0
        %v1609 = vsub.s32 0, %v1480
        %v1610 = vsel %vm1608, %v1609, %v1480
        %v1611 = vshrl.u32 %v1610, 3
        %v1612 = vand.u32 %v1610, 7
        %v1613 = vsub.s32 0, %v1612
        %v1614 = vsel %vm1608, %v1613, %v1612
        %vm1615 = vcmp.lt.s32.totalorder %v1481, 0
        %v1616 = vsub.s32 0, %v1481
        %v1617 = vsel %vm1615, %v1616, %v1481
        %v1618 = vshrl.u32 %v1617, 3
        %v1619 = vand.u32 %v1617, 7
        %v1620 = vsub.s32 0, %v1619
        %v1621 = vsel %vm1615, %v1620, %v1619
        %vm1622 = vcmp.lt.s32.totalorder %v1482, 0
        %v1623 = vsub.s32 0, %v1482
        %v1624 = vsel %vm1622, %v1623, %v1482
        %v1625 = vshrl.u32 %v1624, 3
        %v1626 = vand.u32 %v1624, 7
        %v1627 = vsub.s32 0, %v1626
        %v1628 = vsel %vm1622, %v1627, %v1626
        %vm1629 = vcmp.lt.s32.totalorder %v1483, 0
        %v1630 = vsub.s32 0, %v1483
        %v1631 = vsel %vm1629, %v1630, %v1483
        %v1632 = vshrl.u32 %v1631, 3
        %v1633 = vand.u32 %v1631, 7
        %v1634 = vsub.s32 0, %v1633
        %v1635 = vsel %vm1629, %v1634, %v1633
        %vm1636 = vcmp.lt.s32.totalorder %v1484, 0
        %v1637 = vsub.s32 0, %v1484
        %v1638 = vsel %vm1636, %v1637, %v1484
        %v1639 = vshrl.u32 %v1638, 3
        %v1640 = vand.u32 %v1638, 7
        %v1641 = vsub.s32 0, %v1640
        %v1642 = vsel %vm1636, %v1641, %v1640
        %vm1643 = vcmp.lt.s32.totalorder %v1485, 0
        %v1644 = vsub.s32 0, %v1485
        %v1645 = vsel %vm1643, %v1644, %v1485
        %v1646 = vshrl.u32 %v1645, 3
        %v1647 = vand.u32 %v1645, 7
        %v1648 = vsub.s32 0, %v1647
        %v1649 = vsel %vm1643, %v1648, %v1647
        %vm1650 = vcmp.lt.s32.totalorder %v1486, 0
        %v1651 = vsub.s32 0, %v1486
        %v1652 = vsel %vm1650, %v1651, %v1486
        %v1653 = vshrl.u32 %v1652, 3
        %v1654 = vand.u32 %v1652, 7
        %v1655 = vsub.s32 0, %v1654
        %v1656 = vsel %vm1650, %v1655, %v1654
        %vm1657 = vcmp.lt.s32.totalorder %v1487, 0
        %v1658 = vsub.s32 0, %v1487
        %v1659 = vsel %vm1657, %v1658, %v1487
        %v1660 = vshrl.u32 %v1659, 3
        %v1661 = vand.u32 %v1659, 7
        %v1662 = vsub.s32 0, %v1661
        %v1663 = vsel %vm1657, %v1662, %v1661
        %vm1664 = vcmp.lt.s32.totalorder %v1488, 0
        %v1665 = vsub.s32 0, %v1488
        %v1666 = vsel %vm1664, %v1665, %v1488
        %v1667 = vshrl.u32 %v1666, 3
        %v1668 = vand.u32 %v1666, 7
        %v1669 = vsub.s32 0, %v1668
        %v1670 = vsel %vm1664, %v1669, %v1668
        %vm1671 = vcmp.lt.s32.totalorder %v1489, 0
        %v1672 = vsub.s32 0, %v1489
        %v1673 = vsel %vm1671, %v1672, %v1489
        %v1674 = vshrl.u32 %v1673, 3
        %v1675 = vand.u32 %v1673, 7
        %v1676 = vsub.s32 0, %v1675
        %v1677 = vsel %vm1671, %v1676, %v1675
        %vm1678 = vcmp.lt.s32.totalorder %v1490, 0
        %v1679 = vsub.s32 0, %v1490
        %v1680 = vsel %vm1678, %v1679, %v1490
        %v1681 = vshrl.u32 %v1680, 3
        %v1682 = vand.u32 %v1680, 7
        %v1683 = vsub.s32 0, %v1682
        %v1684 = vsel %vm1678, %v1683, %v1682
        %vm1685 = vcmp.lt.s32.totalorder %v1491, 0
        %v1686 = vsub.s32 0, %v1491
        %v1687 = vsel %vm1685, %v1686, %v1491
        %v1688 = vshrl.u32 %v1687, 3
        %v1689 = vand.u32 %v1687, 7
        %v1690 = vsub.s32 0, %v1689
        %v1691 = vsel %vm1685, %v1690, %v1689
        %vm1692 = vcmp.lt.s32.totalorder %v1492, 0
        %v1693 = vsub.s32 0, %v1492
        %v1694 = vsel %vm1692, %v1693, %v1492
        %v1695 = vshrl.u32 %v1694, 3
        %v1696 = vand.u32 %v1694, 7
        %v1697 = vsub.s32 0, %v1696
        %v1698 = vsel %vm1692, %v1697, %v1696
        %vm1699 = vcmp.lt.s32.totalorder %v1493, 0
        %v1700 = vsub.s32 0, %v1493
        %v1701 = vsel %vm1699, %v1700, %v1493
        %v1702 = vshrl.u32 %v1701, 3
        %v1703 = vand.u32 %v1701, 7
        %v1704 = vsub.s32 0, %v1703
        %v1705 = vsel %vm1699, %v1704, %v1703
        %vm1706 = vcmp.lt.s32.totalorder %v1494, 0
        %v1707 = vsub.s32 0, %v1494
        %v1708 = vsel %vm1706, %v1707, %v1494
        %v1709 = vshrl.u32 %v1708, 3
        %v1710 = vand.u32 %v1708, 7
        %v1711 = vsub.s32 0, %v1710
        %v1712 = vsel %vm1706, %v1711, %v1710
        %vm1713 = vcmp.lt.s32.totalorder %v1495, 0
        %v1714 = vsub.s32 0, %v1495
        %v1715 = vsel %vm1713, %v1714, %v1495
        %v1716 = vshrl.u32 %v1715, 3
        %v1717 = vand.u32 %v1715, 7
        %v1718 = vsub.s32 0, %v1717
        %v1719 = vsel %vm1713, %v1718, %v1717
        %vm1720 = vcmp.ne.s32.totalorder %v1502, 0
        %vm1721 = vcmp.ne.s32.totalorder %v1509, 0
        %vm1722 = vcmp.ne.s32.totalorder %v1516, 0
        %vm1723 = vcmp.ne.s32.totalorder %v1523, 0
        %vm1724 = vcmp.ne.s32.totalorder %v1530, 0
        %vm1725 = vcmp.ne.s32.totalorder %v1537, 0
        %vm1726 = vcmp.ne.s32.totalorder %v1544, 0
        %vm1727 = vcmp.ne.s32.totalorder %v1551, 0
        %vm1728 = vcmp.ne.s32.totalorder %v1558, 0
        %vm1729 = vcmp.ne.s32.totalorder %v1565, 0
        %vm1730 = vcmp.ne.s32.totalorder %v1572, 0
        %vm1731 = vcmp.ne.s32.totalorder %v1579, 0
        %vm1732 = vcmp.ne.s32.totalorder %v1586, 0
        %vm1733 = vcmp.ne.s32.totalorder %v1593, 0
        %vm1734 = vcmp.ne.s32.totalorder %v1600, 0
        %vm1735 = vcmp.ne.s32.totalorder %v1607, 0
        %vm1736 = vcmp.ne.s32.totalorder %v1614, 0
        %vm1737 = vcmp.ne.s32.totalorder %v1621, 0
        %vm1738 = vcmp.ne.s32.totalorder %v1628, 0
        %vm1739 = vcmp.ne.s32.totalorder %v1635, 0
        %vm1740 = vcmp.ne.s32.totalorder %v1642, 0
        %vm1741 = vcmp.ne.s32.totalorder %v1649, 0
        %vm1742 = vcmp.ne.s32.totalorder %v1656, 0
        %vm1743 = vcmp.ne.s32.totalorder %v1663, 0
        %vm1744 = vcmp.ne.s32.totalorder %v1670, 0
        %vm1745 = vcmp.ne.s32.totalorder %v1677, 0
        %vm1746 = vcmp.ne.s32.totalorder %v1684, 0
        %vm1747 = vcmp.ne.s32.totalorder %v1691, 0
        %vm1748 = vcmp.ne.s32.totalorder %v1698, 0
        %vm1749 = vcmp.ne.s32.totalorder %v1705, 0
        %vm1750 = vcmp.ne.s32.totalorder %v1712, 0
        %vm1751 = vcmp.ne.s32.totalorder %v1719, 0
        %vm1752 = vcmp.lt.s32.totalorder %v1502, 0
        %vm1753 = vcmp.lt.s32.totalorder %v1509, 0
        %vm1754 = vcmp.lt.s32.totalorder %v1516, 0
        %vm1755 = vcmp.lt.s32.totalorder %v1523, 0
        %vm1756 = vcmp.lt.s32.totalorder %v1530, 0
        %vm1757 = vcmp.lt.s32.totalorder %v1537, 0
        %vm1758 = vcmp.lt.s32.totalorder %v1544, 0
        %vm1759 = vcmp.lt.s32.totalorder %v1551, 0
        %vm1760 = vcmp.lt.s32.totalorder %v1558, 0
        %vm1761 = vcmp.lt.s32.totalorder %v1565, 0
        %vm1762 = vcmp.lt.s32.totalorder %v1572, 0
        %vm1763 = vcmp.lt.s32.totalorder %v1579, 0
        %vm1764 = vcmp.lt.s32.totalorder %v1586, 0
        %vm1765 = vcmp.lt.s32.totalorder %v1593, 0
        %vm1766 = vcmp.lt.s32.totalorder %v1600, 0
        %vm1767 = vcmp.lt.s32.totalorder %v1607, 0
        %vm1768 = vcmp.lt.s32.totalorder %v1614, 0
        %vm1769 = vcmp.lt.s32.totalorder %v1621, 0
        %vm1770 = vcmp.lt.s32.totalorder %v1628, 0
        %vm1771 = vcmp.lt.s32.totalorder %v1635, 0
        %vm1772 = vcmp.lt.s32.totalorder %v1642, 0
        %vm1773 = vcmp.lt.s32.totalorder %v1649, 0
        %vm1774 = vcmp.lt.s32.totalorder %v1656, 0
        %vm1775 = vcmp.lt.s32.totalorder %v1663, 0
        %vm1776 = vcmp.lt.s32.totalorder %v1670, 0
        %vm1777 = vcmp.lt.s32.totalorder %v1677, 0
        %vm1778 = vcmp.lt.s32.totalorder %v1684, 0
        %vm1779 = vcmp.lt.s32.totalorder %v1691, 0
        %vm1780 = vcmp.lt.s32.totalorder %v1698, 0
        %vm1781 = vcmp.lt.s32.totalorder %v1705, 0
        %vm1782 = vcmp.lt.s32.totalorder %v1712, 0
        %vm1783 = vcmp.lt.s32.totalorder %v1719, 0
        %vm1784 = vmand %vm1752, %vm1720
        %vm1785 = vmand %vm1753, %vm1721
        %vm1786 = vmand %vm1754, %vm1722
        %vm1787 = vmand %vm1755, %vm1723
        %vm1788 = vmand %vm1756, %vm1724
        %vm1789 = vmand %vm1757, %vm1725
        %vm1790 = vmand %vm1758, %vm1726
        %vm1791 = vmand %vm1759, %vm1727
        %vm1792 = vmand %vm1760, %vm1728
        %vm1793 = vmand %vm1761, %vm1729
        %vm1794 = vmand %vm1762, %vm1730
        %vm1795 = vmand %vm1763, %vm1731
        %vm1796 = vmand %vm1764, %vm1732
        %vm1797 = vmand %vm1765, %vm1733
        %vm1798 = vmand %vm1766, %vm1734
        %vm1799 = vmand %vm1767, %vm1735
        %vm1800 = vmand %vm1768, %vm1736
        %vm1801 = vmand %vm1769, %vm1737
        %vm1802 = vmand %vm1770, %vm1738
        %vm1803 = vmand %vm1771, %vm1739
        %vm1804 = vmand %vm1772, %vm1740
        %vm1805 = vmand %vm1773, %vm1741
        %vm1806 = vmand %vm1774, %vm1742
        %vm1807 = vmand %vm1775, %vm1743
        %vm1808 = vmand %vm1776, %vm1744
        %vm1809 = vmand %vm1777, %vm1745
        %vm1810 = vmand %vm1778, %vm1746
        %vm1811 = vmand %vm1779, %vm1747
        %vm1812 = vmand %vm1780, %vm1748
        %vm1813 = vmand %vm1781, %vm1749
        %vm1814 = vmand %vm1782, %vm1750
        %vm1815 = vmand %vm1783, %vm1751
        %v1816 = vadd.s32 %v1502, 8
        %v1817 = vadd.s32 %v1509, 8
        %v1818 = vadd.s32 %v1516, 8
        %v1819 = vadd.s32 %v1523, 8
        %v1820 = vadd.s32 %v1530, 8
        %v1821 = vadd.s32 %v1537, 8
        %v1822 = vadd.s32 %v1544, 8
        %v1823 = vadd.s32 %v1551, 8
        %v1824 = vadd.s32 %v1558, 8
        %v1825 = vadd.s32 %v1565, 8
        %v1826 = vadd.s32 %v1572, 8
        %v1827 = vadd.s32 %v1579, 8
        %v1828 = vadd.s32 %v1586, 8
        %v1829 = vadd.s32 %v1593, 8
        %v1830 = vadd.s32 %v1600, 8
        %v1831 = vadd.s32 %v1607, 8
        %v1832 = vadd.s32 %v1614, 8
        %v1833 = vadd.s32 %v1621, 8
        %v1834 = vadd.s32 %v1628, 8
        %v1835 = vadd.s32 %v1635, 8
        %v1836 = vadd.s32 %v1642, 8
        %v1837 = vadd.s32 %v1649, 8
        %v1838 = vadd.s32 %v1656, 8
        %v1839 = vadd.s32 %v1663, 8
        %v1840 = vadd.s32 %v1670, 8
        %v1841 = vadd.s32 %v1677, 8
        %v1842 = vadd.s32 %v1684, 8
        %v1843 = vadd.s32 %v1691, 8
        %v1844 = vadd.s32 %v1698, 8
        %v1845 = vadd.s32 %v1705, 8
        %v1846 = vadd.s32 %v1712, 8
        %v1847 = vadd.s32 %v1719, 8
        %v1848 = vsel %vm1784, %v1816, %v1502
        %v1849 = vsel %vm1785, %v1817, %v1509
        %v1850 = vsel %vm1786, %v1818, %v1516
        %v1851 = vsel %vm1787, %v1819, %v1523
        %v1852 = vsel %vm1788, %v1820, %v1530
        %v1853 = vsel %vm1789, %v1821, %v1537
        %v1854 = vsel %vm1790, %v1822, %v1544
        %v1855 = vsel %vm1791, %v1823, %v1551
        %v1856 = vsel %vm1792, %v1824, %v1558
        %v1857 = vsel %vm1793, %v1825, %v1565
        %v1858 = vsel %vm1794, %v1826, %v1572
        %v1859 = vsel %vm1795, %v1827, %v1579
        %v1860 = vsel %vm1796, %v1828, %v1586
        %v1861 = vsel %vm1797, %v1829, %v1593
        %v1862 = vsel %vm1798, %v1830, %v1600
        %v1863 = vsel %vm1799, %v1831, %v1607
        %v1864 = vsel %vm1800, %v1832, %v1614
        %v1865 = vsel %vm1801, %v1833, %v1621
        %v1866 = vsel %vm1802, %v1834, %v1628
        %v1867 = vsel %vm1803, %v1835, %v1635
        %v1868 = vsel %vm1804, %v1836, %v1642
        %v1869 = vsel %vm1805, %v1837, %v1649
        %v1870 = vsel %vm1806, %v1838, %v1656
        %v1871 = vsel %vm1807, %v1839, %v1663
        %v1872 = vsel %vm1808, %v1840, %v1670
        %v1873 = vsel %vm1809, %v1841, %v1677
        %v1874 = vsel %vm1810, %v1842, %v1684
        %v1875 = vsel %vm1811, %v1843, %v1691
        %v1876 = vsel %vm1812, %v1844, %v1698
        %v1877 = vsel %vm1813, %v1845, %v1705
        %v1878 = vsel %vm1814, %v1846, %v1712
        %v1879 = vsel %vm1815, %v1847, %v1719
        %vm1880 = vcmp.eq.s32.totalorder %v1848, 0
        %vm1881 = vcmp.eq.s32.totalorder %v1849, 0
        %vm1882 = vcmp.eq.s32.totalorder %v1850, 0
        %vm1883 = vcmp.eq.s32.totalorder %v1851, 0
        %vm1884 = vcmp.eq.s32.totalorder %v1852, 0
        %vm1885 = vcmp.eq.s32.totalorder %v1853, 0
        %vm1886 = vcmp.eq.s32.totalorder %v1854, 0
        %vm1887 = vcmp.eq.s32.totalorder %v1855, 0
        %vm1888 = vcmp.eq.s32.totalorder %v1856, 0
        %vm1889 = vcmp.eq.s32.totalorder %v1857, 0
        %vm1890 = vcmp.eq.s32.totalorder %v1858, 0
        %vm1891 = vcmp.eq.s32.totalorder %v1859, 0
        %vm1892 = vcmp.eq.s32.totalorder %v1860, 0
        %vm1893 = vcmp.eq.s32.totalorder %v1861, 0
        %vm1894 = vcmp.eq.s32.totalorder %v1862, 0
        %vm1895 = vcmp.eq.s32.totalorder %v1863, 0
        %vm1896 = vcmp.eq.s32.totalorder %v1864, 0
        %vm1897 = vcmp.eq.s32.totalorder %v1865, 0
        %vm1898 = vcmp.eq.s32.totalorder %v1866, 0
        %vm1899 = vcmp.eq.s32.totalorder %v1867, 0
        %vm1900 = vcmp.eq.s32.totalorder %v1868, 0
        %vm1901 = vcmp.eq.s32.totalorder %v1869, 0
        %vm1902 = vcmp.eq.s32.totalorder %v1870, 0
        %vm1903 = vcmp.eq.s32.totalorder %v1871, 0
        %vm1904 = vcmp.eq.s32.totalorder %v1872, 0
        %vm1905 = vcmp.eq.s32.totalorder %v1873, 0
        %vm1906 = vcmp.eq.s32.totalorder %v1874, 0
        %vm1907 = vcmp.eq.s32.totalorder %v1875, 0
        %vm1908 = vcmp.eq.s32.totalorder %v1876, 0
        %vm1909 = vcmp.eq.s32.totalorder %v1877, 0
        %vm1910 = vcmp.eq.s32.totalorder %v1878, 0
        %vm1911 = vcmp.eq.s32.totalorder %v1879, 0
        %v1912 = vsel %vm1880, 0.0, %v1462
        %v1913 = vsel %vm1881, 0.0, %v1369
        %v1914 = vsel %vm1882, 0.0, %v1371
        %v1915 = vsel %vm1883, 0.0, %v1373
        %v1916 = vsel %vm1884, 0.0, %v1375
        %v1917 = vsel %vm1885, 0.0, %v1377
        %v1918 = vsel %vm1886, 0.0, %v1379
        %v1919 = vsel %vm1887, 0.0, %v1381
        %v1920 = vsel %vm1888, 0.0, %v1383
        %v1921 = vsel %vm1889, 0.0, %v1385
        %v1922 = vsel %vm1890, 0.0, %v1387
        %v1923 = vsel %vm1891, 0.0, %v1389
        %v1924 = vsel %vm1892, 0.0, %v1391
        %v1925 = vsel %vm1893, 0.0, %v1393
        %v1926 = vsel %vm1894, 0.0, %v1395
        %v1927 = vsel %vm1895, 0.0, %v1397
        %v1928 = vsel %vm1896, 0.0, %v1399
        %v1929 = vsel %vm1897, 0.0, %v1401
        %v1930 = vsel %vm1898, 0.0, %v1403
        %v1931 = vsel %vm1899, 0.0, %v1405
        %v1932 = vsel %vm1900, 0.0, %v1407
        %v1933 = vsel %vm1901, 0.0, %v1409
        %v1934 = vsel %vm1902, 0.0, %v1411
        %v1935 = vsel %vm1903, 0.0, %v1413
        %v1936 = vsel %vm1904, 0.0, %v1415
        %v1937 = vsel %vm1905, 0.0, %v1417
        %v1938 = vsel %vm1906, 0.0, %v1419
        %v1939 = vsel %vm1907, 0.0, %v1421
        %v1940 = vsel %vm1908, 0.0, %v1423
        %v1941 = vsel %vm1909, 0.0, %v1425
        %v1942 = vsel %vm1910, 0.0, %v1427
        %v1943 = vsel %vm1911, 0.0, %v1429
        %vm1944 = vcmp.lt.s32.totalorder %v1465, 0
        %v1945 = vsub.s32 0, %v1465
        %v1946 = vsel %vm1944, %v1945, %v1465
        %v1947 = vshrl.u32 %v1946, 6
        %v1948 = vand.u32 %v1946, 63
        %v1949 = vsub.s32 0, %v1948
        %v1950 = vsel %vm1944, %v1949, %v1948
        %vm1951 = vcmp.lt.s32.totalorder %v1466, 0
        %v1952 = vsub.s32 0, %v1466
        %v1953 = vsel %vm1951, %v1952, %v1466
        %v1954 = vshrl.u32 %v1953, 6
        %v1955 = vand.u32 %v1953, 63
        %v1956 = vsub.s32 0, %v1955
        %v1957 = vsel %vm1951, %v1956, %v1955
        %vm1958 = vcmp.lt.s32.totalorder %v1467, 0
        %v1959 = vsub.s32 0, %v1467
        %v1960 = vsel %vm1958, %v1959, %v1467
        %v1961 = vshrl.u32 %v1960, 6
        %v1962 = vand.u32 %v1960, 63
        %v1963 = vsub.s32 0, %v1962
        %v1964 = vsel %vm1958, %v1963, %v1962
        %vm1965 = vcmp.lt.s32.totalorder %v1468, 0
        %v1966 = vsub.s32 0, %v1468
        %v1967 = vsel %vm1965, %v1966, %v1468
        %v1968 = vshrl.u32 %v1967, 6
        %v1969 = vand.u32 %v1967, 63
        %v1970 = vsub.s32 0, %v1969
        %v1971 = vsel %vm1965, %v1970, %v1969
        %vm1972 = vcmp.lt.s32.totalorder %v1469, 0
        %v1973 = vsub.s32 0, %v1469
        %v1974 = vsel %vm1972, %v1973, %v1469
        %v1975 = vshrl.u32 %v1974, 6
        %v1976 = vand.u32 %v1974, 63
        %v1977 = vsub.s32 0, %v1976
        %v1978 = vsel %vm1972, %v1977, %v1976
        %vm1979 = vcmp.lt.s32.totalorder %v1470, 0
        %v1980 = vsub.s32 0, %v1470
        %v1981 = vsel %vm1979, %v1980, %v1470
        %v1982 = vshrl.u32 %v1981, 6
        %v1983 = vand.u32 %v1981, 63
        %v1984 = vsub.s32 0, %v1983
        %v1985 = vsel %vm1979, %v1984, %v1983
        %vm1986 = vcmp.lt.s32.totalorder %v1471, 0
        %v1987 = vsub.s32 0, %v1471
        %v1988 = vsel %vm1986, %v1987, %v1471
        %v1989 = vshrl.u32 %v1988, 6
        %v1990 = vand.u32 %v1988, 63
        %v1991 = vsub.s32 0, %v1990
        %v1992 = vsel %vm1986, %v1991, %v1990
        %vm1993 = vcmp.lt.s32.totalorder %v1472, 0
        %v1994 = vsub.s32 0, %v1472
        %v1995 = vsel %vm1993, %v1994, %v1472
        %v1996 = vshrl.u32 %v1995, 6
        %v1997 = vand.u32 %v1995, 63
        %v1998 = vsub.s32 0, %v1997
        %v1999 = vsel %vm1993, %v1998, %v1997
        %vm2000 = vcmp.lt.s32.totalorder %v1473, 0
        %v2001 = vsub.s32 0, %v1473
        %v2002 = vsel %vm2000, %v2001, %v1473
        %v2003 = vshrl.u32 %v2002, 6
        %v2004 = vand.u32 %v2002, 63
        %v2005 = vsub.s32 0, %v2004
        %v2006 = vsel %vm2000, %v2005, %v2004
        %vm2007 = vcmp.lt.s32.totalorder %v1474, 0
        %v2008 = vsub.s32 0, %v1474
        %v2009 = vsel %vm2007, %v2008, %v1474
        %v2010 = vshrl.u32 %v2009, 6
        %v2011 = vand.u32 %v2009, 63
        %v2012 = vsub.s32 0, %v2011
        %v2013 = vsel %vm2007, %v2012, %v2011
        %vm2014 = vcmp.lt.s32.totalorder %v1475, 0
        %v2015 = vsub.s32 0, %v1475
        %v2016 = vsel %vm2014, %v2015, %v1475
        %v2017 = vshrl.u32 %v2016, 6
        %v2018 = vand.u32 %v2016, 63
        %v2019 = vsub.s32 0, %v2018
        %v2020 = vsel %vm2014, %v2019, %v2018
        %vm2021 = vcmp.lt.s32.totalorder %v1476, 0
        %v2022 = vsub.s32 0, %v1476
        %v2023 = vsel %vm2021, %v2022, %v1476
        %v2024 = vshrl.u32 %v2023, 6
        %v2025 = vand.u32 %v2023, 63
        %v2026 = vsub.s32 0, %v2025
        %v2027 = vsel %vm2021, %v2026, %v2025
        %vm2028 = vcmp.lt.s32.totalorder %v1477, 0
        %v2029 = vsub.s32 0, %v1477
        %v2030 = vsel %vm2028, %v2029, %v1477
        %v2031 = vshrl.u32 %v2030, 6
        %v2032 = vand.u32 %v2030, 63
        %v2033 = vsub.s32 0, %v2032
        %v2034 = vsel %vm2028, %v2033, %v2032
        %vm2035 = vcmp.lt.s32.totalorder %v1478, 0
        %v2036 = vsub.s32 0, %v1478
        %v2037 = vsel %vm2035, %v2036, %v1478
        %v2038 = vshrl.u32 %v2037, 6
        %v2039 = vand.u32 %v2037, 63
        %v2040 = vsub.s32 0, %v2039
        %v2041 = vsel %vm2035, %v2040, %v2039
        %vm2042 = vcmp.lt.s32.totalorder %v1479, 0
        %v2043 = vsub.s32 0, %v1479
        %v2044 = vsel %vm2042, %v2043, %v1479
        %v2045 = vshrl.u32 %v2044, 6
        %v2046 = vand.u32 %v2044, 63
        %v2047 = vsub.s32 0, %v2046
        %v2048 = vsel %vm2042, %v2047, %v2046
        %vm2049 = vcmp.ne.s32.totalorder %v1950, 0
        %vm2050 = vcmp.ne.s32.totalorder %v1957, 0
        %vm2051 = vcmp.ne.s32.totalorder %v1964, 0
        %vm2052 = vcmp.ne.s32.totalorder %v1971, 0
        %vm2053 = vcmp.ne.s32.totalorder %v1978, 0
        %vm2054 = vcmp.ne.s32.totalorder %v1985, 0
        %vm2055 = vcmp.ne.s32.totalorder %v1992, 0
        %vm2056 = vcmp.ne.s32.totalorder %v1999, 0
        %vm2057 = vcmp.ne.s32.totalorder %v2006, 0
        %vm2058 = vcmp.ne.s32.totalorder %v2013, 0
        %vm2059 = vcmp.ne.s32.totalorder %v2020, 0
        %vm2060 = vcmp.ne.s32.totalorder %v2027, 0
        %vm2061 = vcmp.ne.s32.totalorder %v2034, 0
        %vm2062 = vcmp.ne.s32.totalorder %v2041, 0
        %vm2063 = vcmp.ne.s32.totalorder %v2048, 0
        %vm2064 = vcmp.lt.s32.totalorder %v1950, 0
        %vm2065 = vcmp.lt.s32.totalorder %v1957, 0
        %vm2066 = vcmp.lt.s32.totalorder %v1964, 0
        %vm2067 = vcmp.lt.s32.totalorder %v1971, 0
        %vm2068 = vcmp.lt.s32.totalorder %v1978, 0
        %vm2069 = vcmp.lt.s32.totalorder %v1985, 0
        %vm2070 = vcmp.lt.s32.totalorder %v1992, 0
        %vm2071 = vcmp.lt.s32.totalorder %v1999, 0
        %vm2072 = vcmp.lt.s32.totalorder %v2006, 0
        %vm2073 = vcmp.lt.s32.totalorder %v2013, 0
        %vm2074 = vcmp.lt.s32.totalorder %v2020, 0
        %vm2075 = vcmp.lt.s32.totalorder %v2027, 0
        %vm2076 = vcmp.lt.s32.totalorder %v2034, 0
        %vm2077 = vcmp.lt.s32.totalorder %v2041, 0
        %vm2078 = vcmp.lt.s32.totalorder %v2048, 0
        %vm2079 = vmand %vm2064, %vm2049
        %vm2080 = vmand %vm2065, %vm2050
        %vm2081 = vmand %vm2066, %vm2051
        %vm2082 = vmand %vm2067, %vm2052
        %vm2083 = vmand %vm2068, %vm2053
        %vm2084 = vmand %vm2069, %vm2054
        %vm2085 = vmand %vm2070, %vm2055
        %vm2086 = vmand %vm2071, %vm2056
        %vm2087 = vmand %vm2072, %vm2057
        %vm2088 = vmand %vm2073, %vm2058
        %vm2089 = vmand %vm2074, %vm2059
        %vm2090 = vmand %vm2075, %vm2060
        %vm2091 = vmand %vm2076, %vm2061
        %vm2092 = vmand %vm2077, %vm2062
        %vm2093 = vmand %vm2078, %vm2063
        %v2094 = vadd.s32 %v1950, 64
        %v2095 = vadd.s32 %v1957, 64
        %v2096 = vadd.s32 %v1964, 64
        %v2097 = vadd.s32 %v1971, 64
        %v2098 = vadd.s32 %v1978, 64
        %v2099 = vadd.s32 %v1985, 64
        %v2100 = vadd.s32 %v1992, 64
        %v2101 = vadd.s32 %v1999, 64
        %v2102 = vadd.s32 %v2006, 64
        %v2103 = vadd.s32 %v2013, 64
        %v2104 = vadd.s32 %v2020, 64
        %v2105 = vadd.s32 %v2027, 64
        %v2106 = vadd.s32 %v2034, 64
        %v2107 = vadd.s32 %v2041, 64
        %v2108 = vadd.s32 %v2048, 64
        %v2109 = vsel %vm2079, %v2094, %v1950
        %v2110 = vsel %vm2080, %v2095, %v1957
        %v2111 = vsel %vm2081, %v2096, %v1964
        %v2112 = vsel %vm2082, %v2097, %v1971
        %v2113 = vsel %vm2083, %v2098, %v1978
        %v2114 = vsel %vm2084, %v2099, %v1985
        %v2115 = vsel %vm2085, %v2100, %v1992
        %v2116 = vsel %vm2086, %v2101, %v1999
        %v2117 = vsel %vm2087, %v2102, %v2006
        %v2118 = vsel %vm2088, %v2103, %v2013
        %v2119 = vsel %vm2089, %v2104, %v2020
        %v2120 = vsel %vm2090, %v2105, %v2027
        %v2121 = vsel %vm2091, %v2106, %v2034
        %v2122 = vsel %vm2092, %v2107, %v2041
        %v2123 = vsel %vm2093, %v2108, %v2048
        %vm2124 = vcmp.lt.s32.totalorder %v2109, 8
        %vm2125 = vcmp.lt.s32.totalorder %v2110, 8
        %vm2126 = vcmp.lt.s32.totalorder %v2111, 8
        %vm2127 = vcmp.lt.s32.totalorder %v2112, 8
        %vm2128 = vcmp.lt.s32.totalorder %v2113, 8
        %vm2129 = vcmp.lt.s32.totalorder %v2114, 8
        %vm2130 = vcmp.lt.s32.totalorder %v2115, 8
        %vm2131 = vcmp.lt.s32.totalorder %v2116, 8
        %vm2132 = vcmp.lt.s32.totalorder %v2117, 8
        %vm2133 = vcmp.lt.s32.totalorder %v2118, 8
        %vm2134 = vcmp.lt.s32.totalorder %v2119, 8
        %vm2135 = vcmp.lt.s32.totalorder %v2120, 8
        %vm2136 = vcmp.lt.s32.totalorder %v2121, 8
        %vm2137 = vcmp.lt.s32.totalorder %v2122, 8
        %vm2138 = vcmp.lt.s32.totalorder %v2123, 8
        %v2139 = vsel %vm2124, 0.0, %v1913
        %v2140 = vsel %vm2125, 0.0, %v1915
        %v2141 = vsel %vm2126, 0.0, %v1917
        %v2142 = vsel %vm2127, 0.0, %v1919
        %v2143 = vsel %vm2128, 0.0, %v1921
        %v2144 = vsel %vm2129, 0.0, %v1923
        %v2145 = vsel %vm2130, 0.0, %v1925
        %v2146 = vsel %vm2131, 0.0, %v1927
        %v2147 = vsel %vm2132, 0.0, %v1929
        %v2148 = vsel %vm2133, 0.0, %v1931
        %v2149 = vsel %vm2134, 0.0, %v1933
        %v2150 = vsel %vm2135, 0.0, %v1935
        %v2151 = vsel %vm2136, 0.0, %v1937
        %v2152 = vsel %vm2137, 0.0, %v1939
        %v2153 = vsel %vm2138, 0.0, %v1941
        %v2154 = vsel %vm2124, 0.0, %v1271
        %v2155 = vsel %vm2125, 0.0, %v1273
        %v2156 = vsel %vm2126, 0.0, %v1275
        %v2157 = vsel %vm2127, 0.0, %v1277
        %v2158 = vsel %vm2128, 0.0, %v1279
        %v2159 = vsel %vm2129, 0.0, %v1281
        %v2160 = vsel %vm2130, 0.0, %v1283
        %v2161 = vsel %vm2131, 0.0, %v1285
        %v2162 = vsel %vm2132, 0.0, %v1287
        %v2163 = vsel %vm2133, 0.0, %v1289
        %v2164 = vsel %vm2134, 0.0, %v1291
        %v2165 = vsel %vm2135, 0.0, %v1293
        %v2166 = vsel %vm2136, 0.0, %v1295
        %v2167 = vsel %vm2137, 0.0, %v1297
        %v2168 = vsel %vm2138, 0.0, %v1299
        %v2169 = vsel %vm2124, 0.0, %v1303
        %v2170 = vsel %vm2125, 0.0, %v1305
        %v2171 = vsel %vm2126, 0.0, %v1307
        %v2172 = vsel %vm2127, 0.0, %v1309
        %v2173 = vsel %vm2128, 0.0, %v1311
        %v2174 = vsel %vm2129, 0.0, %v1313
        %v2175 = vsel %vm2130, 0.0, %v1315
        %v2176 = vsel %vm2131, 0.0, %v1317
        %v2177 = vsel %vm2132, 0.0, %v1319
        %v2178 = vsel %vm2133, 0.0, %v1321
        %v2179 = vsel %vm2134, 0.0, %v1323
        %v2180 = vsel %vm2135, 0.0, %v1325
        %v2181 = vsel %vm2136, 0.0, %v1327
        %v2182 = vsel %vm2137, 0.0, %v1329
        %v2183 = vsel %vm2138, 0.0, %v1331
        %2200 = vrot.lane.b32.xlu0 0.0, 16
        %v2201 = vpop.permute.xlu0 %2200
        %2202 = vrot.lane.b32.xlu0 %v2154, 16
        %v2203 = vpop.permute.xlu0 %2202
        %2204 = vrot.lane.b32.xlu0 %v2155, 16
        %v2205 = vpop.permute.xlu0 %2204
        %2206 = vrot.lane.b32.xlu0 %v2156, 16
        %v2207 = vpop.permute.xlu0 %2206
        %2208 = vrot.lane.b32.xlu0 %v2157, 16
        %v2209 = vpop.permute.xlu0 %2208
        %2210 = vrot.lane.b32.xlu0 %v2158, 16
        %v2211 = vpop.permute.xlu0 %2210
        %2212 = vrot.lane.b32.xlu0 %v2159, 16
        %v2213 = vpop.permute.xlu0 %2212
        %2214 = vrot.lane.b32.xlu0 %v2160, 16
        %v2215 = vpop.permute.xlu0 %2214
        %2216 = vrot.lane.b32.xlu0 %v2161, 16
        %v2217 = vpop.permute.xlu0 %2216
        %2218 = vrot.lane.b32.xlu0 %v2162, 16
        %v2219 = vpop.permute.xlu0 %2218
        %2220 = vrot.lane.b32.xlu0 %v2163, 16
        %v2221 = vpop.permute.xlu0 %2220
        %2222 = vrot.lane.b32.xlu0 %v2164, 16
        %v2223 = vpop.permute.xlu0 %2222
        %2224 = vrot.lane.b32.xlu0 %v2165, 16
        %v2225 = vpop.permute.xlu0 %2224
        %2226 = vrot.lane.b32.xlu0 %v2166, 16
        %v2227 = vpop.permute.xlu0 %2226
        %2228 = vrot.lane.b32.xlu0 %v2167, 16
        %v2229 = vpop.permute.xlu0 %2228
        %2230 = vrot.lane.b32.xlu0 %v2168, 16
        %v2231 = vpop.permute.xlu0 %2230
        %2263 = vrot.lane.b32.xlu0 0.0, 32
        %v2264 = vpop.permute.xlu0 %2263
        %2265 = vrot.lane.b32.xlu0 %v2169, 32
        %v2266 = vpop.permute.xlu0 %2265
        %2267 = vrot.lane.b32.xlu0 %v2170, 32
        %v2268 = vpop.permute.xlu0 %2267
        %2269 = vrot.lane.b32.xlu0 %v2171, 32
        %v2270 = vpop.permute.xlu0 %2269
        %2271 = vrot.lane.b32.xlu0 %v2172, 32
        %v2272 = vpop.permute.xlu0 %2271
        %2273 = vrot.lane.b32.xlu0 %v2173, 32
        %v2274 = vpop.permute.xlu0 %2273
        %2275 = vrot.lane.b32.xlu0 %v2174, 32
        %v2276 = vpop.permute.xlu0 %2275
        %2277 = vrot.lane.b32.xlu0 %v2175, 32
        %v2278 = vpop.permute.xlu0 %2277
        %2279 = vrot.lane.b32.xlu0 %v2176, 32
        %v2280 = vpop.permute.xlu0 %2279
        %2281 = vrot.lane.b32.xlu0 %v2177, 32
        %v2282 = vpop.permute.xlu0 %2281
        %2283 = vrot.lane.b32.xlu0 %v2178, 32
        %v2284 = vpop.permute.xlu0 %2283
        %2285 = vrot.lane.b32.xlu0 %v2179, 32
        %v2286 = vpop.permute.xlu0 %2285
        %2287 = vrot.lane.b32.xlu0 %v2180, 32
        %v2288 = vpop.permute.xlu0 %2287
        %2289 = vrot.lane.b32.xlu0 %v2181, 32
        %v2290 = vpop.permute.xlu0 %2289
        %2291 = vrot.lane.b32.xlu0 %v2182, 32
        %v2292 = vpop.permute.xlu0 %2291
        %2293 = vrot.lane.b32.xlu0 %v2183, 32
        %v2294 = vpop.permute.xlu0 %2293
        %2327 = vrot.lane.b32.xlu0 %v1912, 48
        %v2328 = vpop.permute.xlu0 %2327
        %2329 = vrot.lane.b32.xlu0 %v1914, 48
        %v2330 = vpop.permute.xlu0 %2329
        %2331 = vrot.lane.b32.xlu0 %v1916, 48
        %v2332 = vpop.permute.xlu0 %2331
        %2333 = vrot.lane.b32.xlu0 %v1918, 48
        %v2334 = vpop.permute.xlu0 %2333
        %2335 = vrot.lane.b32.xlu0 %v1920, 48
        %v2336 = vpop.permute.xlu0 %2335
        %2337 = vrot.lane.b32.xlu0 %v1922, 48
        %v2338 = vpop.permute.xlu0 %2337
        %2339 = vrot.lane.b32.xlu0 %v1924, 48
        %v2340 = vpop.permute.xlu0 %2339
        %2341 = vrot.lane.b32.xlu0 %v1926, 48
        %v2342 = vpop.permute.xlu0 %2341
        %2343 = vrot.lane.b32.xlu0 %v1928, 48
        %v2344 = vpop.permute.xlu0 %2343
        %2345 = vrot.lane.b32.xlu0 %v1930, 48
        %v2346 = vpop.permute.xlu0 %2345
        %2347 = vrot.lane.b32.xlu0 %v1932, 48
        %v2348 = vpop.permute.xlu0 %2347
        %2349 = vrot.lane.b32.xlu0 %v1934, 48
        %v2350 = vpop.permute.xlu0 %2349
        %2351 = vrot.lane.b32.xlu0 %v1936, 48
        %v2352 = vpop.permute.xlu0 %2351
        %2353 = vrot.lane.b32.xlu0 %v1938, 48
        %v2354 = vpop.permute.xlu0 %2353
        %2355 = vrot.lane.b32.xlu0 %v1940, 48
        %v2356 = vpop.permute.xlu0 %2355
        %2357 = vrot.lane.b32.xlu0 %v1942, 48
        %v2358 = vpop.permute.xlu0 %2357
        %2391 = vrot.lane.b32.xlu0 %v1270, 64
        %v2392 = vpop.permute.xlu0 %2391
        %2393 = vrot.lane.b32.xlu0 %v1272, 64
        %v2394 = vpop.permute.xlu0 %2393
        %2395 = vrot.lane.b32.xlu0 %v1274, 64
        %v2396 = vpop.permute.xlu0 %2395
        %2397 = vrot.lane.b32.xlu0 %v1276, 64
        %v2398 = vpop.permute.xlu0 %2397
        %2399 = vrot.lane.b32.xlu0 %v1278, 64
        %v2400 = vpop.permute.xlu0 %2399
        %2401 = vrot.lane.b32.xlu0 %v1280, 64
        %v2402 = vpop.permute.xlu0 %2401
        %2403 = vrot.lane.b32.xlu0 %v1282, 64
        %v2404 = vpop.permute.xlu0 %2403
        %2405 = vrot.lane.b32.xlu0 %v1284, 64
        %v2406 = vpop.permute.xlu0 %2405
        %2407 = vrot.lane.b32.xlu0 %v1286, 64
        %v2408 = vpop.permute.xlu0 %2407
        %2409 = vrot.lane.b32.xlu0 %v1288, 64
        %v2410 = vpop.permute.xlu0 %2409
        %2411 = vrot.lane.b32.xlu0 %v1290, 64
        %v2412 = vpop.permute.xlu0 %2411
        %2413 = vrot.lane.b32.xlu0 %v1292, 64
        %v2414 = vpop.permute.xlu0 %2413
        %2415 = vrot.lane.b32.xlu0 %v1294, 64
        %v2416 = vpop.permute.xlu0 %2415
        %2417 = vrot.lane.b32.xlu0 %v1296, 64
        %v2418 = vpop.permute.xlu0 %2417
        %2419 = vrot.lane.b32.xlu0 %v1298, 64
        %v2420 = vpop.permute.xlu0 %2419
        %2421 = vrot.lane.b32.xlu0 %v1300, 64
        %v2422 = vpop.permute.xlu0 %2421
        %2439 = vrot.lane.b32.xlu0 %v1302, 80
        %v2440 = vpop.permute.xlu0 %2439
        %2441 = vrot.lane.b32.xlu0 %v1304, 80
        %v2442 = vpop.permute.xlu0 %2441
        %2443 = vrot.lane.b32.xlu0 %v1306, 80
        %v2444 = vpop.permute.xlu0 %2443
        %2445 = vrot.lane.b32.xlu0 %v1308, 80
        %v2446 = vpop.permute.xlu0 %2445
        %2447 = vrot.lane.b32.xlu0 %v1310, 80
        %v2448 = vpop.permute.xlu0 %2447
        %2449 = vrot.lane.b32.xlu0 %v1312, 80
        %v2450 = vpop.permute.xlu0 %2449
        %2451 = vrot.lane.b32.xlu0 %v1314, 80
        %v2452 = vpop.permute.xlu0 %2451
        %2453 = vrot.lane.b32.xlu0 %v1316, 80
        %v2454 = vpop.permute.xlu0 %2453
        %2455 = vrot.lane.b32.xlu0 %v1318, 80
        %v2456 = vpop.permute.xlu0 %2455
        %2457 = vrot.lane.b32.xlu0 %v1320, 80
        %v2458 = vpop.permute.xlu0 %2457
        %2459 = vrot.lane.b32.xlu0 %v1322, 80
        %v2460 = vpop.permute.xlu0 %2459
        %2461 = vrot.lane.b32.xlu0 %v1324, 80
        %v2462 = vpop.permute.xlu0 %2461
        %2463 = vrot.lane.b32.xlu0 %v1326, 80
        %v2464 = vpop.permute.xlu0 %2463
        %2465 = vrot.lane.b32.xlu0 %v1328, 80
        %v2466 = vpop.permute.xlu0 %2465
        %2467 = vrot.lane.b32.xlu0 %v1330, 80
        %v2468 = vpop.permute.xlu0 %2467
        %2469 = vrot.lane.b32.xlu0 %v1332, 80
        %v2470 = vpop.permute.xlu0 %2469
        %2503 = vrot.lane.b32.xlu0 %v1913, 96
        %v2504 = vpop.permute.xlu0 %2503
        %2505 = vrot.lane.b32.xlu0 %v1915, 96
        %v2506 = vpop.permute.xlu0 %2505
        %2507 = vrot.lane.b32.xlu0 %v1917, 96
        %v2508 = vpop.permute.xlu0 %2507
        %2509 = vrot.lane.b32.xlu0 %v1919, 96
        %v2510 = vpop.permute.xlu0 %2509
        %2511 = vrot.lane.b32.xlu0 %v1921, 96
        %v2512 = vpop.permute.xlu0 %2511
        %2513 = vrot.lane.b32.xlu0 %v1923, 96
        %v2514 = vpop.permute.xlu0 %2513
        %2515 = vrot.lane.b32.xlu0 %v1925, 96
        %v2516 = vpop.permute.xlu0 %2515
        %2517 = vrot.lane.b32.xlu0 %v1927, 96
        %v2518 = vpop.permute.xlu0 %2517
        %2519 = vrot.lane.b32.xlu0 %v1929, 96
        %v2520 = vpop.permute.xlu0 %2519
        %2521 = vrot.lane.b32.xlu0 %v1931, 96
        %v2522 = vpop.permute.xlu0 %2521
        %2523 = vrot.lane.b32.xlu0 %v1933, 96
        %v2524 = vpop.permute.xlu0 %2523
        %2525 = vrot.lane.b32.xlu0 %v1935, 96
        %v2526 = vpop.permute.xlu0 %2525
        %2527 = vrot.lane.b32.xlu0 %v1937, 96
        %v2528 = vpop.permute.xlu0 %2527
        %2529 = vrot.lane.b32.xlu0 %v1939, 96
        %v2530 = vpop.permute.xlu0 %2529
        %2531 = vrot.lane.b32.xlu0 %v1941, 96
        %v2532 = vpop.permute.xlu0 %2531
        %2533 = vrot.lane.b32.xlu0 %v1943, 96
        %v2534 = vpop.permute.xlu0 %2533
        %2567 = vrot.lane.b32.xlu0 %v1271, 112
        %v2568 = vpop.permute.xlu0 %2567
        %2569 = vrot.lane.b32.xlu0 %v1273, 112
        %v2570 = vpop.permute.xlu0 %2569
        %2571 = vrot.lane.b32.xlu0 %v1275, 112
        %v2572 = vpop.permute.xlu0 %2571
        %2573 = vrot.lane.b32.xlu0 %v1277, 112
        %v2574 = vpop.permute.xlu0 %2573
        %2575 = vrot.lane.b32.xlu0 %v1279, 112
        %v2576 = vpop.permute.xlu0 %2575
        %2577 = vrot.lane.b32.xlu0 %v1281, 112
        %v2578 = vpop.permute.xlu0 %2577
        %2579 = vrot.lane.b32.xlu0 %v1283, 112
        %v2580 = vpop.permute.xlu0 %2579
        %2581 = vrot.lane.b32.xlu0 %v1285, 112
        %v2582 = vpop.permute.xlu0 %2581
        %2583 = vrot.lane.b32.xlu0 %v1287, 112
        %v2584 = vpop.permute.xlu0 %2583
        %2585 = vrot.lane.b32.xlu0 %v1289, 112
        %v2586 = vpop.permute.xlu0 %2585
        %2587 = vrot.lane.b32.xlu0 %v1291, 112
        %v2588 = vpop.permute.xlu0 %2587
        %2589 = vrot.lane.b32.xlu0 %v1293, 112
        %v2590 = vpop.permute.xlu0 %2589
        %2591 = vrot.lane.b32.xlu0 %v1295, 112
        %v2592 = vpop.permute.xlu0 %2591
        %2593 = vrot.lane.b32.xlu0 %v1297, 112
        %v2594 = vpop.permute.xlu0 %2593
        %2595 = vrot.lane.b32.xlu0 %v1299, 112
        %v2596 = vpop.permute.xlu0 %2595
        %2597 = vrot.lane.b32.xlu0 %v1301, 112
        %v2598 = vpop.permute.xlu0 %2597
        %vm2615 = vcmask 130048
        %v2616 = vsel %vm2615, 0.0, %v2201
        %v2617 = vsel %vm2615, %v2139, %v2203
        %v2618 = vsel %vm2615, %v2140, %v2205
        %v2619 = vsel %vm2615, %v2141, %v2207
        %v2620 = vsel %vm2615, %v2142, %v2209
        %v2621 = vsel %vm2615, %v2143, %v2211
        %v2622 = vsel %vm2615, %v2144, %v2213
        %v2623 = vsel %vm2615, %v2145, %v2215
        %v2624 = vsel %vm2615, %v2146, %v2217
        %v2625 = vsel %vm2615, %v2147, %v2219
        %v2626 = vsel %vm2615, %v2148, %v2221
        %v2627 = vsel %vm2615, %v2149, %v2223
        %v2628 = vsel %vm2615, %v2150, %v2225
        %v2629 = vsel %vm2615, %v2151, %v2227
        %v2630 = vsel %vm2615, %v2152, %v2229
        %v2631 = vsel %vm2615, %v2153, %v2231
        %vm2632 = vcmask 261120
        %v2633 = vsel %vm2632, %v2616, %v2264
        %v2634 = vsel %vm2632, %v2617, %v2266
        %v2635 = vsel %vm2632, %v2618, %v2268
        %v2636 = vsel %vm2632, %v2619, %v2270
        %v2637 = vsel %vm2632, %v2620, %v2272
        %v2638 = vsel %vm2632, %v2621, %v2274
        %v2639 = vsel %vm2632, %v2622, %v2276
        %v2640 = vsel %vm2632, %v2623, %v2278
        %v2641 = vsel %vm2632, %v2624, %v2280
        %v2642 = vsel %vm2632, %v2625, %v2282
        %v2643 = vsel %vm2632, %v2626, %v2284
        %v2644 = vsel %vm2632, %v2627, %v2286
        %v2645 = vsel %vm2632, %v2628, %v2288
        %v2646 = vsel %vm2632, %v2629, %v2290
        %v2647 = vsel %vm2632, %v2630, %v2292
        %v2648 = vsel %vm2632, %v2631, %v2294
        %vm2649 = vcmask 392192
        %v2650 = vsel %vm2649, %v2633, %v2328
        %v2651 = vsel %vm2649, %v2634, %v2330
        %v2652 = vsel %vm2649, %v2635, %v2332
        %v2653 = vsel %vm2649, %v2636, %v2334
        %v2654 = vsel %vm2649, %v2637, %v2336
        %v2655 = vsel %vm2649, %v2638, %v2338
        %v2656 = vsel %vm2649, %v2639, %v2340
        %v2657 = vsel %vm2649, %v2640, %v2342
        %v2658 = vsel %vm2649, %v2641, %v2344
        %v2659 = vsel %vm2649, %v2642, %v2346
        %v2660 = vsel %vm2649, %v2643, %v2348
        %v2661 = vsel %vm2649, %v2644, %v2350
        %v2662 = vsel %vm2649, %v2645, %v2352
        %v2663 = vsel %vm2649, %v2646, %v2354
        %v2664 = vsel %vm2649, %v2647, %v2356
        %v2665 = vsel %vm2649, %v2648, %v2358
        %vm2666 = vcmask 523264
        %v2667 = vsel %vm2666, %v2650, %v2392
        %v2668 = vsel %vm2666, %v2651, %v2394
        %v2669 = vsel %vm2666, %v2652, %v2396
        %v2670 = vsel %vm2666, %v2653, %v2398
        %v2671 = vsel %vm2666, %v2654, %v2400
        %v2672 = vsel %vm2666, %v2655, %v2402
        %v2673 = vsel %vm2666, %v2656, %v2404
        %v2674 = vsel %vm2666, %v2657, %v2406
        %v2675 = vsel %vm2666, %v2658, %v2408
        %v2676 = vsel %vm2666, %v2659, %v2410
        %v2677 = vsel %vm2666, %v2660, %v2412
        %v2678 = vsel %vm2666, %v2661, %v2414
        %v2679 = vsel %vm2666, %v2662, %v2416
        %v2680 = vsel %vm2666, %v2663, %v2418
        %v2681 = vsel %vm2666, %v2664, %v2420
        %v2682 = vsel %vm2666, %v2665, %v2422
        %vm2683 = vcmask 654336
        %v2684 = vsel %vm2683, %v2667, %v2440
        %v2685 = vsel %vm2683, %v2668, %v2442
        %v2686 = vsel %vm2683, %v2669, %v2444
        %v2687 = vsel %vm2683, %v2670, %v2446
        %v2688 = vsel %vm2683, %v2671, %v2448
        %v2689 = vsel %vm2683, %v2672, %v2450
        %v2690 = vsel %vm2683, %v2673, %v2452
        %v2691 = vsel %vm2683, %v2674, %v2454
        %v2692 = vsel %vm2683, %v2675, %v2456
        %v2693 = vsel %vm2683, %v2676, %v2458
        %v2694 = vsel %vm2683, %v2677, %v2460
        %v2695 = vsel %vm2683, %v2678, %v2462
        %v2696 = vsel %vm2683, %v2679, %v2464
        %v2697 = vsel %vm2683, %v2680, %v2466
        %v2698 = vsel %vm2683, %v2681, %v2468
        %v2699 = vsel %vm2683, %v2682, %v2470
        %vm2700 = vcmask 785408
        %v2701 = vsel %vm2700, %v2684, %v2504
        %v2702 = vsel %vm2700, %v2685, %v2506
        %v2703 = vsel %vm2700, %v2686, %v2508
        %v2704 = vsel %vm2700, %v2687, %v2510
        %v2705 = vsel %vm2700, %v2688, %v2512
        %v2706 = vsel %vm2700, %v2689, %v2514
        %v2707 = vsel %vm2700, %v2690, %v2516
        %v2708 = vsel %vm2700, %v2691, %v2518
        %v2709 = vsel %vm2700, %v2692, %v2520
        %v2710 = vsel %vm2700, %v2693, %v2522
        %v2711 = vsel %vm2700, %v2694, %v2524
        %v2712 = vsel %vm2700, %v2695, %v2526
        %v2713 = vsel %vm2700, %v2696, %v2528
        %v2714 = vsel %vm2700, %v2697, %v2530
        %v2715 = vsel %vm2700, %v2698, %v2532
        %v2716 = vsel %vm2700, %v2699, %v2534
        %vm2717 = vcmask 916480
        %v2718 = vsel %vm2717, %v2701, %v2568
        %v2719 = vsel %vm2717, %v2702, %v2570
        %v2720 = vsel %vm2717, %v2703, %v2572
        %v2721 = vsel %vm2717, %v2704, %v2574
        %v2722 = vsel %vm2717, %v2705, %v2576
        %v2723 = vsel %vm2717, %v2706, %v2578
        %v2724 = vsel %vm2717, %v2707, %v2580
        %v2725 = vsel %vm2717, %v2708, %v2582
        %v2726 = vsel %vm2717, %v2709, %v2584
        %v2727 = vsel %vm2717, %v2710, %v2586
        %v2728 = vsel %vm2717, %v2711, %v2588
        %v2729 = vsel %vm2717, %v2712, %v2590
        %v2730 = vsel %vm2717, %v2713, %v2592
        %v2731 = vsel %vm2717, %v2714, %v2594
        %v2732 = vsel %vm2717, %v2715, %v2596
        %v2733 = vsel %vm2717, %v2716, %v2598
        %v2734 = vpack.c.bf16 %v2719, %v2718
        %v2735 = vpack.c.bf16 %v1305, %v1303
        %v2736 = vpack.c.bf16 %v2721, %v2720
        %v2737 = vpack.c.bf16 %v1309, %v1307
        %v2738 = vpack.c.bf16 %v2723, %v2722
        %v2739 = vpack.c.bf16 %v1313, %v1311
        %v2740 = vpack.c.bf16 %v2725, %v2724
        %v2741 = vpack.c.bf16 %v1317, %v1315
        %v2742 = vpack.c.bf16 %v2727, %v2726
        %v2743 = vpack.c.bf16 %v1321, %v1319
        %v2744 = vpack.c.bf16 %v2729, %v2728
        %v2745 = vpack.c.bf16 %v1325, %v1323
        %v2746 = vpack.c.bf16 %v2731, %v2730
        %v2747 = vpack.c.bf16 %v1329, %v1327
        %v2748 = vpack.c.bf16 %v2733, %v2732
        %v2749 = vpack.c.bf16 %v1333, %v1331
        %v2750 = vld [vmem:[%s3] sm:$0xf]
        %v2751 = vld [vmem:[%s3 + $0x4] sm:$0xf]
        %v2752 = vld [vmem:[%s3 + $0x8] sm:$0xf]
        %v2753 = vld [vmem:[%s3 + $0xc] sm:$0xf]
        %v2754 = vld [vmem:[%s3 + $0x10] sm:$0xf]
        %v2755 = vld [vmem:[%s3 + $0x14] sm:$0xf]
        %v2756 = vld [vmem:[%s3 + $0x18] sm:$0xf]
        %v2757 = vld [vmem:[%s3 + $0x1c] sm:$0xf]
        %v2758 = vld [vmem:[%s3 + $0x20] sm:$0xf]
        %v2759 = vld [vmem:[%s3 + $0x24] sm:$0xf]
        %v2760 = vld [vmem:[%s3 + $0x28] sm:$0xf]
        %v2761 = vld [vmem:[%s3 + $0x2c] sm:$0xf]
        %v2762 = vld [vmem:[%s3 + $0x30] sm:$0xf]
        %v2763 = vld [vmem:[%s3 + $0x34] sm:$0xf]
        %v2764 = vld [vmem:[%s3 + $0x38] sm:$0xf]
        %v2765 = vld [vmem:[%s3 + $0x3c] sm:$0xf]
        %v2766 = vld [vmem:[%s3 + $0x40] sm:$0xf]
        %v2767 = vld [vmem:[%s3 + $0x44] sm:$0xf]
        %v2768 = vld [vmem:[%s4] sm:$0x1]
        %v2770 = vlaneseq
        %v2771 = vshrl.u32 %v2770, 7
        %v2772 = vsub.s32 0, %v2771
        %v2773 = vrot.slane %v2768, %v2772
        %v2793 = vunpack.c.l.b16 %v2750
        %v2794 = vunpack.c.l.b16 %v2751
        %v2795 = vunpack.c.l.b16 %v2752
        %v2796 = vunpack.c.l.b16 %v2753
        %v2797 = vunpack.c.l.b16 %v2754
        %v2798 = vunpack.c.l.b16 %v2755
        %v2799 = vunpack.c.l.b16 %v2756
        %v2800 = vunpack.c.l.b16 %v2757
        %v2801 = vunpack.c.l.b16 %v2758
        %v2802 = vunpack.c.l.b16 %v2759
        %v2803 = vunpack.c.l.b16 %v2760
        %v2804 = vunpack.c.l.b16 %v2761
        %v2805 = vunpack.c.l.b16 %v2762
        %v2806 = vunpack.c.l.b16 %v2763
        %v2807 = vunpack.c.l.b16 %v2764
        %v2808 = vunpack.c.l.b16 %v2765
        %v2809 = vunpack.c.l.b16 %v2766
        %v2810 = vunpack.c.l.b16 %v2767
        %v2811 = vpack.c.b16 %v2794, %v2793
        %v2812 = vpack.c.b16 %v2796, %v2795
        %v2813 = vpack.c.b16 %v2798, %v2797
        %v2814 = vpack.c.b16 %v2800, %v2799
        %v2815 = vpack.c.b16 %v2802, %v2801
        %v2816 = vpack.c.b16 %v2804, %v2803
        %v2817 = vpack.c.b16 %v2806, %v2805
        %v2818 = vpack.c.b16 %v2808, %v2807
        %v2819 = vpack.c.b16 %v2810, %v2809
        %v2830 = vsel %vm2615, %v2735, 0
        %v2833 = vsel %vm2615, %v2737, 0
        %v2836 = vsel %vm2615, %v2739, 0
        %v2839 = vsel %vm2615, %v2741, 0
        %v2842 = vsel %vm2615, %v2743, 0
        %v2845 = vsel %vm2615, %v2745, 0
        %v2848 = vsel %vm2615, %v2747, 0
        %v2851 = vsel %vm2615, %v2749, 0
        %2853 = vmatprep.subr.bf16.mxu0 0
        %2854 = vmatpush1.bf16.msra.mxu0 %v2811
        %2855 = vmatprep.subr.bf16.mxu0 0
        %2856 = vmatpush1.bf16.msra.mxu0 %v2812
        %2857 = vmatprep.subr.bf16.mxu0 0
        %2858 = vmatpush1.bf16.msra.mxu0 %v2813
        %2859 = vmatprep.subr.bf16.mxu0 0
        %2860 = vmatpush1.bf16.msra.mxu0 %v2814
        %2861 = vmatprep.subr.bf16.mxu0 0
        %2862 = vmatpush1.bf16.msra.mxu0 %v2815
        %2863 = vmatprep.subr.bf16.mxu0 0
        %2864 = vmatpush1.bf16.msra.mxu0 %v2816
        %2865 = vmatprep.subr.bf16.mxu0 0
        %2866 = vmatpush1.bf16.msra.mxu0 %v2817
        %2867 = vmatprep.subr.bf16.mxu0 0
        %2868 = vmatpush1.bf16.msra.mxu0 %v2818
        %2869 = vmatprep.subr.bf16.mxu0 0
        %2870 = vmatpush1.bf16.msra.mxu0 %v2819
        %2871 = vmatprep.subr.bf16.mxu0 0
        %2872 = vmatpush1.bf16.msra.mxu0 0
        %2873 = vmatprep.subr.bf16.mxu0 0
        %2874 = vmatpush1.bf16.msra.mxu0 0
        %2875 = vmatprep.subr.bf16.mxu0 0
        %2876 = vmatpush1.bf16.msra.mxu0 0
        %2877 = vmatprep.subr.bf16.mxu0 0
        %2878 = vmatpush1.bf16.msra.mxu0 0
        %2879 = vmatprep.subr.bf16.mxu0 0
        %2880 = vmatpush1.bf16.msra.mxu0 0
        %2881 = vmatprep.subr.bf16.mxu0 0
        %2882 = vmatpush1.bf16.msra.mxu0 0
        %2883 = vmatprep.subr.bf16.mxu0 0
        %2884 = vmatpush1.bf16.msra.mxu0 0
        %2885 = vmatprep.mubr.bf16.mxu0 %v2830
        %2886 = vmatmul.mubr.bf16.gmra.mrb[0].mxu0 %v2734
        %v2887 = vpop.f32.mrb[0].mxu0
        %v2888 = vadd.f32 %v2773, %v2887
        %v2889 = vpop.f32.mrb[0].mxu0
        %v2890 = vpop.f32.mrb[0].mxu0
        %v2891 = vadd.f32 %v2773, %v2890
        %v2892 = vpop.f32.mrb[0].mxu0
        %2893 = vmatprep.mubr.bf16.mxu0 %v2833
        %2894 = vmatmul.mubr.bf16.gmra.mrb[0].mxu0 %v2736
        %v2895 = vpop.f32.mrb[0].mxu0
        %v2896 = vadd.f32 %v2773, %v2895
        %v2897 = vpop.f32.mrb[0].mxu0
        %v2898 = vpop.f32.mrb[0].mxu0
        %v2899 = vadd.f32 %v2773, %v2898
        %v2900 = vpop.f32.mrb[0].mxu0
        %2901 = vmatprep.mubr.bf16.mxu0 %v2836
        %2902 = vmatmul.mubr.bf16.gmra.mrb[0].mxu0 %v2738
        %v2903 = vpop.f32.mrb[0].mxu0
        %v2904 = vadd.f32 %v2773, %v2903
        %v2905 = vpop.f32.mrb[0].mxu0
        %v2906 = vpop.f32.mrb[0].mxu0
        %v2907 = vadd.f32 %v2773, %v2906
        %v2908 = vpop.f32.mrb[0].mxu0
        %2909 = vmatprep.mubr.bf16.mxu0 %v2839
        %2910 = vmatmul.mubr.bf16.gmra.mrb[0].mxu0 %v2740
        %v2911 = vpop.f32.mrb[0].mxu0
        %v2912 = vadd.f32 %v2773, %v2911
        %v2913 = vpop.f32.mrb[0].mxu0
        %v2914 = vpop.f32.mrb[0].mxu0
        %v2915 = vadd.f32 %v2773, %v2914
        %v2916 = vpop.f32.mrb[0].mxu0
        %2917 = vmatprep.mubr.bf16.mxu0 %v2842
        %2918 = vmatmul.mubr.bf16.gmra.mrb[0].mxu0 %v2742
        %v2919 = vpop.f32.mrb[0].mxu0
        %v2920 = vadd.f32 %v2773, %v2919
        %v2921 = vpop.f32.mrb[0].mxu0
        %v2922 = vpop.f32.mrb[0].mxu0
        %v2923 = vadd.f32 %v2773, %v2922
        %v2924 = vpop.f32.mrb[0].mxu0
        %2925 = vmatprep.mubr.bf16.mxu0 %v2845
        %2926 = vmatmul.mubr.bf16.gmra.mrb[0].mxu0 %v2744
        %v2927 = vpop.f32.mrb[0].mxu0
        %v2928 = vadd.f32 %v2773, %v2927
        %v2929 = vpop.f32.mrb[0].mxu0
        %v2930 = vpop.f32.mrb[0].mxu0
        %v2931 = vadd.f32 %v2773, %v2930
        %v2932 = vpop.f32.mrb[0].mxu0
        %2933 = vmatprep.mubr.bf16.mxu0 %v2848
        %2934 = vmatmul.mubr.bf16.gmra.mrb[0].mxu0 %v2746
        %v2935 = vpop.f32.mrb[0].mxu0
        %v2936 = vadd.f32 %v2773, %v2935
        %v2937 = vpop.f32.mrb[0].mxu0
        %v2938 = vpop.f32.mrb[0].mxu0
        %v2939 = vadd.f32 %v2773, %v2938
        %v2940 = vpop.f32.mrb[0].mxu0
        %2941 = vmatprep.mubr.bf16.mxu0 %v2851
        %2942 = vmatmul.mubr.bf16.gmra.mrb[0].mxu0 %v2748
        %v2943 = vpop.f32.mrb[0].mxu0
        %v2944 = vadd.f32 %v2773, %v2943
        %v2945 = vpop.f32.mrb[0].mxu0
        %v2946 = vpop.f32.mrb[0].mxu0
        %v2947 = vadd.f32 %v2773, %v2946
        %v2948 = vpop.f32.mrb[0].mxu0
        %2949 = vdwg.mxu0
        %v2950 = vmax.f32 %v2888, 0.0
        %v2951 = vmax.f32 %v2891, 0.0
        %v2952 = vmax.f32 %v2896, 0.0
        %v2953 = vmax.f32 %v2899, 0.0
        %v2954 = vmax.f32 %v2904, 0.0
        %v2955 = vmax.f32 %v2907, 0.0
        %v2956 = vmax.f32 %v2912, 0.0
        %v2957 = vmax.f32 %v2915, 0.0
        %v2958 = vmax.f32 %v2920, 0.0
        %v2959 = vmax.f32 %v2923, 0.0
        %v2960 = vmax.f32 %v2928, 0.0
        %v2961 = vmax.f32 %v2931, 0.0
        %v2962 = vmax.f32 %v2936, 0.0
        %v2963 = vmax.f32 %v2939, 0.0
        %v2964 = vmax.f32 %v2944, 0.0
        %v2965 = vmax.f32 %v2947, 0.0
        %v2968 = vrot.slane %v2958, 7
        %vm2969 = vcmask 1041409
        %v2970 = vsel %vm2969, %v2968, %v2950
        %v2972 = vrot.slane %v2950, 1
        %v2973 = vsel %vm2969, %v2958, %v2972
        %2974 = vrot.lane.b32.xlu0 %v2973, 32
        %v2975 = vpop.permute.xlu0 %2974
        %v2977 = vrot.slane %v2950, 2
        %v2978 = vrot.slane %v2958, 1
        %v2979 = vsel %vm2969, %v2978, %v2977
        %2980 = vrot.lane.b32.xlu0 %v2979, 64
        %v2981 = vpop.permute.xlu0 %2980
        %v2983 = vrot.slane %v2950, 3
        %v2984 = vrot.slane %v2958, 2
        %v2985 = vsel %vm2969, %v2984, %v2983
        %2986 = vrot.lane.b32.xlu0 %v2985, 96
        %v2987 = vpop.permute.xlu0 %2986
        %v2989 = vrot.slane %v2950, 4
        %v2990 = vrot.slane %v2958, 3
        %v2991 = vsel %vm2969, %v2990, %v2989
        %v2993 = vrot.slane %v2950, 5
        %v2994 = vrot.slane %v2958, 4
        %v2995 = vsel %vm2969, %v2994, %v2993
        %2996 = vrot.lane.b32.xlu0 %v2995, 32
        %v2997 = vpop.permute.xlu0 %2996
        %v2999 = vrot.slane %v2950, 6
        %v3000 = vrot.slane %v2958, 5
        %v3001 = vsel %vm2969, %v3000, %v2999
        %3002 = vrot.lane.b32.xlu0 %v3001, 64
        %v3003 = vpop.permute.xlu0 %3002
        %v3005 = vrot.slane %v2950, 7
        %v3006 = vrot.slane %v2958, 6
        %v3007 = vsel %vm2969, %v3006, %v3005
        %3008 = vrot.lane.b32.xlu0 %v3007, 96
        %v3009 = vpop.permute.xlu0 %3008
        %v3013 = vrot.slane %v2959, 7
        %v3014 = vsel %vm2969, %v3013, %v2951
        %v3016 = vrot.slane %v2951, 1
        %v3017 = vsel %vm2969, %v2959, %v3016
        %3018 = vrot.lane.b32.xlu0 %v3017, 32
        %v3019 = vpop.permute.xlu0 %3018
        %v3021 = vrot.slane %v2951, 2
        %v3022 = vrot.slane %v2959, 1
        %v3023 = vsel %vm2969, %v3022, %v3021
        %3024 = vrot.lane.b32.xlu0 %v3023, 64
        %v3025 = vpop.permute.xlu0 %3024
        %v3027 = vrot.slane %v2951, 3
        %v3028 = vrot.slane %v2959, 2
        %v3029 = vsel %vm2969, %v3028, %v3027
        %3030 = vrot.lane.b32.xlu0 %v3029, 96
        %v3031 = vpop.permute.xlu0 %3030
        %v3033 = vrot.slane %v2951, 4
        %v3034 = vrot.slane %v2959, 3
        %v3035 = vsel %vm2969, %v3034, %v3033
        %v3037 = vrot.slane %v2951, 5
        %v3038 = vrot.slane %v2959, 4
        %v3039 = vsel %vm2969, %v3038, %v3037
        %3040 = vrot.lane.b32.xlu0 %v3039, 32
        %v3041 = vpop.permute.xlu0 %3040
        %v3043 = vrot.slane %v2951, 6
        %v3044 = vrot.slane %v2959, 5
        %v3045 = vsel %vm2969, %v3044, %v3043
        %3046 = vrot.lane.b32.xlu0 %v3045, 64
        %v3047 = vpop.permute.xlu0 %3046
        %v3049 = vrot.slane %v2951, 7
        %v3050 = vrot.slane %v2959, 6
        %v3051 = vsel %vm2969, %v3050, %v3049
        %3052 = vrot.lane.b32.xlu0 %v3051, 96
        %v3053 = vpop.permute.xlu0 %3052
        %v3055 = vsel %vm2632, %v2970, %v2975
        %v3056 = vsel %vm2666, %v3055, %v2981
        %v3057 = vsel %vm2700, %v3056, %v2987
        %v3058 = vsel %vm2632, %v2991, %v2997
        %v3059 = vsel %vm2666, %v3058, %v3003
        %v3060 = vsel %vm2700, %v3059, %v3009
        %v3061 = vsel %vm2632, %v3014, %v3019
        %v3062 = vsel %vm2666, %v3061, %v3025
        %v3063 = vsel %vm2700, %v3062, %v3031
        %v3064 = vsel %vm2632, %v3035, %v3041
        %v3065 = vsel %vm2666, %v3064, %v3047
        %v3066 = vsel %vm2700, %v3065, %v3053
        %v3069 = vrot.slane %v2960, 7
        %v3070 = vsel %vm2969, %v3069, %v2952
        %v3072 = vrot.slane %v2952, 1
        %v3073 = vsel %vm2969, %v2960, %v3072
        %3074 = vrot.lane.b32.xlu0 %v3073, 32
        %v3075 = vpop.permute.xlu0 %3074
        %v3077 = vrot.slane %v2952, 2
        %v3078 = vrot.slane %v2960, 1
        %v3079 = vsel %vm2969, %v3078, %v3077
        %3080 = vrot.lane.b32.xlu0 %v3079, 64
        %v3081 = vpop.permute.xlu0 %3080
        %v3083 = vrot.slane %v2952, 3
        %v3084 = vrot.slane %v2960, 2
        %v3085 = vsel %vm2969, %v3084, %v3083
        %3086 = vrot.lane.b32.xlu0 %v3085, 96
        %v3087 = vpop.permute.xlu0 %3086
        %v3089 = vrot.slane %v2952, 4
        %v3090 = vrot.slane %v2960, 3
        %v3091 = vsel %vm2969, %v3090, %v3089
        %v3093 = vrot.slane %v2952, 5
        %v3094 = vrot.slane %v2960, 4
        %v3095 = vsel %vm2969, %v3094, %v3093
        %3096 = vrot.lane.b32.xlu0 %v3095, 32
        %v3097 = vpop.permute.xlu0 %3096
        %v3099 = vrot.slane %v2952, 6
        %v3100 = vrot.slane %v2960, 5
        %v3101 = vsel %vm2969, %v3100, %v3099
        %3102 = vrot.lane.b32.xlu0 %v3101, 64
        %v3103 = vpop.permute.xlu0 %3102
        %v3105 = vrot.slane %v2952, 7
        %v3106 = vrot.slane %v2960, 6
        %v3107 = vsel %vm2969, %v3106, %v3105
        %3108 = vrot.lane.b32.xlu0 %v3107, 96
        %v3109 = vpop.permute.xlu0 %3108
        %v3113 = vrot.slane %v2961, 7
        %v3114 = vsel %vm2969, %v3113, %v2953
        %v3116 = vrot.slane %v2953, 1
        %v3117 = vsel %vm2969, %v2961, %v3116
        %3118 = vrot.lane.b32.xlu0 %v3117, 32
        %v3119 = vpop.permute.xlu0 %3118
        %v3121 = vrot.slane %v2953, 2
        %v3122 = vrot.slane %v2961, 1
        %v3123 = vsel %vm2969, %v3122, %v3121
        %3124 = vrot.lane.b32.xlu0 %v3123, 64
        %v3125 = vpop.permute.xlu0 %3124
        %v3127 = vrot.slane %v2953, 3
        %v3128 = vrot.slane %v2961, 2
        %v3129 = vsel %vm2969, %v3128, %v3127
        %3130 = vrot.lane.b32.xlu0 %v3129, 96
        %v3131 = vpop.permute.xlu0 %3130
        %v3133 = vrot.slane %v2953, 4
        %v3134 = vrot.slane %v2961, 3
        %v3135 = vsel %vm2969, %v3134, %v3133
        %v3137 = vrot.slane %v2953, 5
        %v3138 = vrot.slane %v2961, 4
        %v3139 = vsel %vm2969, %v3138, %v3137
        %3140 = vrot.lane.b32.xlu0 %v3139, 32
        %v3141 = vpop.permute.xlu0 %3140
        %v3143 = vrot.slane %v2953, 6
        %v3144 = vrot.slane %v2961, 5
        %v3145 = vsel %vm2969, %v3144, %v3143
        %3146 = vrot.lane.b32.xlu0 %v3145, 64
        %v3147 = vpop.permute.xlu0 %3146
        %v3149 = vrot.slane %v2953, 7
        %v3150 = vrot.slane %v2961, 6
        %v3151 = vsel %vm2969, %v3150, %v3149
        %3152 = vrot.lane.b32.xlu0 %v3151, 96
        %v3153 = vpop.permute.xlu0 %3152
        %v3155 = vsel %vm2632, %v3070, %v3075
        %v3156 = vsel %vm2666, %v3155, %v3081
        %v3157 = vsel %vm2700, %v3156, %v3087
        %v3158 = vsel %vm2632, %v3091, %v3097
        %v3159 = vsel %vm2666, %v3158, %v3103
        %v3160 = vsel %vm2700, %v3159, %v3109
        %v3161 = vsel %vm2632, %v3114, %v3119
        %v3162 = vsel %vm2666, %v3161, %v3125
        %v3163 = vsel %vm2700, %v3162, %v3131
        %v3164 = vsel %vm2632, %v3135, %v3141
        %v3165 = vsel %vm2666, %v3164, %v3147
        %v3166 = vsel %vm2700, %v3165, %v3153
        %v3169 = vrot.slane %v2962, 7
        %v3170 = vsel %vm2969, %v3169, %v2954
        %v3172 = vrot.slane %v2954, 1
        %v3173 = vsel %vm2969, %v2962, %v3172
        %3174 = vrot.lane.b32.xlu0 %v3173, 32
        %v3175 = vpop.permute.xlu0 %3174
        %v3177 = vrot.slane %v2954, 2
        %v3178 = vrot.slane %v2962, 1
        %v3179 = vsel %vm2969, %v3178, %v3177
        %3180 = vrot.lane.b32.xlu0 %v3179, 64
        %v3181 = vpop.permute.xlu0 %3180
        %v3183 = vrot.slane %v2954, 3
        %v3184 = vrot.slane %v2962, 2
        %v3185 = vsel %vm2969, %v3184, %v3183
        %3186 = vrot.lane.b32.xlu0 %v3185, 96
        %v3187 = vpop.permute.xlu0 %3186
        %v3189 = vrot.slane %v2954, 4
        %v3190 = vrot.slane %v2962, 3
        %v3191 = vsel %vm2969, %v3190, %v3189
        %v3193 = vrot.slane %v2954, 5
        %v3194 = vrot.slane %v2962, 4
        %v3195 = vsel %vm2969, %v3194, %v3193
        %3196 = vrot.lane.b32.xlu0 %v3195, 32
        %v3197 = vpop.permute.xlu0 %3196
        %v3199 = vrot.slane %v2954, 6
        %v3200 = vrot.slane %v2962, 5
        %v3201 = vsel %vm2969, %v3200, %v3199
        %3202 = vrot.lane.b32.xlu0 %v3201, 64
        %v3203 = vpop.permute.xlu0 %3202
        %v3205 = vrot.slane %v2954, 7
        %v3206 = vrot.slane %v2962, 6
        %v3207 = vsel %vm2969, %v3206, %v3205
        %3208 = vrot.lane.b32.xlu0 %v3207, 96
        %v3209 = vpop.permute.xlu0 %3208
        %v3213 = vrot.slane %v2963, 7
        %v3214 = vsel %vm2969, %v3213, %v2955
        %v3216 = vrot.slane %v2955, 1
        %v3217 = vsel %vm2969, %v2963, %v3216
        %3218 = vrot.lane.b32.xlu0 %v3217, 32
        %v3219 = vpop.permute.xlu0 %3218
        %v3221 = vrot.slane %v2955, 2
        %v3222 = vrot.slane %v2963, 1
        %v3223 = vsel %vm2969, %v3222, %v3221
        %3224 = vrot.lane.b32.xlu0 %v3223, 64
        %v3225 = vpop.permute.xlu0 %3224
        %v3227 = vrot.slane %v2955, 3
        %v3228 = vrot.slane %v2963, 2
        %v3229 = vsel %vm2969, %v3228, %v3227
        %3230 = vrot.lane.b32.xlu0 %v3229, 96
        %v3231 = vpop.permute.xlu0 %3230
        %v3233 = vrot.slane %v2955, 4
        %v3234 = vrot.slane %v2963, 3
        %v3235 = vsel %vm2969, %v3234, %v3233
        %v3237 = vrot.slane %v2955, 5
        %v3238 = vrot.slane %v2963, 4
        %v3239 = vsel %vm2969, %v3238, %v3237
        %3240 = vrot.lane.b32.xlu0 %v3239, 32
        %v3241 = vpop.permute.xlu0 %3240
        %v3243 = vrot.slane %v2955, 6
        %v3244 = vrot.slane %v2963, 5
        %v3245 = vsel %vm2969, %v3244, %v3243
        %3246 = vrot.lane.b32.xlu0 %v3245, 64
        %v3247 = vpop.permute.xlu0 %3246
        %v3249 = vrot.slane %v2955, 7
        %v3250 = vrot.slane %v2963, 6
        %v3251 = vsel %vm2969, %v3250, %v3249
        %3252 = vrot.lane.b32.xlu0 %v3251, 96
        %v3253 = vpop.permute.xlu0 %3252
        %v3255 = vsel %vm2632, %v3170, %v3175
        %v3256 = vsel %vm2666, %v3255, %v3181
        %v3257 = vsel %vm2700, %v3256, %v3187
        %v3258 = vsel %vm2632, %v3191, %v3197
        %v3259 = vsel %vm2666, %v3258, %v3203
        %v3260 = vsel %vm2700, %v3259, %v3209
        %v3261 = vsel %vm2632, %v3214, %v3219
        %v3262 = vsel %vm2666, %v3261, %v3225
        %v3263 = vsel %vm2700, %v3262, %v3231
        %v3264 = vsel %vm2632, %v3235, %v3241
        %v3265 = vsel %vm2666, %v3264, %v3247
        %v3266 = vsel %vm2700, %v3265, %v3253
        %v3269 = vrot.slane %v2964, 7
        %v3270 = vsel %vm2969, %v3269, %v2956
        %v3272 = vrot.slane %v2956, 1
        %v3273 = vsel %vm2969, %v2964, %v3272
        %3274 = vrot.lane.b32.xlu0 %v3273, 32
        %v3275 = vpop.permute.xlu0 %3274
        %v3277 = vrot.slane %v2956, 2
        %v3278 = vrot.slane %v2964, 1
        %v3279 = vsel %vm2969, %v3278, %v3277
        %3280 = vrot.lane.b32.xlu0 %v3279, 64
        %v3281 = vpop.permute.xlu0 %3280
        %v3283 = vrot.slane %v2956, 3
        %v3284 = vrot.slane %v2964, 2
        %v3285 = vsel %vm2969, %v3284, %v3283
        %3286 = vrot.lane.b32.xlu0 %v3285, 96
        %v3287 = vpop.permute.xlu0 %3286
        %v3289 = vrot.slane %v2956, 4
        %v3290 = vrot.slane %v2964, 3
        %v3291 = vsel %vm2969, %v3290, %v3289
        %v3293 = vrot.slane %v2956, 5
        %v3294 = vrot.slane %v2964, 4
        %v3295 = vsel %vm2969, %v3294, %v3293
        %3296 = vrot.lane.b32.xlu0 %v3295, 32
        %v3297 = vpop.permute.xlu0 %3296
        %v3299 = vrot.slane %v2956, 6
        %v3300 = vrot.slane %v2964, 5
        %v3301 = vsel %vm2969, %v3300, %v3299
        %3302 = vrot.lane.b32.xlu0 %v3301, 64
        %v3303 = vpop.permute.xlu0 %3302
        %v3305 = vrot.slane %v2956, 7
        %v3306 = vrot.slane %v2964, 6
        %v3307 = vsel %vm2969, %v3306, %v3305
        %3308 = vrot.lane.b32.xlu0 %v3307, 96
        %v3309 = vpop.permute.xlu0 %3308
        %v3313 = vrot.slane %v2965, 7
        %v3314 = vsel %vm2969, %v3313, %v2957
        %v3316 = vrot.slane %v2957, 1
        %v3317 = vsel %vm2969, %v2965, %v3316
        %3318 = vrot.lane.b32.xlu0 %v3317, 32
        %v3319 = vpop.permute.xlu0 %3318
        %v3321 = vrot.slane %v2957, 2
        %v3322 = vrot.slane %v2965, 1
        %v3323 = vsel %vm2969, %v3322, %v3321
        %3324 = vrot.lane.b32.xlu0 %v3323, 64
        %v3325 = vpop.permute.xlu0 %3324
        %v3327 = vrot.slane %v2957, 3
        %v3328 = vrot.slane %v2965, 2
        %v3329 = vsel %vm2969, %v3328, %v3327
        %3330 = vrot.lane.b32.xlu0 %v3329, 96
        %v3331 = vpop.permute.xlu0 %3330
        %v3333 = vrot.slane %v2957, 4
        %v3334 = vrot.slane %v2965, 3
        %v3335 = vsel %vm2969, %v3334, %v3333
        %v3337 = vrot.slane %v2957, 5
        %v3338 = vrot.slane %v2965, 4
        %v3339 = vsel %vm2969, %v3338, %v3337
        %3340 = vrot.lane.b32.xlu0 %v3339, 32
        %v3341 = vpop.permute.xlu0 %3340
        %v3343 = vrot.slane %v2957, 6
        %v3344 = vrot.slane %v2965, 5
        %v3345 = vsel %vm2969, %v3344, %v3343
        %3346 = vrot.lane.b32.xlu0 %v3345, 64
        %v3347 = vpop.permute.xlu0 %3346
        %v3349 = vrot.slane %v2957, 7
        %v3350 = vrot.slane %v2965, 6
        %v3351 = vsel %vm2969, %v3350, %v3349
        %3352 = vrot.lane.b32.xlu0 %v3351, 96
        %v3353 = vpop.permute.xlu0 %3352
        %v3355 = vsel %vm2632, %v3270, %v3275
        %v3356 = vsel %vm2666, %v3355, %v3281
        %v3357 = vsel %vm2700, %v3356, %v3287
        %v3358 = vsel %vm2632, %v3291, %v3297
        %v3359 = vsel %vm2666, %v3358, %v3303
        %v3360 = vsel %vm2700, %v3359, %v3309
        %v3361 = vsel %vm2632, %v3314, %v3319
        %v3362 = vsel %vm2666, %v3361, %v3325
        %v3363 = vsel %vm2700, %v3362, %v3331
        %v3364 = vsel %vm2632, %v3335, %v3341
        %v3365 = vsel %vm2666, %v3364, %v3347
        %v3366 = vsel %vm2700, %v3365, %v3353
        %v3367 = vpack.c.bf16 %v3057, %v3057
        %v3368 = vpack.c.bf16 %v3060, %v3060
        %v3369 = vpack.c.bf16 %v3063, %v3063
        %v3370 = vpack.c.bf16 %v3066, %v3066
        %v3371 = vpack.c.bf16 %v3157, %v3157
        %v3372 = vpack.c.bf16 %v3160, %v3160
        %v3373 = vpack.c.bf16 %v3163, %v3163
        %v3374 = vpack.c.bf16 %v3166, %v3166
        %v3375 = vpack.c.bf16 %v3257, %v3257
        %v3376 = vpack.c.bf16 %v3260, %v3260
        %v3377 = vpack.c.bf16 %v3263, %v3263
        %v3378 = vpack.c.bf16 %v3266, %v3266
        %v3379 = vpack.c.bf16 %v3357, %v3357
        %v3380 = vpack.c.bf16 %v3360, %v3360
        %v3381 = vpack.c.bf16 %v3363, %v3363
        %v3382 = vpack.c.bf16 %v3366, %v3366
        %v3383 = vld [vmem:[%s5] sm:$0xf]
        %v3384 = vld [vmem:[%s5 + $0x4] sm:$0xf]
        %v3385 = vld [vmem:[%s5 + $0x8] sm:$0xf]
        %v3386 = vld [vmem:[%s5 + $0xc] sm:$0xf]
        %v3387 = vld [vmem:[%s5 + $0x10] sm:$0xf]
        %v3388 = vld [vmem:[%s5 + $0x14] sm:$0xf]
        %v3389 = vld [vmem:[%s5 + $0x18] sm:$0xf]
        %v3390 = vld [vmem:[%s5 + $0x1c] sm:$0xf]
        %v3391 = vld [vmem:[%s5 + $0x20] sm:$0xf]
        %v3392 = vld [vmem:[%s5 + $0x24] sm:$0xf]
        %v3393 = vld [vmem:[%s5 + $0x28] sm:$0xf]
        %v3394 = vld [vmem:[%s5 + $0x2c] sm:$0xf]
        %v3395 = vld [vmem:[%s5 + $0x30] sm:$0xf]
        %v3396 = vld [vmem:[%s5 + $0x34] sm:$0xf]
        %v3397 = vld [vmem:[%s5 + $0x38] sm:$0xf]
        %v3398 = vld [vmem:[%s5 + $0x3c] sm:$0xf]
        %v3399 = vld [vmem:[%s5 + $0x40] sm:$0xf]
        %v3400 = vld [vmem:[%s5 + $0x44] sm:$0xf]
        %v3401 = vld [vmem:[%s5 + $0x48] sm:$0xf]
        %v3402 = vld [vmem:[%s5 + $0x4c] sm:$0xf]
        %v3403 = vld [vmem:[%s5 + $0x50] sm:$0xf]
        %v3404 = vld [vmem:[%s5 + $0x54] sm:$0xf]
        %v3405 = vld [vmem:[%s5 + $0x58] sm:$0xf]
        %v3406 = vld [vmem:[%s5 + $0x5c] sm:$0xf]
        %v3407 = vld [vmem:[%s5 + $0x60] sm:$0xf]
        %v3408 = vld [vmem:[%s5 + $0x64] sm:$0xf]
        %v3409 = vld [vmem:[%s5 + $0x68] sm:$0xf]
        %v3410 = vld [vmem:[%s5 + $0x6c] sm:$0xf]
        %v3411 = vld [vmem:[%s5 + $0x70] sm:$0xf]
        %v3412 = vld [vmem:[%s5 + $0x74] sm:$0xf]
        %v3413 = vld [vmem:[%s5 + $0x78] sm:$0xf]
        %v3414 = vld [vmem:[%s5 + $0x7c] sm:$0xf]
        %v3415 = vld [vmem:[%s5 + $0x80] sm:$0xf]
        %v3416 = vld [vmem:[%s5 + $0x84] sm:$0xf]
        %v3417 = vld [vmem:[%s5 + $0x88] sm:$0xf]
        %v3418 = vld [vmem:[%s5 + $0x8c] sm:$0xf]
        %v3419 = vld [vmem:[%s5 + $0x90] sm:$0xf]
        %v3420 = vld [vmem:[%s5 + $0x94] sm:$0xf]
        %v3421 = vld [vmem:[%s5 + $0x98] sm:$0xf]
        %v3422 = vld [vmem:[%s5 + $0x9c] sm:$0xf]
        %v3423 = vld [vmem:[%s5 + $0xa0] sm:$0xf]
        %v3424 = vld [vmem:[%s5 + $0xa4] sm:$0xf]
        %v3425 = vld [vmem:[%s5 + $0xa8] sm:$0xf]
        %v3426 = vld [vmem:[%s5 + $0xac] sm:$0xf]
        %v3427 = vld [vmem:[%s5 + $0xb0] sm:$0xf]
        %v3428 = vld [vmem:[%s5 + $0xb4] sm:$0xf]
        %v3429 = vld [vmem:[%s5 + $0xb8] sm:$0xf]
        %v3430 = vld [vmem:[%s5 + $0xbc] sm:$0xf]
        %v3431 = vld [vmem:[%s5 + $0xc0] sm:$0xf]
        %v3432 = vld [vmem:[%s5 + $0xc4] sm:$0xf]
        %v3433 = vld [vmem:[%s5 + $0xc8] sm:$0xf]
        %v3434 = vld [vmem:[%s5 + $0xcc] sm:$0xf]
        %v3435 = vld [vmem:[%s5 + $0xd0] sm:$0xf]
        %v3436 = vld [vmem:[%s5 + $0xd4] sm:$0xf]
        %v3437 = vld [vmem:[%s5 + $0xd8] sm:$0xf]
        %v3438 = vld [vmem:[%s5 + $0xdc] sm:$0xf]
        %v3439 = vld [vmem:[%s5 + $0xe0] sm:$0xf]
        %v3440 = vld [vmem:[%s5 + $0xe4] sm:$0xf]
        %v3441 = vld [vmem:[%s5 + $0xe8] sm:$0xf]
        %v3442 = vld [vmem:[%s5 + $0xec] sm:$0xf]
        %v3443 = vld [vmem:[%s5 + $0xf0] sm:$0xf]
        %v3444 = vld [vmem:[%s5 + $0xf4] sm:$0xf]
        %v3445 = vld [vmem:[%s5 + $0xf8] sm:$0xf]
        %v3446 = vld [vmem:[%s5 + $0xfc] sm:$0xf]
        %v3447 = vld [vmem:[%s5 + $0x100] sm:$0xf]
        %v3448 = vld [vmem:[%s5 + $0x104] sm:$0xf]
        %v3449 = vld [vmem:[%s5 + $0x108] sm:$0xf]
        %v3450 = vld [vmem:[%s5 + $0x10c] sm:$0xf]
        %v3451 = vld [vmem:[%s5 + $0x110] sm:$0xf]
        %v3452 = vld [vmem:[%s5 + $0x114] sm:$0xf]
        %v3453 = vld [vmem:[%s5 + $0x118] sm:$0xf]
        %v3454 = vld [vmem:[%s5 + $0x11c] sm:$0xf]
        %v3455 = vld [vmem:[%s5 + $0x120] sm:$0xf]
        %v3456 = vld [vmem:[%s5 + $0x124] sm:$0xf]
        %v3457 = vld [vmem:[%s5 + $0x128] sm:$0xf]
        %v3458 = vld [vmem:[%s5 + $0x12c] sm:$0xf]
        %v3459 = vld [vmem:[%s5 + $0x130] sm:$0xf]
        %v3460 = vld [vmem:[%s5 + $0x134] sm:$0xf]
        %v3461 = vld [vmem:[%s5 + $0x138] sm:$0xf]
        %v3462 = vld [vmem:[%s5 + $0x13c] sm:$0xf]
        %v3463 = vld [vmem:[%s5 + $0x140] sm:$0xf]
        %v3464 = vld [vmem:[%s5 + $0x144] sm:$0xf]
        %v3465 = vld [vmem:[%s5 + $0x148] sm:$0xf]
        %v3466 = vld [vmem:[%s5 + $0x14c] sm:$0xf]
        %v3467 = vld [vmem:[%s5 + $0x150] sm:$0xf]
        %v3468 = vld [vmem:[%s5 + $0x154] sm:$0xf]
        %v3469 = vld [vmem:[%s5 + $0x158] sm:$0xf]
        %v3470 = vld [vmem:[%s5 + $0x15c] sm:$0xf]
        %v3471 = vld [vmem:[%s5 + $0x160] sm:$0xf]
        %v3472 = vld [vmem:[%s5 + $0x164] sm:$0xf]
        %v3473 = vld [vmem:[%s5 + $0x168] sm:$0xf]
        %v3474 = vld [vmem:[%s5 + $0x16c] sm:$0xf]
        %v3475 = vld [vmem:[%s5 + $0x170] sm:$0xf]
        %v3476 = vld [vmem:[%s5 + $0x174] sm:$0xf]
        %v3477 = vld [vmem:[%s5 + $0x178] sm:$0xf]
        %v3478 = vld [vmem:[%s5 + $0x17c] sm:$0xf]
        %v3479 = vld [vmem:[%s5 + $0x180] sm:$0xf]
        %v3480 = vld [vmem:[%s5 + $0x184] sm:$0xf]
        %v3481 = vld [vmem:[%s5 + $0x188] sm:$0xf]
        %v3482 = vld [vmem:[%s5 + $0x18c] sm:$0xf]
        %v3483 = vld [vmem:[%s5 + $0x190] sm:$0xf]
        %v3484 = vld [vmem:[%s5 + $0x194] sm:$0xf]
        %v3485 = vld [vmem:[%s5 + $0x198] sm:$0xf]
        %v3486 = vld [vmem:[%s5 + $0x19c] sm:$0xf]
        %v3487 = vld [vmem:[%s5 + $0x1a0] sm:$0xf]
        %v3488 = vld [vmem:[%s5 + $0x1a4] sm:$0xf]
        %v3489 = vld [vmem:[%s5 + $0x1a8] sm:$0xf]
        %v3490 = vld [vmem:[%s5 + $0x1ac] sm:$0xf]
        %v3491 = vld [vmem:[%s5 + $0x1b0] sm:$0xf]
        %v3492 = vld [vmem:[%s5 + $0x1b4] sm:$0xf]
        %v3493 = vld [vmem:[%s5 + $0x1b8] sm:$0xf]
        %v3494 = vld [vmem:[%s5 + $0x1bc] sm:$0xf]
        %v3495 = vld [vmem:[%s5 + $0x1c0] sm:$0xf]
        %v3496 = vld [vmem:[%s5 + $0x1c4] sm:$0xf]
        %v3497 = vld [vmem:[%s5 + $0x1c8] sm:$0xf]
        %v3498 = vld [vmem:[%s5 + $0x1cc] sm:$0xf]
        %v3499 = vld [vmem:[%s5 + $0x1d0] sm:$0xf]
        %v3500 = vld [vmem:[%s5 + $0x1d4] sm:$0xf]
        %v3501 = vld [vmem:[%s5 + $0x1d8] sm:$0xf]
        %v3502 = vld [vmem:[%s5 + $0x1dc] sm:$0xf]
        %v3503 = vld [vmem:[%s5 + $0x1e0] sm:$0xf]
        %v3504 = vld [vmem:[%s5 + $0x1e4] sm:$0xf]
        %v3505 = vld [vmem:[%s5 + $0x1e8] sm:$0xf]
        %v3506 = vld [vmem:[%s5 + $0x1ec] sm:$0xf]
        %v3507 = vld [vmem:[%s5 + $0x1f0] sm:$0xf]
        %v3508 = vld [vmem:[%s5 + $0x1f4] sm:$0xf]
        %v3509 = vld [vmem:[%s5 + $0x1f8] sm:$0xf]
        %v3510 = vld [vmem:[%s5 + $0x1fc] sm:$0xf]
        %v3511 = vld [vmem:[%s5 + $0x200] sm:$0xf]
        %v3512 = vld [vmem:[%s5 + $0x204] sm:$0xf]
        %v3513 = vld [vmem:[%s5 + $0x208] sm:$0xf]
        %v3514 = vld [vmem:[%s5 + $0x20c] sm:$0xf]
        %v3515 = vld [vmem:[%s5 + $0x210] sm:$0xf]
        %v3516 = vld [vmem:[%s5 + $0x214] sm:$0xf]
        %v3517 = vld [vmem:[%s5 + $0x218] sm:$0xf]
        %v3518 = vld [vmem:[%s5 + $0x21c] sm:$0xf]
        %v3519 = vld [vmem:[%s5 + $0x220] sm:$0xf]
        %v3520 = vld [vmem:[%s5 + $0x224] sm:$0xf]
        %v3521 = vld [vmem:[%s5 + $0x228] sm:$0xf]
        %v3522 = vld [vmem:[%s5 + $0x22c] sm:$0xf]
        %v3523 = vld [vmem:[%s5 + $0x230] sm:$0xf]
        %v3524 = vld [vmem:[%s5 + $0x234] sm:$0xf]
        %v3525 = vld [vmem:[%s5 + $0x238] sm:$0xf]
        %v3526 = vld [vmem:[%s5 + $0x23c] sm:$0xf]
        %v3527 = vld [vmem:[%s5 + $0x240] sm:$0xf]
        %v3528 = vld [vmem:[%s5 + $0x244] sm:$0xf]
        %v3529 = vld [vmem:[%s5 + $0x248] sm:$0xf]
        %v3530 = vld [vmem:[%s5 + $0x24c] sm:$0xf]
        %v3531 = vld [vmem:[%s5 + $0x250] sm:$0xf]
        %v3532 = vld [vmem:[%s5 + $0x254] sm:$0xf]
        %v3533 = vld [vmem:[%s5 + $0x258] sm:$0xf]
        %v3534 = vld [vmem:[%s5 + $0x25c] sm:$0xf]
        %v3535 = vld [vmem:[%s5 + $0x260] sm:$0xf]
        %v3536 = vld [vmem:[%s5 + $0x264] sm:$0xf]
        %v3537 = vld [vmem:[%s5 + $0x268] sm:$0xf]
        %v3538 = vld [vmem:[%s5 + $0x26c] sm:$0xf]
        %v3539 = vld [vmem:[%s5 + $0x270] sm:$0xf]
        %v3540 = vld [vmem:[%s5 + $0x274] sm:$0xf]
        %v3541 = vld [vmem:[%s5 + $0x278] sm:$0xf]
        %v3542 = vld [vmem:[%s5 + $0x27c] sm:$0xf]
        %v3543 = vld [vmem:[%s5 + $0x280] sm:$0xf]
        %v3544 = vld [vmem:[%s5 + $0x284] sm:$0xf]
        %v3545 = vld [vmem:[%s5 + $0x288] sm:$0xf]
        %v3546 = vld [vmem:[%s5 + $0x28c] sm:$0xf]
        %v3547 = vld [vmem:[%s5 + $0x290] sm:$0xf]
        %v3548 = vld [vmem:[%s5 + $0x294] sm:$0xf]
        %v3549 = vld [vmem:[%s5 + $0x298] sm:$0xf]
        %v3550 = vld [vmem:[%s5 + $0x29c] sm:$0xf]
        %v3551 = vld [vmem:[%s5 + $0x2a0] sm:$0xf]
        %v3552 = vld [vmem:[%s5 + $0x2a4] sm:$0xf]
        %v3553 = vld [vmem:[%s5 + $0x2a8] sm:$0xf]
        %v3554 = vld [vmem:[%s5 + $0x2ac] sm:$0xf]
        %v3555 = vld [vmem:[%s5 + $0x2b0] sm:$0xf]
        %v3556 = vld [vmem:[%s5 + $0x2b4] sm:$0xf]
        %v3557 = vld [vmem:[%s5 + $0x2b8] sm:$0xf]
        %v3558 = vld [vmem:[%s5 + $0x2bc] sm:$0xf]
        %v3559 = vld [vmem:[%s5 + $0x2c0] sm:$0xf]
        %v3560 = vld [vmem:[%s5 + $0x2c4] sm:$0xf]
        %v3561 = vld [vmem:[%s5 + $0x2c8] sm:$0xf]
        %v3562 = vld [vmem:[%s5 + $0x2cc] sm:$0xf]
        %v3563 = vld [vmem:[%s5 + $0x2d0] sm:$0xf]
        %v3564 = vld [vmem:[%s5 + $0x2d4] sm:$0xf]
        %v3565 = vld [vmem:[%s5 + $0x2d8] sm:$0xf]
        %v3566 = vld [vmem:[%s5 + $0x2dc] sm:$0xf]
        %v3567 = vld [vmem:[%s5 + $0x2e0] sm:$0xf]
        %v3568 = vld [vmem:[%s5 + $0x2e4] sm:$0xf]
        %v3569 = vld [vmem:[%s5 + $0x2e8] sm:$0xf]
        %v3570 = vld [vmem:[%s5 + $0x2ec] sm:$0xf]
        %v3571 = vld [vmem:[%s5 + $0x2f0] sm:$0xf]
        %v3572 = vld [vmem:[%s5 + $0x2f4] sm:$0xf]
        %v3573 = vld [vmem:[%s5 + $0x2f8] sm:$0xf]
        %v3574 = vld [vmem:[%s5 + $0x2fc] sm:$0xf]
        %v3575 = vld [vmem:[%s5 + $0x300] sm:$0xf]
        %v3576 = vld [vmem:[%s5 + $0x304] sm:$0xf]
        %v3577 = vld [vmem:[%s5 + $0x308] sm:$0xf]
        %v3578 = vld [vmem:[%s5 + $0x30c] sm:$0xf]
        %v3579 = vld [vmem:[%s5 + $0x310] sm:$0xf]
        %v3580 = vld [vmem:[%s5 + $0x314] sm:$0xf]
        %v3581 = vld [vmem:[%s5 + $0x318] sm:$0xf]
        %v3582 = vld [vmem:[%s5 + $0x31c] sm:$0xf]
        %v3583 = vld [vmem:[%s5 + $0x320] sm:$0xf]
        %v3584 = vld [vmem:[%s5 + $0x324] sm:$0xf]
        %v3585 = vld [vmem:[%s5 + $0x328] sm:$0xf]
        %v3586 = vld [vmem:[%s5 + $0x32c] sm:$0xf]
        %v3587 = vld [vmem:[%s5 + $0x330] sm:$0xf]
        %v3588 = vld [vmem:[%s5 + $0x334] sm:$0xf]
        %v3589 = vld [vmem:[%s5 + $0x338] sm:$0xf]
        %v3590 = vld [vmem:[%s5 + $0x33c] sm:$0xf]
        %v3591 = vld [vmem:[%s5 + $0x340] sm:$0xf]
        %v3592 = vld [vmem:[%s5 + $0x344] sm:$0xf]
        %v3593 = vld [vmem:[%s5 + $0x348] sm:$0xf]
        %v3594 = vld [vmem:[%s5 + $0x34c] sm:$0xf]
        %v3595 = vld [vmem:[%s5 + $0x350] sm:$0xf]
        %v3596 = vld [vmem:[%s5 + $0x354] sm:$0xf]
        %v3597 = vld [vmem:[%s5 + $0x358] sm:$0xf]
        %v3598 = vld [vmem:[%s5 + $0x35c] sm:$0xf]
        %v3599 = vld [vmem:[%s5 + $0x360] sm:$0xf]
        %v3600 = vld [vmem:[%s5 + $0x364] sm:$0xf]
        %v3601 = vld [vmem:[%s5 + $0x368] sm:$0xf]
        %v3602 = vld [vmem:[%s5 + $0x36c] sm:$0xf]
        %v3603 = vld [vmem:[%s5 + $0x370] sm:$0xf]
        %v3604 = vld [vmem:[%s5 + $0x374] sm:$0xf]
        %v3605 = vld [vmem:[%s5 + $0x378] sm:$0xf]
        %v3606 = vld [vmem:[%s5 + $0x37c] sm:$0xf]
        %v3607 = vld [vmem:[%s5 + $0x380] sm:$0xf]
        %v3608 = vld [vmem:[%s5 + $0x384] sm:$0xf]
        %v3609 = vld [vmem:[%s5 + $0x388] sm:$0xf]
        %v3610 = vld [vmem:[%s5 + $0x38c] sm:$0xf]
        %v3611 = vld [vmem:[%s5 + $0x390] sm:$0xf]
        %v3612 = vld [vmem:[%s5 + $0x394] sm:$0xf]
        %v3613 = vld [vmem:[%s5 + $0x398] sm:$0xf]
        %v3614 = vld [vmem:[%s5 + $0x39c] sm:$0xf]
        %v3615 = vld [vmem:[%s5 + $0x3a0] sm:$0xf]
        %v3616 = vld [vmem:[%s5 + $0x3a4] sm:$0xf]
        %v3617 = vld [vmem:[%s5 + $0x3a8] sm:$0xf]
        %v3618 = vld [vmem:[%s5 + $0x3ac] sm:$0xf]
        %v3619 = vld [vmem:[%s5 + $0x3b0] sm:$0xf]
        %v3620 = vld [vmem:[%s5 + $0x3b4] sm:$0xf]
        %v3621 = vld [vmem:[%s5 + $0x3b8] sm:$0xf]
        %v3622 = vld [vmem:[%s5 + $0x3bc] sm:$0xf]
        %v3623 = vld [vmem:[%s5 + $0x3c0] sm:$0xf]
        %v3624 = vld [vmem:[%s5 + $0x3c4] sm:$0xf]
        %v3625 = vld [vmem:[%s5 + $0x3c8] sm:$0xf]
        %v3626 = vld [vmem:[%s5 + $0x3cc] sm:$0xf]
        %v3627 = vld [vmem:[%s5 + $0x3d0] sm:$0xf]
        %v3628 = vld [vmem:[%s5 + $0x3d4] sm:$0xf]
        %v3629 = vld [vmem:[%s5 + $0x3d8] sm:$0xf]
        %v3630 = vld [vmem:[%s5 + $0x3dc] sm:$0xf]
        %v3631 = vld [vmem:[%s5 + $0x3e0] sm:$0xf]
        %v3632 = vld [vmem:[%s5 + $0x3e4] sm:$0xf]
        %v3633 = vld [vmem:[%s5 + $0x3e8] sm:$0xf]
        %v3634 = vld [vmem:[%s5 + $0x3ec] sm:$0xf]
        %v3635 = vld [vmem:[%s5 + $0x3f0] sm:$0xf]
        %v3636 = vld [vmem:[%s5 + $0x3f4] sm:$0xf]
        %v3637 = vld [vmem:[%s5 + $0x3f8] sm:$0xf]
        %v3638 = vld [vmem:[%s5 + $0x3fc] sm:$0xf]
        %v3639 = vld [vmem:[%s6] sm:$0x1]
        %v3641 = vlaneseq
        %v3642 = vshrl.u32 %v3641, 7
        %v3643 = vsub.s32 0, %v3642
        %v3644 = vrot.slane %v3639, %v3643
        %v3902 = vunpack.c.l.b16 %v3383
        %v3903 = vunpack.c.l.b16 %v3384
        %v3904 = vunpack.c.l.b16 %v3385
        %v3905 = vunpack.c.l.b16 %v3386
        %v3906 = vunpack.c.l.b16 %v3387
        %v3907 = vunpack.c.l.b16 %v3388
        %v3908 = vunpack.c.l.b16 %v3389
        %v3909 = vunpack.c.l.b16 %v3390
        %v3910 = vunpack.c.l.b16 %v3391
        %v3911 = vunpack.c.l.b16 %v3392
        %v3912 = vunpack.c.l.b16 %v3393
        %v3913 = vunpack.c.l.b16 %v3394
        %v3914 = vunpack.c.l.b16 %v3395
        %v3915 = vunpack.c.l.b16 %v3396
        %v3916 = vunpack.c.l.b16 %v3397
        %v3917 = vunpack.c.l.b16 %v3398
        %v3918 = vunpack.c.l.b16 %v3399
        %v3919 = vunpack.c.l.b16 %v3400
        %v3920 = vunpack.c.l.b16 %v3401
        %v3921 = vunpack.c.l.b16 %v3402
        %v3922 = vunpack.c.l.b16 %v3403
        %v3923 = vunpack.c.l.b16 %v3404
        %v3924 = vunpack.c.l.b16 %v3405
        %v3925 = vunpack.c.l.b16 %v3406
        %v3926 = vunpack.c.l.b16 %v3407
        %v3927 = vunpack.c.l.b16 %v3408
        %v3928 = vunpack.c.l.b16 %v3409
        %v3929 = vunpack.c.l.b16 %v3410
        %v3930 = vunpack.c.l.b16 %v3411
        %v3931 = vunpack.c.l.b16 %v3412
        %v3932 = vunpack.c.l.b16 %v3413
        %v3933 = vunpack.c.l.b16 %v3414
        %v3934 = vunpack.c.l.b16 %v3415
        %v3935 = vunpack.c.l.b16 %v3416
        %v3936 = vunpack.c.l.b16 %v3417
        %v3937 = vunpack.c.l.b16 %v3418
        %v3938 = vunpack.c.l.b16 %v3419
        %v3939 = vunpack.c.l.b16 %v3420
        %v3940 = vunpack.c.l.b16 %v3421
        %v3941 = vunpack.c.l.b16 %v3422
        %v3942 = vunpack.c.l.b16 %v3423
        %v3943 = vunpack.c.l.b16 %v3424
        %v3944 = vunpack.c.l.b16 %v3425
        %v3945 = vunpack.c.l.b16 %v3426
        %v3946 = vunpack.c.l.b16 %v3427
        %v3947 = vunpack.c.l.b16 %v3428
        %v3948 = vunpack.c.l.b16 %v3429
        %v3949 = vunpack.c.l.b16 %v3430
        %v3950 = vunpack.c.l.b16 %v3431
        %v3951 = vunpack.c.l.b16 %v3432
        %v3952 = vunpack.c.l.b16 %v3433
        %v3953 = vunpack.c.l.b16 %v3434
        %v3954 = vunpack.c.l.b16 %v3435
        %v3955 = vunpack.c.l.b16 %v3436
        %v3956 = vunpack.c.l.b16 %v3437
        %v3957 = vunpack.c.l.b16 %v3438
        %v3958 = vunpack.c.l.b16 %v3439
        %v3959 = vunpack.c.l.b16 %v3440
        %v3960 = vunpack.c.l.b16 %v3441
        %v3961 = vunpack.c.l.b16 %v3442
        %v3962 = vunpack.c.l.b16 %v3443
        %v3963 = vunpack.c.l.b16 %v3444
        %v3964 = vunpack.c.l.b16 %v3445
        %v3965 = vunpack.c.l.b16 %v3446
        %v3966 = vunpack.c.l.b16 %v3447
        %v3967 = vunpack.c.l.b16 %v3448
        %v3968 = vunpack.c.l.b16 %v3449
        %v3969 = vunpack.c.l.b16 %v3450
        %v3970 = vunpack.c.l.b16 %v3451
        %v3971 = vunpack.c.l.b16 %v3452
        %v3972 = vunpack.c.l.b16 %v3453
        %v3973 = vunpack.c.l.b16 %v3454
        %v3974 = vunpack.c.l.b16 %v3455
        %v3975 = vunpack.c.l.b16 %v3456
        %v3976 = vunpack.c.l.b16 %v3457
        %v3977 = vunpack.c.l.b16 %v3458
        %v3978 = vunpack.c.l.b16 %v3459
        %v3979 = vunpack.c.l.b16 %v3460
        %v3980 = vunpack.c.l.b16 %v3461
        %v3981 = vunpack.c.l.b16 %v3462
        %v3982 = vunpack.c.l.b16 %v3463
        %v3983 = vunpack.c.l.b16 %v3464
        %v3984 = vunpack.c.l.b16 %v3465
        %v3985 = vunpack.c.l.b16 %v3466
        %v3986 = vunpack.c.l.b16 %v3467
        %v3987 = vunpack.c.l.b16 %v3468
        %v3988 = vunpack.c.l.b16 %v3469
        %v3989 = vunpack.c.l.b16 %v3470
        %v3990 = vunpack.c.l.b16 %v3471
        %v3991 = vunpack.c.l.b16 %v3472
        %v3992 = vunpack.c.l.b16 %v3473
        %v3993 = vunpack.c.l.b16 %v3474
        %v3994 = vunpack.c.l.b16 %v3475
        %v3995 = vunpack.c.l.b16 %v3476
        %v3996 = vunpack.c.l.b16 %v3477
        %v3997 = vunpack.c.l.b16 %v3478
        %v3998 = vunpack.c.l.b16 %v3479
        %v3999 = vunpack.c.l.b16 %v3480
        %v4000 = vunpack.c.l.b16 %v3481
        %v4001 = vunpack.c.l.b16 %v3482
        %v4002 = vunpack.c.l.b16 %v3483
        %v4003 = vunpack.c.l.b16 %v3484
        %v4004 = vunpack.c.l.b16 %v3485
        %v4005 = vunpack.c.l.b16 %v3486
        %v4006 = vunpack.c.l.b16 %v3487
        %v4007 = vunpack.c.l.b16 %v3488
        %v4008 = vunpack.c.l.b16 %v3489
        %v4009 = vunpack.c.l.b16 %v3490
        %v4010 = vunpack.c.l.b16 %v3491
        %v4011 = vunpack.c.l.b16 %v3492
        %v4012 = vunpack.c.l.b16 %v3493
        %v4013 = vunpack.c.l.b16 %v3494
        %v4014 = vunpack.c.l.b16 %v3495
        %v4015 = vunpack.c.l.b16 %v3496
        %v4016 = vunpack.c.l.b16 %v3497
        %v4017 = vunpack.c.l.b16 %v3498
        %v4018 = vunpack.c.l.b16 %v3499
        %v4019 = vunpack.c.l.b16 %v3500
        %v4020 = vunpack.c.l.b16 %v3501
        %v4021 = vunpack.c.l.b16 %v3502
        %v4022 = vunpack.c.l.b16 %v3503
        %v4023 = vunpack.c.l.b16 %v3504
        %v4024 = vunpack.c.l.b16 %v3505
        %v4025 = vunpack.c.l.b16 %v3506
        %v4026 = vunpack.c.l.b16 %v3507
        %v4027 = vunpack.c.l.b16 %v3508
        %v4028 = vunpack.c.l.b16 %v3509
        %v4029 = vunpack.c.l.b16 %v3510
        %v4030 = vunpack.c.l.b16 %v3511
        %v4031 = vunpack.c.l.b16 %v3512
        %v4032 = vunpack.c.l.b16 %v3513
        %v4033 = vunpack.c.l.b16 %v3514
        %v4034 = vunpack.c.l.b16 %v3515
        %v4035 = vunpack.c.l.b16 %v3516
        %v4036 = vunpack.c.l.b16 %v3517
        %v4037 = vunpack.c.l.b16 %v3518
        %v4038 = vunpack.c.l.b16 %v3519
        %v4039 = vunpack.c.l.b16 %v3520
        %v4040 = vunpack.c.l.b16 %v3521
        %v4041 = vunpack.c.l.b16 %v3522
        %v4042 = vunpack.c.l.b16 %v3523
        %v4043 = vunpack.c.l.b16 %v3524
        %v4044 = vunpack.c.l.b16 %v3525
        %v4045 = vunpack.c.l.b16 %v3526
        %v4046 = vunpack.c.l.b16 %v3527
        %v4047 = vunpack.c.l.b16 %v3528
        %v4048 = vunpack.c.l.b16 %v3529
        %v4049 = vunpack.c.l.b16 %v3530
        %v4050 = vunpack.c.l.b16 %v3531
        %v4051 = vunpack.c.l.b16 %v3532
        %v4052 = vunpack.c.l.b16 %v3533
        %v4053 = vunpack.c.l.b16 %v3534
        %v4054 = vunpack.c.l.b16 %v3535
        %v4055 = vunpack.c.l.b16 %v3536
        %v4056 = vunpack.c.l.b16 %v3537
        %v4057 = vunpack.c.l.b16 %v3538
        %v4058 = vunpack.c.l.b16 %v3539
        %v4059 = vunpack.c.l.b16 %v3540
        %v4060 = vunpack.c.l.b16 %v3541
        %v4061 = vunpack.c.l.b16 %v3542
        %v4062 = vunpack.c.l.b16 %v3543
        %v4063 = vunpack.c.l.b16 %v3544
        %v4064 = vunpack.c.l.b16 %v3545
        %v4065 = vunpack.c.l.b16 %v3546
        %v4066 = vunpack.c.l.b16 %v3547
        %v4067 = vunpack.c.l.b16 %v3548
        %v4068 = vunpack.c.l.b16 %v3549
        %v4069 = vunpack.c.l.b16 %v3550
        %v4070 = vunpack.c.l.b16 %v3551
        %v4071 = vunpack.c.l.b16 %v3552
        %v4072 = vunpack.c.l.b16 %v3553
        %v4073 = vunpack.c.l.b16 %v3554
        %v4074 = vunpack.c.l.b16 %v3555
        %v4075 = vunpack.c.l.b16 %v3556
        %v4076 = vunpack.c.l.b16 %v3557
        %v4077 = vunpack.c.l.b16 %v3558
        %v4078 = vunpack.c.l.b16 %v3559
        %v4079 = vunpack.c.l.b16 %v3560
        %v4080 = vunpack.c.l.b16 %v3561
        %v4081 = vunpack.c.l.b16 %v3562
        %v4082 = vunpack.c.l.b16 %v3563
        %v4083 = vunpack.c.l.b16 %v3564
        %v4084 = vunpack.c.l.b16 %v3565
        %v4085 = vunpack.c.l.b16 %v3566
        %v4086 = vunpack.c.l.b16 %v3567
        %v4087 = vunpack.c.l.b16 %v3568
        %v4088 = vunpack.c.l.b16 %v3569
        %v4089 = vunpack.c.l.b16 %v3570
        %v4090 = vunpack.c.l.b16 %v3571
        %v4091 = vunpack.c.l.b16 %v3572
        %v4092 = vunpack.c.l.b16 %v3573
        %v4093 = vunpack.c.l.b16 %v3574
        %v4094 = vunpack.c.l.b16 %v3575
        %v4095 = vunpack.c.l.b16 %v3576
        %v4096 = vunpack.c.l.b16 %v3577
        %v4097 = vunpack.c.l.b16 %v3578
        %v4098 = vunpack.c.l.b16 %v3579
        %v4099 = vunpack.c.l.b16 %v3580
        %v4100 = vunpack.c.l.b16 %v3581
        %v4101 = vunpack.c.l.b16 %v3582
        %v4102 = vunpack.c.l.b16 %v3583
        %v4103 = vunpack.c.l.b16 %v3584
        %v4104 = vunpack.c.l.b16 %v3585
        %v4105 = vunpack.c.l.b16 %v3586
        %v4106 = vunpack.c.l.b16 %v3587
        %v4107 = vunpack.c.l.b16 %v3588
        %v4108 = vunpack.c.l.b16 %v3589
        %v4109 = vunpack.c.l.b16 %v3590
        %v4110 = vunpack.c.l.b16 %v3591
        %v4111 = vunpack.c.l.b16 %v3592
        %v4112 = vunpack.c.l.b16 %v3593
        %v4113 = vunpack.c.l.b16 %v3594
        %v4114 = vunpack.c.l.b16 %v3595
        %v4115 = vunpack.c.l.b16 %v3596
        %v4116 = vunpack.c.l.b16 %v3597
        %v4117 = vunpack.c.l.b16 %v3598
        %v4118 = vunpack.c.l.b16 %v3599
        %v4119 = vunpack.c.l.b16 %v3600
        %v4120 = vunpack.c.l.b16 %v3601
        %v4121 = vunpack.c.l.b16 %v3602
        %v4122 = vunpack.c.l.b16 %v3603
        %v4123 = vunpack.c.l.b16 %v3604
        %v4124 = vunpack.c.l.b16 %v3605
        %v4125 = vunpack.c.l.b16 %v3606
        %v4126 = vunpack.c.l.b16 %v3607
        %v4127 = vunpack.c.l.b16 %v3608
        %v4128 = vunpack.c.l.b16 %v3609
        %v4129 = vunpack.c.l.b16 %v3610
        %v4130 = vunpack.c.l.b16 %v3611
        %v4131 = vunpack.c.l.b16 %v3612
        %v4132 = vunpack.c.l.b16 %v3613
        %v4133 = vunpack.c.l.b16 %v3614
        %v4134 = vunpack.c.l.b16 %v3615
        %v4135 = vunpack.c.l.b16 %v3616
        %v4136 = vunpack.c.l.b16 %v3617
        %v4137 = vunpack.c.l.b16 %v3618
        %v4138 = vunpack.c.l.b16 %v3619
        %v4139 = vunpack.c.l.b16 %v3620
        %v4140 = vunpack.c.l.b16 %v3621
        %v4141 = vunpack.c.l.b16 %v3622
        %v4142 = vunpack.c.l.b16 %v3623
        %v4143 = vunpack.c.l.b16 %v3624
        %v4144 = vunpack.c.l.b16 %v3625
        %v4145 = vunpack.c.l.b16 %v3626
        %v4146 = vunpack.c.l.b16 %v3627
        %v4147 = vunpack.c.l.b16 %v3628
        %v4148 = vunpack.c.l.b16 %v3629
        %v4149 = vunpack.c.l.b16 %v3630
        %v4150 = vunpack.c.l.b16 %v3631
        %v4151 = vunpack.c.l.b16 %v3632
        %v4152 = vunpack.c.l.b16 %v3633
        %v4153 = vunpack.c.l.b16 %v3634
        %v4154 = vunpack.c.l.b16 %v3635
        %v4155 = vunpack.c.l.b16 %v3636
        %v4156 = vunpack.c.l.b16 %v3637
        %v4157 = vunpack.c.l.b16 %v3638
        %v4158 = vpack.c.b16 %v3903, %v3902
        %v4159 = vpack.c.b16 %v3905, %v3904
        %v4160 = vpack.c.b16 %v3907, %v3906
        %v4161 = vpack.c.b16 %v3909, %v3908
        %v4162 = vpack.c.b16 %v3911, %v3910
        %v4163 = vpack.c.b16 %v3913, %v3912
        %v4164 = vpack.c.b16 %v3915, %v3914
        %v4165 = vpack.c.b16 %v3917, %v3916
        %v4166 = vpack.c.b16 %v3919, %v3918
        %v4167 = vpack.c.b16 %v3921, %v3920
        %v4168 = vpack.c.b16 %v3923, %v3922
        %v4169 = vpack.c.b16 %v3925, %v3924
        %v4170 = vpack.c.b16 %v3927, %v3926
        %v4171 = vpack.c.b16 %v3929, %v3928
        %v4172 = vpack.c.b16 %v3931, %v3930
        %v4173 = vpack.c.b16 %v3933, %v3932
        %v4174 = vpack.c.b16 %v3935, %v3934
        %v4175 = vpack.c.b16 %v3937, %v3936
        %v4176 = vpack.c.b16 %v3939, %v3938
        %v4177 = vpack.c.b16 %v3941, %v3940
        %v4178 = vpack.c.b16 %v3943, %v3942
        %v4179 = vpack.c.b16 %v3945, %v3944
        %v4180 = vpack.c.b16 %v3947, %v3946
        %v4181 = vpack.c.b16 %v3949, %v3948
        %v4182 = vpack.c.b16 %v3951, %v3950
        %v4183 = vpack.c.b16 %v3953, %v3952
        %v4184 = vpack.c.b16 %v3955, %v3954
        %v4185 = vpack.c.b16 %v3957, %v3956
        %v4186 = vpack.c.b16 %v3959, %v3958
        %v4187 = vpack.c.b16 %v3961, %v3960
        %v4188 = vpack.c.b16 %v3963, %v3962
        %v4189 = vpack.c.b16 %v3965, %v3964
        %v4190 = vpack.c.b16 %v3967, %v3966
        %v4191 = vpack.c.b16 %v3969, %v3968
        %v4192 = vpack.c.b16 %v3971, %v3970
        %v4193 = vpack.c.b16 %v3973, %v3972
        %v4194 = vpack.c.b16 %v3975, %v3974
        %v4195 = vpack.c.b16 %v3977, %v3976
        %v4196 = vpack.c.b16 %v3979, %v3978
        %v4197 = vpack.c.b16 %v3981, %v3980
        %v4198 = vpack.c.b16 %v3983, %v3982
        %v4199 = vpack.c.b16 %v3985, %v3984
        %v4200 = vpack.c.b16 %v3987, %v3986
        %v4201 = vpack.c.b16 %v3989, %v3988
        %v4202 = vpack.c.b16 %v3991, %v3990
        %v4203 = vpack.c.b16 %v3993, %v3992
        %v4204 = vpack.c.b16 %v3995, %v3994
        %v4205 = vpack.c.b16 %v3997, %v3996
        %v4206 = vpack.c.b16 %v3999, %v3998
        %v4207 = vpack.c.b16 %v4001, %v4000
        %v4208 = vpack.c.b16 %v4003, %v4002
        %v4209 = vpack.c.b16 %v4005, %v4004
        %v4210 = vpack.c.b16 %v4007, %v4006
        %v4211 = vpack.c.b16 %v4009, %v4008
        %v4212 = vpack.c.b16 %v4011, %v4010
        %v4213 = vpack.c.b16 %v4013, %v4012
        %v4214 = vpack.c.b16 %v4015, %v4014
        %v4215 = vpack.c.b16 %v4017, %v4016
        %v4216 = vpack.c.b16 %v4019, %v4018
        %v4217 = vpack.c.b16 %v4021, %v4020
        %v4218 = vpack.c.b16 %v4023, %v4022
        %v4219 = vpack.c.b16 %v4025, %v4024
        %v4220 = vpack.c.b16 %v4027, %v4026
        %v4221 = vpack.c.b16 %v4029, %v4028
        %v4222 = vpack.c.b16 %v4031, %v4030
        %v4223 = vpack.c.b16 %v4033, %v4032
        %v4224 = vpack.c.b16 %v4035, %v4034
        %v4225 = vpack.c.b16 %v4037, %v4036
        %v4226 = vpack.c.b16 %v4039, %v4038
        %v4227 = vpack.c.b16 %v4041, %v4040
        %v4228 = vpack.c.b16 %v4043, %v4042
        %v4229 = vpack.c.b16 %v4045, %v4044
        %v4230 = vpack.c.b16 %v4047, %v4046
        %v4231 = vpack.c.b16 %v4049, %v4048
        %v4232 = vpack.c.b16 %v4051, %v4050
        %v4233 = vpack.c.b16 %v4053, %v4052
        %v4234 = vpack.c.b16 %v4055, %v4054
        %v4235 = vpack.c.b16 %v4057, %v4056
        %v4236 = vpack.c.b16 %v4059, %v4058
        %v4237 = vpack.c.b16 %v4061, %v4060
        %v4238 = vpack.c.b16 %v4063, %v4062
        %v4239 = vpack.c.b16 %v4065, %v4064
        %v4240 = vpack.c.b16 %v4067, %v4066
        %v4241 = vpack.c.b16 %v4069, %v4068
        %v4242 = vpack.c.b16 %v4071, %v4070
        %v4243 = vpack.c.b16 %v4073, %v4072
        %v4244 = vpack.c.b16 %v4075, %v4074
        %v4245 = vpack.c.b16 %v4077, %v4076
        %v4246 = vpack.c.b16 %v4079, %v4078
        %v4247 = vpack.c.b16 %v4081, %v4080
        %v4248 = vpack.c.b16 %v4083, %v4082
        %v4249 = vpack.c.b16 %v4085, %v4084
        %v4250 = vpack.c.b16 %v4087, %v4086
        %v4251 = vpack.c.b16 %v4089, %v4088
        %v4252 = vpack.c.b16 %v4091, %v4090
        %v4253 = vpack.c.b16 %v4093, %v4092
        %v4254 = vpack.c.b16 %v4095, %v4094
        %v4255 = vpack.c.b16 %v4097, %v4096
        %v4256 = vpack.c.b16 %v4099, %v4098
        %v4257 = vpack.c.b16 %v4101, %v4100
        %v4258 = vpack.c.b16 %v4103, %v4102
        %v4259 = vpack.c.b16 %v4105, %v4104
        %v4260 = vpack.c.b16 %v4107, %v4106
        %v4261 = vpack.c.b16 %v4109, %v4108
        %v4262 = vpack.c.b16 %v4111, %v4110
        %v4263 = vpack.c.b16 %v4113, %v4112
        %v4264 = vpack.c.b16 %v4115, %v4114
        %v4265 = vpack.c.b16 %v4117, %v4116
        %v4266 = vpack.c.b16 %v4119, %v4118
        %v4267 = vpack.c.b16 %v4121, %v4120
        %v4268 = vpack.c.b16 %v4123, %v4122
        %v4269 = vpack.c.b16 %v4125, %v4124
        %v4270 = vpack.c.b16 %v4127, %v4126
        %v4271 = vpack.c.b16 %v4129, %v4128
        %v4272 = vpack.c.b16 %v4131, %v4130
        %v4273 = vpack.c.b16 %v4133, %v4132
        %v4274 = vpack.c.b16 %v4135, %v4134
        %v4275 = vpack.c.b16 %v4137, %v4136
        %v4276 = vpack.c.b16 %v4139, %v4138
        %v4277 = vpack.c.b16 %v4141, %v4140
        %v4278 = vpack.c.b16 %v4143, %v4142
        %v4279 = vpack.c.b16 %v4145, %v4144
        %v4280 = vpack.c.b16 %v4147, %v4146
        %v4281 = vpack.c.b16 %v4149, %v4148
        %v4282 = vpack.c.b16 %v4151, %v4150
        %v4283 = vpack.c.b16 %v4153, %v4152
        %v4284 = vpack.c.b16 %v4155, %v4154
        %v4285 = vpack.c.b16 %v4157, %v4156
        %4414 = vmatprep.subr.bf16.mxu0 0
        %4415 = vmatpush1.bf16.msra.mxu0 %v4158
        %4416 = vmatprep.subr.bf16.mxu0 0
        %4417 = vmatpush1.bf16.msra.mxu0 %v4159
        %4418 = vmatprep.subr.bf16.mxu0 0
        %4419 = vmatpush1.bf16.msra.mxu0 %v4160
        %4420 = vmatprep.subr.bf16.mxu0 0
        %4421 = vmatpush1.bf16.msra.mxu0 %v4161
        %4422 = vmatprep.subr.bf16.mxu0 0
        %4423 = vmatpush1.bf16.msra.mxu0 %v4162
        %4424 = vmatprep.subr.bf16.mxu0 0
        %4425 = vmatpush1.bf16.msra.mxu0 %v4163
        %4426 = vmatprep.subr.bf16.mxu0 0
        %4427 = vmatpush1.bf16.msra.mxu0 %v4164
        %4428 = vmatprep.subr.bf16.mxu0 0
        %4429 = vmatpush1.bf16.msra.mxu0 %v4165
        %4430 = vmatprep.subr.bf16.mxu0 0
        %4431 = vmatpush1.bf16.msra.mxu0 %v4166
        %4432 = vmatprep.subr.bf16.mxu0 0
        %4433 = vmatpush1.bf16.msra.mxu0 %v4167
        %4434 = vmatprep.subr.bf16.mxu0 0
        %4435 = vmatpush1.bf16.msra.mxu0 %v4168
        %4436 = vmatprep.subr.bf16.mxu0 0
        %4437 = vmatpush1.bf16.msra.mxu0 %v4169
        %4438 = vmatprep.subr.bf16.mxu0 0
        %4439 = vmatpush1.bf16.msra.mxu0 %v4170
        %4440 = vmatprep.subr.bf16.mxu0 0
        %4441 = vmatpush1.bf16.msra.mxu0 %v4171
        %4442 = vmatprep.subr.bf16.mxu0 0
        %4443 = vmatpush1.bf16.msra.mxu0 %v4172
        %4444 = vmatprep.subr.bf16.mxu0 0
        %4445 = vmatpush1.bf16.msra.mxu0 %v4173
        %4446 = vmatprep.mubr.bf16.mxu0 %v3368
        %4447 = vmatmul.mubr.bf16.gmra.mrb[0].mxu0 %v3367
        %v4448 = vpop.f32.mrb[0].mxu0
        %v4449 = vadd.f32 %v3644, %v4448
        %v4450 = vpop.f32.mrb[0].mxu0
        %v4451 = vpop.f32.mrb[0].mxu0
        %v4452 = vpop.f32.mrb[0].mxu0
        %4453 = vdwg.mxu0
        %4454 = vmatprep.subr.bf16.mxu0 0
        %4455 = vmatpush1.bf16.msra.mxu0 %v4174
        %4456 = vmatprep.subr.bf16.mxu0 0
        %4457 = vmatpush1.bf16.msra.mxu0 %v4175
        %4458 = vmatprep.subr.bf16.mxu0 0
        %4459 = vmatpush1.bf16.msra.mxu0 %v4176
        %4460 = vmatprep.subr.bf16.mxu0 0
        %4461 = vmatpush1.bf16.msra.mxu0 %v4177
        %4462 = vmatprep.subr.bf16.mxu0 0
        %4463 = vmatpush1.bf16.msra.mxu0 %v4178
        %4464 = vmatprep.subr.bf16.mxu0 0
        %4465 = vmatpush1.bf16.msra.mxu0 %v4179
        %4466 = vmatprep.subr.bf16.mxu0 0
        %4467 = vmatpush1.bf16.msra.mxu0 %v4180
        %4468 = vmatprep.subr.bf16.mxu0 0
        %4469 = vmatpush1.bf16.msra.mxu0 %v4181
        %4470 = vmatprep.subr.bf16.mxu0 0
        %4471 = vmatpush1.bf16.msra.mxu0 %v4182
        %4472 = vmatprep.subr.bf16.mxu0 0
        %4473 = vmatpush1.bf16.msra.mxu0 %v4183
        %4474 = vmatprep.subr.bf16.mxu0 0
        %4475 = vmatpush1.bf16.msra.mxu0 %v4184
        %4476 = vmatprep.subr.bf16.mxu0 0
        %4477 = vmatpush1.bf16.msra.mxu0 %v4185
        %4478 = vmatprep.subr.bf16.mxu0 0
        %4479 = vmatpush1.bf16.msra.mxu0 %v4186
        %4480 = vmatprep.subr.bf16.mxu0 0
        %4481 = vmatpush1.bf16.msra.mxu0 %v4187
        %4482 = vmatprep.subr.bf16.mxu0 0
        %4483 = vmatpush1.bf16.msra.mxu0 %v4188
        %4484 = vmatprep.subr.bf16.mxu0 0
        %4485 = vmatpush1.bf16.msra.mxu0 %v4189
        %4486 = vmatprep.mubr.bf16.mxu0 %v3370
        %4487 = vmatmul.mubr.bf16.gmra.mrb[0].mxu0 %v3369
        %v4488 = vpop.f32.mrb[0].mxu0
        %v4489 = vadd.f32 %v4449, %v4488
        %v4490 = vpop.f32.mrb[0].mxu0
        %v4491 = vpop.f32.mrb[0].mxu0
        %v4492 = vpop.f32.mrb[0].mxu0
        %4493 = vdwg.mxu0
        %4494 = vmatprep.subr.bf16.mxu0 0
        %4495 = vmatpush1.bf16.msra.mxu0 %v4190
        %4496 = vmatprep.subr.bf16.mxu0 0
        %4497 = vmatpush1.bf16.msra.mxu0 %v4191
        %4498 = vmatprep.subr.bf16.mxu0 0
        %4499 = vmatpush1.bf16.msra.mxu0 %v4192
        %4500 = vmatprep.subr.bf16.mxu0 0
        %4501 = vmatpush1.bf16.msra.mxu0 %v4193
        %4502 = vmatprep.subr.bf16.mxu0 0
        %4503 = vmatpush1.bf16.msra.mxu0 %v4194
        %4504 = vmatprep.subr.bf16.mxu0 0
        %4505 = vmatpush1.bf16.msra.mxu0 %v4195
        %4506 = vmatprep.subr.bf16.mxu0 0
        %4507 = vmatpush1.bf16.msra.mxu0 %v4196
        %4508 = vmatprep.subr.bf16.mxu0 0
        %4509 = vmatpush1.bf16.msra.mxu0 %v4197
        %4510 = vmatprep.subr.bf16.mxu0 0
        %4511 = vmatpush1.bf16.msra.mxu0 %v4198
        %4512 = vmatprep.subr.bf16.mxu0 0
        %4513 = vmatpush1.bf16.msra.mxu0 %v4199
        %4514 = vmatprep.subr.bf16.mxu0 0
        %4515 = vmatpush1.bf16.msra.mxu0 %v4200
        %4516 = vmatprep.subr.bf16.mxu0 0
        %4517 = vmatpush1.bf16.msra.mxu0 %v4201
        %4518 = vmatprep.subr.bf16.mxu0 0
        %4519 = vmatpush1.bf16.msra.mxu0 %v4202
        %4520 = vmatprep.subr.bf16.mxu0 0
        %4521 = vmatpush1.bf16.msra.mxu0 %v4203
        %4522 = vmatprep.subr.bf16.mxu0 0
        %4523 = vmatpush1.bf16.msra.mxu0 %v4204
        %4524 = vmatprep.subr.bf16.mxu0 0
        %4525 = vmatpush1.bf16.msra.mxu0 %v4205
        %4526 = vmatprep.mubr.bf16.mxu0 %v3372
        %4527 = vmatmul.mubr.bf16.gmra.mrb[0].mxu0 %v3371
        %v4528 = vpop.f32.mrb[0].mxu0
        %v4529 = vadd.f32 %v4489, %v4528
        %v4530 = vpop.f32.mrb[0].mxu0
        %v4531 = vpop.f32.mrb[0].mxu0
        %v4532 = vpop.f32.mrb[0].mxu0
        %4533 = vdwg.mxu0
        %4534 = vmatprep.subr.bf16.mxu0 0
        %4535 = vmatpush1.bf16.msra.mxu0 %v4206
        %4536 = vmatprep.subr.bf16.mxu0 0
        %4537 = vmatpush1.bf16.msra.mxu0 %v4207
        %4538 = vmatprep.subr.bf16.mxu0 0
        %4539 = vmatpush1.bf16.msra.mxu0 %v4208
        %4540 = vmatprep.subr.bf16.mxu0 0
        %4541 = vmatpush1.bf16.msra.mxu0 %v4209
        %4542 = vmatprep.subr.bf16.mxu0 0
        %4543 = vmatpush1.bf16.msra.mxu0 %v4210
        %4544 = vmatprep.subr.bf16.mxu0 0
        %4545 = vmatpush1.bf16.msra.mxu0 %v4211
        %4546 = vmatprep.subr.bf16.mxu0 0
        %4547 = vmatpush1.bf16.msra.mxu0 %v4212
        %4548 = vmatprep.subr.bf16.mxu0 0
        %4549 = vmatpush1.bf16.msra.mxu0 %v4213
        %4550 = vmatprep.subr.bf16.mxu0 0
        %4551 = vmatpush1.bf16.msra.mxu0 %v4214
        %4552 = vmatprep.subr.bf16.mxu0 0
        %4553 = vmatpush1.bf16.msra.mxu0 %v4215
        %4554 = vmatprep.subr.bf16.mxu0 0
        %4555 = vmatpush1.bf16.msra.mxu0 %v4216
        %4556 = vmatprep.subr.bf16.mxu0 0
        %4557 = vmatpush1.bf16.msra.mxu0 %v4217
        %4558 = vmatprep.subr.bf16.mxu0 0
        %4559 = vmatpush1.bf16.msra.mxu0 %v4218
        %4560 = vmatprep.subr.bf16.mxu0 0
        %4561 = vmatpush1.bf16.msra.mxu0 %v4219
        %4562 = vmatprep.subr.bf16.mxu0 0
        %4563 = vmatpush1.bf16.msra.mxu0 %v4220
        %4564 = vmatprep.subr.bf16.mxu0 0
        %4565 = vmatpush1.bf16.msra.mxu0 %v4221
        %4566 = vmatprep.mubr.bf16.mxu0 %v3374
        %4567 = vmatmul.mubr.bf16.gmra.mrb[0].mxu0 %v3373
        %v4568 = vpop.f32.mrb[0].mxu0
        %v4569 = vadd.f32 %v4529, %v4568
        %v4570 = vpop.f32.mrb[0].mxu0
        %v4571 = vpop.f32.mrb[0].mxu0
        %v4572 = vpop.f32.mrb[0].mxu0
        %4573 = vdwg.mxu0
        %4574 = vmatprep.subr.bf16.mxu0 0
        %4575 = vmatpush1.bf16.msra.mxu0 %v4222
        %4576 = vmatprep.subr.bf16.mxu0 0
        %4577 = vmatpush1.bf16.msra.mxu0 %v4223
        %4578 = vmatprep.subr.bf16.mxu0 0
        %4579 = vmatpush1.bf16.msra.mxu0 %v4224
        %4580 = vmatprep.subr.bf16.mxu0 0
        %4581 = vmatpush1.bf16.msra.mxu0 %v4225
        %4582 = vmatprep.subr.bf16.mxu0 0
        %4583 = vmatpush1.bf16.msra.mxu0 %v4226
        %4584 = vmatprep.subr.bf16.mxu0 0
        %4585 = vmatpush1.bf16.msra.mxu0 %v4227
        %4586 = vmatprep.subr.bf16.mxu0 0
        %4587 = vmatpush1.bf16.msra.mxu0 %v4228
        %4588 = vmatprep.subr.bf16.mxu0 0
        %4589 = vmatpush1.bf16.msra.mxu0 %v4229
        %4590 = vmatprep.subr.bf16.mxu0 0
        %4591 = vmatpush1.bf16.msra.mxu0 %v4230
        %4592 = vmatprep.subr.bf16.mxu0 0
        %4593 = vmatpush1.bf16.msra.mxu0 %v4231
        %4594 = vmatprep.subr.bf16.mxu0 0
        %4595 = vmatpush1.bf16.msra.mxu0 %v4232
        %4596 = vmatprep.subr.bf16.mxu0 0
        %4597 = vmatpush1.bf16.msra.mxu0 %v4233
        %4598 = vmatprep.subr.bf16.mxu0 0
        %4599 = vmatpush1.bf16.msra.mxu0 %v4234
        %4600 = vmatprep.subr.bf16.mxu0 0
        %4601 = vmatpush1.bf16.msra.mxu0 %v4235
        %4602 = vmatprep.subr.bf16.mxu0 0
        %4603 = vmatpush1.bf16.msra.mxu0 %v4236
        %4604 = vmatprep.subr.bf16.mxu0 0
        %4605 = vmatpush1.bf16.msra.mxu0 %v4237
        %4606 = vmatprep.mubr.bf16.mxu0 %v3376
        %4607 = vmatmul.mubr.bf16.gmra.mrb[0].mxu0 %v3375
        %v4608 = vpop.f32.mrb[0].mxu0
        %v4609 = vadd.f32 %v4569, %v4608
        %v4610 = vpop.f32.mrb[0].mxu0
        %v4611 = vpop.f32.mrb[0].mxu0
        %v4612 = vpop.f32.mrb[0].mxu0
        %4613 = vdwg.mxu0
        %4614 = vmatprep.subr.bf16.mxu0 0
        %4615 = vmatpush1.bf16.msra.mxu0 %v4238
        %4616 = vmatprep.subr.bf16.mxu0 0
        %4617 = vmatpush1.bf16.msra.mxu0 %v4239
        %4618 = vmatprep.subr.bf16.mxu0 0
        %4619 = vmatpush1.bf16.msra.mxu0 %v4240
        %4620 = vmatprep.subr.bf16.mxu0 0
        %4621 = vmatpush1.bf16.msra.mxu0 %v4241
        %4622 = vmatprep.subr.bf16.mxu0 0
        %4623 = vmatpush1.bf16.msra.mxu0 %v4242
        %4624 = vmatprep.subr.bf16.mxu0 0
        %4625 = vmatpush1.bf16.msra.mxu0 %v4243
        %4626 = vmatprep.subr.bf16.mxu0 0
        %4627 = vmatpush1.bf16.msra.mxu0 %v4244
        %4628 = vmatprep.subr.bf16.mxu0 0
        %4629 = vmatpush1.bf16.msra.mxu0 %v4245
        %4630 = vmatprep.subr.bf16.mxu0 0
        %4631 = vmatpush1.bf16.msra.mxu0 %v4246
        %4632 = vmatprep.subr.bf16.mxu0 0
        %4633 = vmatpush1.bf16.msra.mxu0 %v4247
        %4634 = vmatprep.subr.bf16.mxu0 0
        %4635 = vmatpush1.bf16.msra.mxu0 %v4248
        %4636 = vmatprep.subr.bf16.mxu0 0
        %4637 = vmatpush1.bf16.msra.mxu0 %v4249
        %4638 = vmatprep.subr.bf16.mxu0 0
        %4639 = vmatpush1.bf16.msra.mxu0 %v4250
        %4640 = vmatprep.subr.bf16.mxu0 0
        %4641 = vmatpush1.bf16.msra.mxu0 %v4251
        %4642 = vmatprep.subr.bf16.mxu0 0
        %4643 = vmatpush1.bf16.msra.mxu0 %v4252
        %4644 = vmatprep.subr.bf16.mxu0 0
        %4645 = vmatpush1.bf16.msra.mxu0 %v4253
        %4646 = vmatprep.mubr.bf16.mxu0 %v3378
        %4647 = vmatmul.mubr.bf16.gmra.mrb[0].mxu0 %v3377
        %v4648 = vpop.f32.mrb[0].mxu0
        %v4649 = vadd.f32 %v4609, %v4648
        %v4650 = vpop.f32.mrb[0].mxu0
        %v4651 = vpop.f32.mrb[0].mxu0
        %v4652 = vpop.f32.mrb[0].mxu0
        %4653 = vdwg.mxu0
        %4654 = vmatprep.subr.bf16.mxu0 0
        %4655 = vmatpush1.bf16.msra.mxu0 %v4254
        %4656 = vmatprep.subr.bf16.mxu0 0
        %4657 = vmatpush1.bf16.msra.mxu0 %v4255
        %4658 = vmatprep.subr.bf16.mxu0 0
        %4659 = vmatpush1.bf16.msra.mxu0 %v4256
        %4660 = vmatprep.subr.bf16.mxu0 0
        %4661 = vmatpush1.bf16.msra.mxu0 %v4257
        %4662 = vmatprep.subr.bf16.mxu0 0
        %4663 = vmatpush1.bf16.msra.mxu0 %v4258
        %4664 = vmatprep.subr.bf16.mxu0 0
        %4665 = vmatpush1.bf16.msra.mxu0 %v4259
        %4666 = vmatprep.subr.bf16.mxu0 0
        %4667 = vmatpush1.bf16.msra.mxu0 %v4260
        %4668 = vmatprep.subr.bf16.mxu0 0
        %4669 = vmatpush1.bf16.msra.mxu0 %v4261
        %4670 = vmatprep.subr.bf16.mxu0 0
        %4671 = vmatpush1.bf16.msra.mxu0 %v4262
        %4672 = vmatprep.subr.bf16.mxu0 0
        %4673 = vmatpush1.bf16.msra.mxu0 %v4263
        %4674 = vmatprep.subr.bf16.mxu0 0
        %4675 = vmatpush1.bf16.msra.mxu0 %v4264
        %4676 = vmatprep.subr.bf16.mxu0 0
        %4677 = vmatpush1.bf16.msra.mxu0 %v4265
        %4678 = vmatprep.subr.bf16.mxu0 0
        %4679 = vmatpush1.bf16.msra.mxu0 %v4266
        %4680 = vmatprep.subr.bf16.mxu0 0
        %4681 = vmatpush1.bf16.msra.mxu0 %v4267
        %4682 = vmatprep.subr.bf16.mxu0 0
        %4683 = vmatpush1.bf16.msra.mxu0 %v4268
        %4684 = vmatprep.subr.bf16.mxu0 0
        %4685 = vmatpush1.bf16.msra.mxu0 %v4269
        %4686 = vmatprep.mubr.bf16.mxu0 %v3380
        %4687 = vmatmul.mubr.bf16.gmra.mrb[0].mxu0 %v3379
        %v4688 = vpop.f32.mrb[0].mxu0
        %v4689 = vadd.f32 %v4649, %v4688
        %v4690 = vpop.f32.mrb[0].mxu0
        %v4691 = vpop.f32.mrb[0].mxu0
        %v4692 = vpop.f32.mrb[0].mxu0
        %4693 = vdwg.mxu0
        %4694 = vmatprep.subr.bf16.mxu0 0
        %4695 = vmatpush1.bf16.msra.mxu0 %v4270
        %4696 = vmatprep.subr.bf16.mxu0 0
        %4697 = vmatpush1.bf16.msra.mxu0 %v4271
        %4698 = vmatprep.subr.bf16.mxu0 0
        %4699 = vmatpush1.bf16.msra.mxu0 %v4272
        %4700 = vmatprep.subr.bf16.mxu0 0
        %4701 = vmatpush1.bf16.msra.mxu0 %v4273
        %4702 = vmatprep.subr.bf16.mxu0 0
        %4703 = vmatpush1.bf16.msra.mxu0 %v4274
        %4704 = vmatprep.subr.bf16.mxu0 0
        %4705 = vmatpush1.bf16.msra.mxu0 %v4275
        %4706 = vmatprep.subr.bf16.mxu0 0
        %4707 = vmatpush1.bf16.msra.mxu0 %v4276
        %4708 = vmatprep.subr.bf16.mxu0 0
        %4709 = vmatpush1.bf16.msra.mxu0 %v4277
        %4710 = vmatprep.subr.bf16.mxu0 0
        %4711 = vmatpush1.bf16.msra.mxu0 %v4278
        %4712 = vmatprep.subr.bf16.mxu0 0
        %4713 = vmatpush1.bf16.msra.mxu0 %v4279
        %4714 = vmatprep.subr.bf16.mxu0 0
        %4715 = vmatpush1.bf16.msra.mxu0 %v4280
        %4716 = vmatprep.subr.bf16.mxu0 0
        %4717 = vmatpush1.bf16.msra.mxu0 %v4281
        %4718 = vmatprep.subr.bf16.mxu0 0
        %4719 = vmatpush1.bf16.msra.mxu0 %v4282
        %4720 = vmatprep.subr.bf16.mxu0 0
        %4721 = vmatpush1.bf16.msra.mxu0 %v4283
        %4722 = vmatprep.subr.bf16.mxu0 0
        %4723 = vmatpush1.bf16.msra.mxu0 %v4284
        %4724 = vmatprep.subr.bf16.mxu0 0
        %4725 = vmatpush1.bf16.msra.mxu0 %v4285
        %4726 = vmatprep.mubr.bf16.mxu0 %v3382
        %4727 = vmatmul.mubr.bf16.gmra.mrb[0].mxu0 %v3381
        %v4728 = vpop.f32.mrb[0].mxu0
        %v4729 = vadd.f32 %v4689, %v4728
        %v4730 = vpop.f32.mrb[0].mxu0
        %v4731 = vpop.f32.mrb[0].mxu0
        %v4732 = vpop.f32.mrb[0].mxu0
        %4733 = vdwg.mxu0
        %v4734 = vmax.f32 %v4729, 0.0
        %v4735 = vld [vmem:[%s7] sm:$0xff]
        %v4736 = vld [vmem:[%s7 + $0x8] sm:$0xff]
        %v4737 = vld [vmem:[%s7 + $0x10] sm:$0xff]
        %v4738 = vld [vmem:[%s7 + $0x18] sm:$0xff]
        %v4739 = vld [vmem:[%s7 + $0x20] sm:$0xff]
        %v4740 = vld [vmem:[%s7 + $0x28] sm:$0xff]
        %v4741 = vld [vmem:[%s7 + $0x30] sm:$0xff]
        %v4742 = vld [vmem:[%s7 + $0x38] sm:$0xff]
        %v4743 = vld [vmem:[%s8] sm:$0x1]
        %v4745 = vlaneseq
        %v4746 = vshrl.u32 %v4745, 7
        %v4747 = vsub.s32 0, %v4746
        %v4748 = vrot.slane %v4743, %v4747
        %v4751 = vsel %vm2666, %v4734, 0
        %4753 = vmatprep.subr.mxu0 0.0
        %4754 = vmatpush1.msra.mxu0 %v4735
        %4755 = vmatprep.subr.mxu0 0.0
        %4756 = vmatpush1.msra.mxu0 %v4736
        %4757 = vmatprep.subr.mxu0 0.0
        %4758 = vmatpush1.msra.mxu0 %v4737
        %4759 = vmatprep.subr.mxu0 0.0
        %4760 = vmatpush1.msra.mxu0 %v4738
        %4761 = vmatprep.subr.mxu0 0.0
        %4762 = vmatpush1.msra.mxu0 %v4739
        %4763 = vmatprep.subr.mxu0 0.0
        %4764 = vmatpush1.msra.mxu0 %v4740
        %4765 = vmatprep.subr.mxu0 0.0
        %4766 = vmatpush1.msra.mxu0 %v4741
        %4767 = vmatprep.subr.mxu0 0.0
        %4768 = vmatpush1.msra.mxu0 %v4742
        %4769 = vmatprep.subr.mxu0 0.0
        %4770 = vmatpush1.msra.mxu0 0.0
        %4771 = vmatprep.subr.mxu0 0.0
        %4772 = vmatpush1.msra.mxu0 0.0
        %4773 = vmatprep.subr.mxu0 0.0
        %4774 = vmatpush1.msra.mxu0 0.0
        %4775 = vmatprep.subr.mxu0 0.0
        %4776 = vmatpush1.msra.mxu0 0.0
        %4777 = vmatprep.subr.mxu0 0.0
        %4778 = vmatpush1.msra.mxu0 0.0
        %4779 = vmatprep.subr.mxu0 0.0
        %4780 = vmatpush1.msra.mxu0 0.0
        %4781 = vmatprep.subr.mxu0 0.0
        %4782 = vmatpush1.msra.mxu0 0.0
        %4783 = vmatprep.subr.mxu0 0.0
        %4784 = vmatpush1.msra.mxu0 0.0
        %4785 = vmatprep.subr.mxu0 0.0
        %4786 = vmatpush1.msra.mxu0 0.0
        %4787 = vmatprep.subr.mxu0 0.0
        %4788 = vmatpush1.msra.mxu0 0.0
        %4789 = vmatprep.subr.mxu0 0.0
        %4790 = vmatpush1.msra.mxu0 0.0
        %4791 = vmatprep.subr.mxu0 0.0
        %4792 = vmatpush1.msra.mxu0 0.0
        %4793 = vmatprep.subr.mxu0 0.0
        %4794 = vmatpush1.msra.mxu0 0.0
        %4795 = vmatprep.subr.mxu0 0.0
        %4796 = vmatpush1.msra.mxu0 0.0
        %4797 = vmatprep.subr.mxu0 0.0
        %4798 = vmatpush1.msra.mxu0 0.0
        %4799 = vmatprep.subr.mxu0 0.0
        %4800 = vmatpush1.msra.mxu0 0.0
        %4801 = vmatprep.subr.mxu0 0.0
        %4802 = vmatpush1.msra.mxu0 0.0
        %4803 = vmatprep.subr.mxu0 0.0
        %4804 = vmatpush1.msra.mxu0 0.0
        %4805 = vmatprep.subr.mxu0 0.0
        %4806 = vmatpush1.msra.mxu0 0.0
        %4807 = vmatprep.subr.mxu0 0.0
        %4808 = vmatpush1.msra.mxu0 0.0
        %4809 = vmatprep.subr.mxu0 0.0
        %4810 = vmatpush1.msra.mxu0 0.0
        %4811 = vmatprep.subr.mxu0 0.0
        %4812 = vmatpush1.msra.mxu0 0.0
        %4813 = vmatprep.subr.mxu0 0.0
        %4814 = vmatpush1.msra.mxu0 0.0
        %4815 = vmatprep.subr.mxu0 0.0
        %4816 = vmatpush1.msra.mxu0 0.0
        %4817 = vmatprep.mubr.f32.mxu0 0.0
        %4818 = vmatmul.mubr.f32.gmra.mrb[0].mxu0 %v4751
        %v4819 = vpop.f32.mrb[0].mxu0
        %v4820 = vadd.f32 %v4748, %v4819
        %v4821 = vpop.f32.mrb[0].mxu0
        %4822 = vdwg.mxu0
        %vm4823 = vcmask 41984
        %v4824 = vsel %vm4823, %v4820, -inf
        %4825 = vmax.xlane.f32.xlu0 %v4824
        %v4826 = vpop.xlane.xlu0 %4825
        %v4827 = vsub.f32 %v4820, %v4826
        %v4828 = vmul.f32 %v4827, 1.442695
        %v4829 = vpow.pop %v4828
        %v4830 = vsel %vm4823, %v4829, 0.0
        %4831 = vadd.xlane.f32.xlu0 %v4830
        %v4832 = vpop.xlane.xlu0 %4831
        %v4833 = vrcp.pop %v4832
        %v4834 = vmul.f32 %v4829, %v4833
        %vm4835 = vcmask 48128
        %v4836 = vsel %vm4835, %v4834, %v4820
        %v4839 = vunpack.c.l.s4 1966171168
        %v4840 = vunpack.c.0.s8 %v4839
        %v4841 = vlaneseq
        %v4842 = vshrl.u32 %v4841, 7
        %v4843 = vsub.s32 %v4840, %v4842
        %v4844 = vrot.slane %v4836, %v4843
        %v4845 = vcombine.high %v4844, %v4844
        %v4847 = vunpack.c.l.s4 1966171168
        %v4848 = vunpack.c.0.s8 %v4847
        %v4849 = vlaneseq
        %v4850 = vshrl.u32 %v4849, 7
        %v4851 = vsub.s32 %v4848, %v4850
        %v4852 = vrot.slane %v4844, %v4851
        %v4854 = vunpack.c.l.s4 1966171168
        %v4855 = vunpack.c.0.s8 %v4854
        %v4856 = vlaneseq
        %v4857 = vshrl.u32 %v4856, 7
        %v4858 = vsub.s32 %v4855, %v4857
        %v4859 = vrot.slane %v4845, %v4858
        %4862 = vst [vmem:[%s626] sm:$0x1] %v4852
        %4863 = vst [vmem:[%s626 + $0x1] sm:$0x1] %v4859
        %s4864 = smul.u32 2, %s20
        %p4865 = scmp.lt.s32.totalorder %s4864, 3
        %s4866 = scalar_select %p4865, %s4864, 3
        %s4867 = scalar_lea.vmem %s9, %s4866
        // Predicated region
        $region98: #{ppo_agent_forward.1} parent=92 // pred_check
          %p4868 = pneg %p232
        $region99: #{ppo_agent_forward.1} parent=92 // pred_check_branch
          %4870 = sbr.rel (%p4868) target = $region101
        $region100: #{ppo_agent_forward.1} parent=92 // pred_region
          %s4871 = smul.u32 2, %s20
        $region101: #{ppo_agent_forward.1} parent=92 // pred_fallthru
          _
      $region93: #{ppo_agent_forward.1} parent=5 // pred_fallthru
        _
      %p4872 = scmp.le.s32.totalorder 2, %s15
      // Predicated region
      $region102: #{ppo_agent_forward.1} parent=5 // pred_check
        %p4873 = pneg %p4872
      $region103: #{ppo_agent_forward.1} parent=5 // pred_check_branch
        %4875 = sbr.rel (%p4873) target = $region105
      $region104: #{ppo_agent_forward.1} parent=5 // pred_region
        %s4876 = ssub.s32 %s15, 2
        // Predicated region
        $region106: #{ppo_agent_forward.1} parent=104 // pred_check
          %p4877 = pneg %p238
        $region107: #{ppo_agent_forward.1} parent=104 // pred_check_branch
          %4879 = sbr.rel (%p4877) target = $region109
        $region108: #{ppo_agent_forward.1} parent=104 // pred_region
          %s4880 = smul.u32 2, %s21
          %p4881 = scmp.lt.s32.totalorder %s4880, 3
          %s4882 = scalar_select %p4881, %s4880, 3
          %s4883 = scalar_lea.vmem %s9, %s4882
        $region109: #{ppo_agent_forward.1} parent=104 // pred_fallthru
          _
      $region105: #{ppo_agent_forward.1} parent=5 // pred_fallthru
        _
    $region6: #{ppo_agent_forward.1} parent=1 // loop_footer
      %s19 = sadd.s32 1, %s15
    $region7: #{ppo_agent_forward.1} parent=1 // loop_footer_branch
      %14 = sbr.rel target = $region3
    $region8: #{ppo_agent_forward.1} parent=1 // loop_exit
      _

</llo_original>
